<compile_context>
chip_gen: v6e
topology: v6e:2x2x1
jax: 0.10.0
libtpu: 0.0.40
codegen_flags: <defaults>
</compile_context>

<pallas_src>
import jax
import jax.numpy as jnp
from jax.experimental import pallas as pl

# ---- small, self-consistent config (module globals scaled down, lane-friendly) ----
N_EMBD = 128          # n_embd
N_HEAD = 4            # n_head
HEAD_SIZE = N_EMBD // N_HEAD
SEQ = 64              # T (<= block_size)
BATCH = 2
EPS = 1e-5            # nn.LayerNorm default
FF_CHUNK = 128        # columns of the 4*C hidden dim processed per chunk
NEG_BIG = -1e30       # large finite negative (robust vs. -inf - -inf NaNs)


def block_kernel(x_ref,
                 ln1_g_ref, ln1_b_ref,
                 wqkv_ref, wproj_ref, bproj_ref,
                 ln2_g_ref, ln2_b_ref,
                 w1_ref, b1_ref, w2_ref, b2_ref,
                 o_ref):
    x = x_ref[...]                              # (B*T, C) f32
    BT, C = x.shape
    T = SEQ
    B = BT // T

    # ---------- LayerNorm 1 ----------
    mean1 = jnp.mean(x, axis=-1, keepdims=True)
    var1 = jnp.mean((x - mean1) ** 2, axis=-1, keepdims=True)
    xn1 = (x - mean1) * jax.lax.rsqrt(var1 + EPS)
    xn1 = xn1 * ln1_g_ref[0] + ln1_b_ref[0]
    xn1_bf = xn1.astype(jnp.bfloat16)

    # ---------- fused QKV projection over all B*T rows (bf16 MXU, f32 acc) ----------
    qkv = jnp.dot(xn1_bf, wqkv_ref[...], preferred_element_type=jnp.float32)
    q, k, v = qkv[:, :C], qkv[:, C:2 * C], qkv[:, 2 * C:]

    # causal additive bias, built once (single grid step)
    row = jax.lax.broadcasted_iota(jnp.int32, (T, T), 0)
    col = jax.lax.broadcasted_iota(jnp.int32, (T, T), 1)
    causal_bias = jnp.where(col <= row, 0.0, NEG_BIG).astype(jnp.float32)

    # NOTE: reference scales by n_embd ** -0.5 (NOT head_size ** -0.5).
    scale = C ** (-0.5)

    # per-(batch, head) attention; small static unrolled loops (B*H = 8)
    per_batch = []
    for b in range(B):
        r0 = b * T
        head_outs = []
        for h in range(N_HEAD):
            c0 = h * HEAD_SIZE
            qh = q[r0:r0 + T, c0:c0 + HEAD_SIZE].astype(jnp.bfloat16)
            kh = k[r0:r0 + T, c0:c0 + HEAD_SIZE].astype(jnp.bfloat16)
            vh = v[r0:r0 + T, c0:c0 + HEAD_SIZE].astype(jnp.bfloat16)
            s = jnp.dot(qh, kh.T, preferred_element_type=jnp.float32)
            s = s * scale + causal_bias
            s = s - jnp.max(s, axis=-1, keepdims=True)
            p = jnp.exp(s)                                       # (T, T) f32
            denom = jnp.sum(p, axis=-1, keepdims=True)           # (T, 1)
            oh = jnp.dot(p.astype(jnp.bfloat16), vh,
                         preferred_element_type=jnp.float32)     # (T, D)
            # normalize the small (T, head_size) output, reciprocal on the EUP
            oh = oh * pl.reciprocal(denom, approx=True)
            # TODO(synk): nn.Dropout on attention weights is identity in eval.
            head_outs.append(oh)
        per_batch.append(jnp.concatenate(head_outs, axis=-1))    # (T, C)
    sa = jnp.concatenate(per_batch, axis=0)                      # (B*T, C)

    sa = jnp.dot(sa.astype(jnp.bfloat16), wproj_ref[...],
                 preferred_element_type=jnp.float32) + bproj_ref[0]
    # TODO(synk): dropout after proj / after FFN is identity in eval mode.
    x = x + sa                                                   # residual 1

    # ---------- LayerNorm 2 ----------
    mean2 = jnp.mean(x, axis=-1, keepdims=True)
    var2 = jnp.mean((x - mean2) ** 2, axis=-1, keepdims=True)
    xn2 = (x - mean2) * jax.lax.rsqrt(var2 + EPS)
    xn2 = xn2 * ln2_g_ref[0] + ln2_b_ref[0]
    xn2_bf = xn2.astype(jnp.bfloat16)

    # ---------- FeedForward, chunked over the 4*C hidden dim ----------
    b1 = b1_ref[0]                                               # (4C,) f32
    acc = jnp.zeros((BT, C), jnp.float32)
    hidden = 4 * C
    for c0 in range(0, hidden, FF_CHUNK):                        # static unroll
        h1 = jnp.dot(xn2_bf, w1_ref[:, c0:c0 + FF_CHUNK],
                     preferred_element_type=jnp.float32)
        h1 = jnp.maximum(h1 + b1[c0:c0 + FF_CHUNK], 0.0).astype(jnp.bfloat16)
        acc = acc + jnp.dot(h1, w2_ref[c0:c0 + FF_CHUNK, :],
                            preferred_element_type=jnp.float32)
    x = x + acc + b2_ref[0]                                      # residual 2

    o_ref[...] = x


@jax.jit
def block_forward(x, params):
    B, T, C = x.shape
    x2d = x.reshape(B * T, C)

    # pack q/k/v weights into one (C, 3C) matrix; weight matrices in bf16
    wqkv = jnp.concatenate(
        [params["wq"], params["wk"], params["wv"]], axis=1
    ).astype(jnp.bfloat16)
    args = (
        params["ln1_g"], params["ln1_b"],
        wqkv,
        params["wproj"].astype(jnp.bfloat16), params["bproj"],
        params["ln2_g"], params["ln2_b"],
        params["w1"].astype(jnp.bfloat16), params["b1"],
        params["w2"].astype(jnp.bfloat16), params["b2"],
    )

    bt = B * T
    flops = (2 * bt * C * (3 * C)                              # QKV projection
             + 2 * B * N_HEAD * 2 * T * T * HEAD_SIZE          # attention matmuls
             + 2 * bt * C * C                                  # output projection
             + 2 * 2 * bt * C * (4 * C))                       # MLP
    transcendentals = B * N_HEAD * T * T + 2 * bt              # exp + rsqrt
    bytes_accessed = (2 * bt * C * 4
                      + sum(int(a.size) * a.dtype.itemsize for a in args))

    out2d = pl.pallas_call(
        block_kernel,
        out_shape=jax.ShapeDtypeStruct((B * T, C), x.dtype),
        cost_estimate=pl.CostEstimate(
            flops=flops,
            transcendentals=transcendentals,
            bytes_accessed=bytes_accessed),
    )(x2d, *args)
    return out2d.reshape(B, T, C)


def init_params(key):
    ks = jax.random.split(key, 12)
    C, H = N_EMBD, 4 * N_EMBD
    s = 0.02
    return {
        "ln1_g": 1.0 + s * jax.random.normal(ks[0], (1, C), jnp.float32),
        "ln1_b": s * jax.random.normal(ks[1], (1, C), jnp.float32),
        "wk": s * jax.random.normal(ks[2], (C, C), jnp.float32),
        "wq": s * jax.random.normal(ks[3], (C, C), jnp.float32),
        "wv": s * jax.random.normal(ks[4], (C, C), jnp.float32),
        "wproj": s * jax.random.normal(ks[5], (C, C), jnp.float32),
        "bproj": s * jax.random.normal(ks[6], (1, C), jnp.float32),
        "ln2_g": 1.0 + s * jax.random.normal(ks[7], (1, C), jnp.float32),
        "ln2_b": s * jax.random.normal(ks[8], (1, C), jnp.float32),
        "w1": s * jax.random.normal(ks[9], (C, H), jnp.float32),
        "b1": s * jax.random.normal(ks[10], (1, H), jnp.float32),
        "w2": s * jax.random.normal(ks[11], (H, C), jnp.float32),
        "b2": jnp.zeros((1, C), jnp.float32),
    }


def block_reference(x, p):
    """Pure-JAX f32 reference mirroring the PyTorch forward (eval mode)."""
    B, T, C = x.shape

    def ln(z, g, b):
        m = jnp.mean(z, axis=-1, keepdims=True)
        v = jnp.mean((z - m) ** 2, axis=-1, keepdims=True)
        return (z - m) * jax.lax.rsqrt(v + EPS) * g + b

    xn1 = ln(x, p["ln1_g"][0], p["ln1_b"][0])
    q = xn1 @ p["wq"]
    k = xn1 @ p["wk"]
    v = xn1 @ p["wv"]
    mask = jnp.tril(jnp.ones((T, T), bool))
    outs = []
    for h in range(N_HEAD):
        lo = h * HEAD_SIZE
        wei = q[..., lo:lo + HEAD_SIZE] @ jnp.swapaxes(
            k[..., lo:lo + HEAD_SIZE], -1, -2) * C ** (-0.5)
        wei = jnp.where(mask, wei, -jnp.inf)
        wei = jax.nn.softmax(wei, axis=-1)
        outs.append(wei @ v[..., lo:lo + HEAD_SIZE])
    sa = jnp.concatenate(outs, axis=-1) @ p["wproj"] + p["bproj"][0]
    x = x + sa
    xn2 = ln(x, p["ln2_g"][0], p["ln2_b"][0])
    h1 = jnp.maximum(xn2 @ p["w1"] + p["b1"][0], 0.0)
    return x + (h1 @ p["w2"] + p["b2"][0])


if __name__ == "__main__":
    key = jax.random.PRNGKey(0)
    kx, kp = jax.random.split(key)
    x = jax.random.normal(kx, (BATCH, SEQ, N_EMBD), jnp.float32)
    params = init_params(kp)

    out = block_forward(x, params)
    out = jax.block_until_ready(out)

    ref = block_reference(x, params)
    assert out.shape == (BATCH, SEQ, N_EMBD)
    assert jnp.allclose(out, ref, rtol=2e-2, atol=2e-2), "mismatch vs reference"

    print("KERNEL_OK")
</pallas_src>

<mosaic_0001>
module attributes {stable_mosaic.version = 11 : i64} {
  func.func @block_kernel(%arg0: memref<128x128xf32, #tpu.memory_space<vmem>>, %arg1: memref<1x128xf32, #tpu.memory_space<vmem>>, %arg2: memref<1x128xf32, #tpu.memory_space<vmem>>, %arg3: memref<128x384xbf16, #tpu.memory_space<vmem>>, %arg4: memref<128x128xbf16, #tpu.memory_space<vmem>>, %arg5: memref<1x128xf32, #tpu.memory_space<vmem>>, %arg6: memref<1x128xf32, #tpu.memory_space<vmem>>, %arg7: memref<1x128xf32, #tpu.memory_space<vmem>>, %arg8: memref<128x512xbf16, #tpu.memory_space<vmem>>, %arg9: memref<1x512xf32, #tpu.memory_space<vmem>>, %arg10: memref<512x128xbf16, #tpu.memory_space<vmem>>, %arg11: memref<1x128xf32, #tpu.memory_space<vmem>>, %arg12: memref<128x128xf32, #tpu.memory_space<vmem>>) attributes {dimension_semantics = [], scalar_prefetch = 0 : i64, scratch_operands = 0 : i64, tpu.core_type = #tpu.core_type<tc>} {
    %c0 = arith.constant 0 : index
    %c0_0 = arith.constant 0 : index
    %0 = vector.load %arg0[%c0, %c0_0] : memref<128x128xf32, #tpu.memory_space<vmem>>, vector<128x128xf32>
    %cst = arith.constant dense<0.000000e+00> : vector<128xf32>
    %1 = vector.multi_reduction <add>, %0, %cst [1] : vector<128x128xf32> to vector<128xf32>
    %2 = vector.shape_cast %1 : vector<128xf32> to vector<128x1xf32>
    %cst_1 = arith.constant 1.280000e+02 : f32
    %3 = vector.broadcast %cst_1 : f32 to vector<128x1xf32>
    %4 = arith.divf %2, %3 : vector<128x1xf32>
    %5 = vector.broadcast %4 : vector<128x1xf32> to vector<128x128xf32>
    %6 = arith.subf %0, %5 : vector<128x128xf32>
    %7 = arith.mulf %6, %6 : vector<128x128xf32>
    %cst_2 = arith.constant dense<0.000000e+00> : vector<128xf32>
    %8 = vector.multi_reduction <add>, %7, %cst_2 [1] : vector<128x128xf32> to vector<128xf32>
    %9 = vector.shape_cast %8 : vector<128xf32> to vector<128x1xf32>
    %cst_3 = arith.constant 1.280000e+02 : f32
    %10 = vector.broadcast %cst_3 : f32 to vector<128x1xf32>
    %11 = arith.divf %9, %10 : vector<128x1xf32>
    %12 = vector.broadcast %4 : vector<128x1xf32> to vector<128x128xf32>
    %13 = arith.subf %0, %12 : vector<128x128xf32>
    %cst_4 = arith.constant 9.99999974E-6 : f32
    %14 = vector.broadcast %cst_4 : f32 to vector<128x1xf32>
    %15 = arith.addf %11, %14 : vector<128x1xf32>
    %16 = math.rsqrt %15 : vector<128x1xf32>
    %17 = vector.broadcast %16 : vector<128x1xf32> to vector<128x128xf32>
    %18 = arith.mulf %13, %17 : vector<128x128xf32>
    %c0_5 = arith.constant 0 : index
    %c0_6 = arith.constant 0 : index
    %19 = vector.load %arg1[%c0_5, %c0_6] : memref<1x128xf32, #tpu.memory_space<vmem>>, vector<1x128xf32>
    %20 = vector.shape_cast %19 : vector<1x128xf32> to vector<128xf32>
    %21 = vector.shape_cast %20 : vector<128xf32> to vector<1x128xf32>
    %22 = vector.broadcast %21 : vector<1x128xf32> to vector<128x128xf32>
    %23 = arith.mulf %18, %22 : vector<128x128xf32>
    %c0_7 = arith.constant 0 : index
    %c0_8 = arith.constant 0 : index
    %24 = vector.load %arg2[%c0_7, %c0_8] : memref<1x128xf32, #tpu.memory_space<vmem>>, vector<1x128xf32>
    %25 = vector.shape_cast %24 : vector<1x128xf32> to vector<128xf32>
    %26 = vector.shape_cast %25 : vector<128xf32> to vector<1x128xf32>
    %27 = vector.broadcast %26 : vector<1x128xf32> to vector<128x128xf32>
    %28 = arith.addf %23, %27 : vector<128x128xf32>
    %29 = arith.truncf %28 : vector<128x128xf32> to vector<128x128xbf16>
    %c0_9 = arith.constant 0 : index
    %c0_10 = arith.constant 0 : index
    %30 = vector.load %arg3[%c0_9, %c0_10] : memref<128x384xbf16, #tpu.memory_space<vmem>>, vector<128x384xbf16>
    %cst_11 = arith.constant dense<0.000000e+00> : vector<128x384xf32>
    %31 = tpu.matmul %29, %30, %cst_11 {dimension_numbers = #tpu.dot_dimension_numbers<[1], [0], [0], [1], [0, 0, 1, 1], [], []>} : vector<128x128xbf16>, vector<128x384xbf16>, vector<128x384xf32> -> vector<128x384xf32>
    %32 = vector.extract_strided_slice %31 {offsets = [0, 0], sizes = [128, 128], strides = [1, 1]} : vector<128x384xf32> to vector<128x128xf32>
    %33 = vector.extract_strided_slice %31 {offsets = [0, 128], sizes = [128, 128], strides = [1, 1]} : vector<128x384xf32> to vector<128x128xf32>
    %34 = vector.extract_strided_slice %31 {offsets = [0, 256], sizes = [128, 128], strides = [1, 1]} : vector<128x384xf32> to vector<128x128xf32>
    %35 = tpu.iota {dimensions = array<i32: 0>} : vector<64x64xi32>
    %36 = tpu.iota {dimensions = array<i32: 1>} : vector<64x64xi32>
    %37 = arith.cmpi sle, %36, %35 : vector<64x64xi32>
    %cst_12 = arith.constant 0.000000e+00 : f32
    %cst_13 = arith.constant -1.000000e+30 : f32
    %38 = vector.broadcast %cst_12 : f32 to vector<64x64xf32>
    %39 = vector.broadcast %cst_13 : f32 to vector<64x64xf32>
    %40 = arith.select %37, %38, %39 : vector<64x64xi1>, vector<64x64xf32>
    %41 = vector.extract_strided_slice %32 {offsets = [0, 0], sizes = [64, 32], strides = [1, 1]} : vector<128x128xf32> to vector<64x32xf32>
    %42 = arith.truncf %41 : vector<64x32xf32> to vector<64x32xbf16>
    %43 = vector.extract_strided_slice %33 {offsets = [0, 0], sizes = [64, 32], strides = [1, 1]} : vector<128x128xf32> to vector<64x32xf32>
    %44 = arith.truncf %43 : vector<64x32xf32> to vector<64x32xbf16>
    %45 = vector.extract_strided_slice %34 {offsets = [0, 0], sizes = [64, 32], strides = [1, 1]} : vector<128x128xf32> to vector<64x32xf32>
    %46 = arith.truncf %45 : vector<64x32xf32> to vector<64x32xbf16>
    %47 = tpu.transpose %44, [1, 0] : vector<64x32xbf16> -> vector<32x64xbf16>
    %cst_14 = arith.constant dense<0.000000e+00> : vector<64x64xf32>
    %48 = tpu.matmul %42, %47, %cst_14 {dimension_numbers = #tpu.dot_dimension_numbers<[1], [0], [0], [1], [0, 0, 1, 1], [], []>} : vector<64x32xbf16>, vector<32x64xbf16>, vector<64x64xf32> -> vector<64x64xf32>
    %cst_15 = arith.constant 0.0883883461 : f32
    %49 = vector.broadcast %cst_15 : f32 to vector<64x64xf32>
    %50 = arith.mulf %48, %49 : vector<64x64xf32>
    %51 = arith.addf %50, %40 : vector<64x64xf32>
    %cst_16 = arith.constant dense<0xFF800000> : vector<64xf32>
    %52 = vector.multi_reduction <maximumf>, %51, %cst_16 [1] : vector<64x64xf32> to vector<64xf32>
    %53 = vector.shape_cast %52 : vector<64xf32> to vector<64x1xf32>
    %54 = vector.broadcast %53 : vector<64x1xf32> to vector<64x64xf32>
    %55 = arith.subf %51, %54 : vector<64x64xf32>
    %56 = math.exp %55 : vector<64x64xf32>
    %cst_17 = arith.constant dense<0.000000e+00> : vector<64xf32>
    %57 = vector.multi_reduction <add>, %56, %cst_17 [1] : vector<64x64xf32> to vector<64xf32>
    %58 = vector.shape_cast %57 : vector<64xf32> to vector<64x1xf32>
    %59 = arith.truncf %56 : vector<64x64xf32> to vector<64x64xbf16>
    %cst_18 = arith.constant dense<0.000000e+00> : vector<64x32xf32>
    %60 = tpu.matmul %59, %46, %cst_18 {dimension_numbers = #tpu.dot_dimension_numbers<[1], [0], [0], [1], [0, 0, 1, 1], [], []>} : vector<64x64xbf16>, vector<64x32xbf16>, vector<64x32xf32> -> vector<64x32xf32>
    %61 = tpu.reciprocal %58 {approx = true} : vector<64x1xf32> -> vector<64x1xf32>
    %62 = vector.broadcast %61 : vector<64x1xf32> to vector<64x32xf32>
    %63 = arith.mulf %60, %62 : vector<64x32xf32>
    %64 = vector.extract_strided_slice %32 {offsets = [0, 32], sizes = [64, 32], strides = [1, 1]} : vector<128x128xf32> to vector<64x32xf32>
    %65 = arith.truncf %64 : vector<64x32xf32> to vector<64x32xbf16>
    %66 = vector.extract_strided_slice %33 {offsets = [0, 32], sizes = [64, 32], strides = [1, 1]} : vector<128x128xf32> to vector<64x32xf32>
    %67 = arith.truncf %66 : vector<64x32xf32> to vector<64x32xbf16>
    %68 = vector.extract_strided_slice %34 {offsets = [0, 32], sizes = [64, 32], strides = [1, 1]} : vector<128x128xf32> to vector<64x32xf32>
    %69 = arith.truncf %68 : vector<64x32xf32> to vector<64x32xbf16>
    %70 = tpu.transpose %67, [1, 0] : vector<64x32xbf16> -> vector<32x64xbf16>
    %cst_19 = arith.constant dense<0.000000e+00> : vector<64x64xf32>
    %71 = tpu.matmul %65, %70, %cst_19 {dimension_numbers = #tpu.dot_dimension_numbers<[1], [0], [0], [1], [0, 0, 1, 1], [], []>} : vector<64x32xbf16>, vector<32x64xbf16>, vector<64x64xf32> -> vector<64x64xf32>
    %cst_20 = arith.constant 0.0883883461 : f32
    %72 = vector.broadcast %cst_20 : f32 to vector<64x64xf32>
    %73 = arith.mulf %71, %72 : vector<64x64xf32>
    %74 = arith.addf %73, %40 : vector<64x64xf32>
    %cst_21 = arith.constant dense<0xFF800000> : vector<64xf32>
    %75 = vector.multi_reduction <maximumf>, %74, %cst_21 [1] : vector<64x64xf32> to vector<64xf32>
    %76 = vector.shape_cast %75 : vector<64xf32> to vector<64x1xf32>
    %77 = vector.broadcast %76 : vector<64x1xf32> to vector<64x64xf32>
    %78 = arith.subf %74, %77 : vector<64x64xf32>
    %79 = math.exp %78 : vector<64x64xf32>
    %cst_22 = arith.constant dense<0.000000e+00> : vector<64xf32>
    %80 = vector.multi_reduction <add>, %79, %cst_22 [1] : vector<64x64xf32> to vector<64xf32>
    %81 = vector.shape_cast %80 : vector<64xf32> to vector<64x1xf32>
    %82 = arith.truncf %79 : vector<64x64xf32> to vector<64x64xbf16>
    %cst_23 = arith.constant dense<0.000000e+00> : vector<64x32xf32>
    %83 = tpu.matmul %82, %69, %cst_23 {dimension_numbers = #tpu.dot_dimension_numbers<[1], [0], [0], [1], [0, 0, 1, 1], [], []>} : vector<64x64xbf16>, vector<64x32xbf16>, vector<64x32xf32> -> vector<64x32xf32>
    %84 = tpu.reciprocal %81 {approx = true} : vector<64x1xf32> -> vector<64x1xf32>
    %85 = vector.broadcast %84 : vector<64x1xf32> to vector<64x32xf32>
    %86 = arith.mulf %83, %85 : vector<64x32xf32>
    %87 = vector.extract_strided_slice %32 {offsets = [0, 64], sizes = [64, 32], strides = [1, 1]} : vector<128x128xf32> to vector<64x32xf32>
    %88 = arith.truncf %87 : vector<64x32xf32> to vector<64x32xbf16>
    %89 = vector.extract_strided_slice %33 {offsets = [0, 64], sizes = [64, 32], strides = [1, 1]} : vector<128x128xf32> to vector<64x32xf32>
    %90 = arith.truncf %89 : vector<64x32xf32> to vector<64x32xbf16>
    %91 = vector.extract_strided_slice %34 {offsets = [0, 64], sizes = [64, 32], strides = [1, 1]} : vector<128x128xf32> to vector<64x32xf32>
    %92 = arith.truncf %91 : vector<64x32xf32> to vector<64x32xbf16>
    %93 = tpu.transpose %90, [1, 0] : vector<64x32xbf16> -> vector<32x64xbf16>
    %cst_24 = arith.constant dense<0.000000e+00> : vector<64x64xf32>
    %94 = tpu.matmul %88, %93, %cst_24 {dimension_numbers = #tpu.dot_dimension_numbers<[1], [0], [0], [1], [0, 0, 1, 1], [], []>} : vector<64x32xbf16>, vector<32x64xbf16>, vector<64x64xf32> -> vector<64x64xf32>
    %cst_25 = arith.constant 0.0883883461 : f32
    %95 = vector.broadcast %cst_25 : f32 to vector<64x64xf32>
    %96 = arith.mulf %94, %95 : vector<64x64xf32>
    %97 = arith.addf %96, %40 : vector<64x64xf32>
    %cst_26 = arith.constant dense<0xFF800000> : vector<64xf32>
    %98 = vector.multi_reduction <maximumf>, %97, %cst_26 [1] : vector<64x64xf32> to vector<64xf32>
    %99 = vector.shape_cast %98 : vector<64xf32> to vector<64x1xf32>
    %100 = vector.broadcast %99 : vector<64x1xf32> to vector<64x64xf32>
    %101 = arith.subf %97, %100 : vector<64x64xf32>
    %102 = math.exp %101 : vector<64x64xf32>
    %cst_27 = arith.constant dense<0.000000e+00> : vector<64xf32>
    %103 = vector.multi_reduction <add>, %102, %cst_27 [1] : vector<64x64xf32> to vector<64xf32>
    %104 = vector.shape_cast %103 : vector<64xf32> to vector<64x1xf32>
    %105 = arith.truncf %102 : vector<64x64xf32> to vector<64x64xbf16>
    %cst_28 = arith.constant dense<0.000000e+00> : vector<64x32xf32>
    %106 = tpu.matmul %105, %92, %cst_28 {dimension_numbers = #tpu.dot_dimension_numbers<[1], [0], [0], [1], [0, 0, 1, 1], [], []>} : vector<64x64xbf16>, vector<64x32xbf16>, vector<64x32xf32> -> vector<64x32xf32>
    %107 = tpu.reciprocal %104 {approx = true} : vector<64x1xf32> -> vector<64x1xf32>
    %108 = vector.broadcast %107 : vector<64x1xf32> to vector<64x32xf32>
    %109 = arith.mulf %106, %108 : vector<64x32xf32>
    %110 = vector.extract_strided_slice %32 {offsets = [0, 96], sizes = [64, 32], strides = [1, 1]} : vector<128x128xf32> to vector<64x32xf32>
    %111 = arith.truncf %110 : vector<64x32xf32> to vector<64x32xbf16>
    %112 = vector.extract_strided_slice %33 {offsets = [0, 96], sizes = [64, 32], strides = [1, 1]} : vector<128x128xf32> to vector<64x32xf32>
    %113 = arith.truncf %112 : vector<64x32xf32> to vector<64x32xbf16>
    %114 = vector.extract_strided_slice %34 {offsets = [0, 96], sizes = [64, 32], strides = [1, 1]} : vector<128x128xf32> to vector<64x32xf32>
    %115 = arith.truncf %114 : vector<64x32xf32> to vector<64x32xbf16>
    %116 = tpu.transpose %113, [1, 0] : vector<64x32xbf16> -> vector<32x64xbf16>
    %cst_29 = arith.constant dense<0.000000e+00> : vector<64x64xf32>
    %117 = tpu.matmul %111, %116, %cst_29 {dimension_numbers = #tpu.dot_dimension_numbers<[1], [0], [0], [1], [0, 0, 1, 1], [], []>} : vector<64x32xbf16>, vector<32x64xbf16>, vector<64x64xf32> -> vector<64x64xf32>
    %cst_30 = arith.constant 0.0883883461 : f32
    %118 = vector.broadcast %cst_30 : f32 to vector<64x64xf32>
    %119 = arith.mulf %117, %118 : vector<64x64xf32>
    %120 = arith.addf %119, %40 : vector<64x64xf32>
    %cst_31 = arith.constant dense<0xFF800000> : vector<64xf32>
    %121 = vector.multi_reduction <maximumf>, %120, %cst_31 [1] : vector<64x64xf32> to vector<64xf32>
    %122 = vector.shape_cast %121 : vector<64xf32> to vector<64x1xf32>
    %123 = vector.broadcast %122 : vector<64x1xf32> to vector<64x64xf32>
    %124 = arith.subf %120, %123 : vector<64x64xf32>
    %125 = math.exp %124 : vector<64x64xf32>
    %cst_32 = arith.constant dense<0.000000e+00> : vector<64xf32>
    %126 = vector.multi_reduction <add>, %125, %cst_32 [1] : vector<64x64xf32> to vector<64xf32>
    %127 = vector.shape_cast %126 : vector<64xf32> to vector<64x1xf32>
    %128 = arith.truncf %125 : vector<64x64xf32> to vector<64x64xbf16>
    %cst_33 = arith.constant dense<0.000000e+00> : vector<64x32xf32>
    %129 = tpu.matmul %128, %115, %cst_33 {dimension_numbers = #tpu.dot_dimension_numbers<[1], [0], [0], [1], [0, 0, 1, 1], [], []>} : vector<64x64xbf16>, vector<64x32xbf16>, vector<64x32xf32> -> vector<64x32xf32>
    %130 = tpu.reciprocal %127 {approx = true} : vector<64x1xf32> -> vector<64x1xf32>
    %131 = vector.broadcast %130 : vector<64x1xf32> to vector<64x32xf32>
    %132 = arith.mulf %129, %131 : vector<64x32xf32>
    %133 = tpu.concatenate %63, %86, %109, %132 in 1 : vector<64x32xf32>, vector<64x32xf32>, vector<64x32xf32>, vector<64x32xf32> -> vector<64x128xf32>
    %134 = vector.extract_strided_slice %32 {offsets = [64, 0], sizes = [64, 32], strides = [1, 1]} : vector<128x128xf32> to vector<64x32xf32>
    %135 = arith.truncf %134 : vector<64x32xf32> to vector<64x32xbf16>
    %136 = vector.extract_strided_slice %33 {offsets = [64, 0], sizes = [64, 32], strides = [1, 1]} : vector<128x128xf32> to vector<64x32xf32>
    %137 = arith.truncf %136 : vector<64x32xf32> to vector<64x32xbf16>
    %138 = vector.extract_strided_slice %34 {offsets = [64, 0], sizes = [64, 32], strides = [1, 1]} : vector<128x128xf32> to vector<64x32xf32>
    %139 = arith.truncf %138 : vector<64x32xf32> to vector<64x32xbf16>
    %140 = tpu.transpose %137, [1, 0] : vector<64x32xbf16> -> vector<32x64xbf16>
    %cst_34 = arith.constant dense<0.000000e+00> : vector<64x64xf32>
    %141 = tpu.matmul %135, %140, %cst_34 {dimension_numbers = #tpu.dot_dimension_numbers<[1], [0], [0], [1], [0, 0, 1, 1], [], []>} : vector<64x32xbf16>, vector<32x64xbf16>, vector<64x64xf32> -> vector<64x64xf32>
    %cst_35 = arith.constant 0.0883883461 : f32
    %142 = vector.broadcast %cst_35 : f32 to vector<64x64xf32>
    %143 = arith.mulf %141, %142 : vector<64x64xf32>
    %144 = arith.addf %143, %40 : vector<64x64xf32>
    %cst_36 = arith.constant dense<0xFF800000> : vector<64xf32>
    %145 = vector.multi_reduction <maximumf>, %144, %cst_36 [1] : vector<64x64xf32> to vector<64xf32>
    %146 = vector.shape_cast %145 : vector<64xf32> to vector<64x1xf32>
    %147 = vector.broadcast %146 : vector<64x1xf32> to vector<64x64xf32>
    %148 = arith.subf %144, %147 : vector<64x64xf32>
    %149 = math.exp %148 : vector<64x64xf32>
    %cst_37 = arith.constant dense<0.000000e+00> : vector<64xf32>
    %150 = vector.multi_reduction <add>, %149, %cst_37 [1] : vector<64x64xf32> to vector<64xf32>
    %151 = vector.shape_cast %150 : vector<64xf32> to vector<64x1xf32>
    %152 = arith.truncf %149 : vector<64x64xf32> to vector<64x64xbf16>
    %cst_38 = arith.constant dense<0.000000e+00> : vector<64x32xf32>
    %153 = tpu.matmul %152, %139, %cst_38 {dimension_numbers = #tpu.dot_dimension_numbers<[1], [0], [0], [1], [0, 0, 1, 1], [], []>} : vector<64x64xbf16>, vector<64x32xbf16>, vector<64x32xf32> -> vector<64x32xf32>
    %154 = tpu.reciprocal %151 {approx = true} : vector<64x1xf32> -> vector<64x1xf32>
    %155 = vector.broadcast %154 : vector<64x1xf32> to vector<64x32xf32>
    %156 = arith.mulf %153, %155 : vector<64x32xf32>
    %157 = vector.extract_strided_slice %32 {offsets = [64, 32], sizes = [64, 32], strides = [1, 1]} : vector<128x128xf32> to vector<64x32xf32>
    %158 = arith.truncf %157 : vector<64x32xf32> to vector<64x32xbf16>
    %159 = vector.extract_strided_slice %33 {offsets = [64, 32], sizes = [64, 32], strides = [1, 1]} : vector<128x128xf32> to vector<64x32xf32>
    %160 = arith.truncf %159 : vector<64x32xf32> to vector<64x32xbf16>
    %161 = vector.extract_strided_slice %34 {offsets = [64, 32], sizes = [64, 32], strides = [1, 1]} : vector<128x128xf32> to vector<64x32xf32>
    %162 = arith.truncf %161 : vector<64x32xf32> to vector<64x32xbf16>
    %163 = tpu.transpose %160, [1, 0] : vector<64x32xbf16> -> vector<32x64xbf16>
    %cst_39 = arith.constant dense<0.000000e+00> : vector<64x64xf32>
    %164 = tpu.matmul %158, %163, %cst_39 {dimension_numbers = #tpu.dot_dimension_numbers<[1], [0], [0], [1], [0, 0, 1, 1], [], []>} : vector<64x32xbf16>, vector<32x64xbf16>, vector<64x64xf32> -> vector<64x64xf32>
    %cst_40 = arith.constant 0.0883883461 : f32
    %165 = vector.broadcast %cst_40 : f32 to vector<64x64xf32>
    %166 = arith.mulf %164, %165 : vector<64x64xf32>
    %167 = arith.addf %166, %40 : vector<64x64xf32>
    %cst_41 = arith.constant dense<0xFF800000> : vector<64xf32>
    %168 = vector.multi_reduction <maximumf>, %167, %cst_41 [1] : vector<64x64xf32> to vector<64xf32>
    %169 = vector.shape_cast %168 : vector<64xf32> to vector<64x1xf32>
    %170 = vector.broadcast %169 : vector<64x1xf32> to vector<64x64xf32>
    %171 = arith.subf %167, %170 : vector<64x64xf32>
    %172 = math.exp %171 : vector<64x64xf32>
    %cst_42 = arith.constant dense<0.000000e+00> : vector<64xf32>
    %173 = vector.multi_reduction <add>, %172, %cst_42 [1] : vector<64x64xf32> to vector<64xf32>
    %174 = vector.shape_cast %173 : vector<64xf32> to vector<64x1xf32>
    %175 = arith.truncf %172 : vector<64x64xf32> to vector<64x64xbf16>
    %cst_43 = arith.constant dense<0.000000e+00> : vector<64x32xf32>
    %176 = tpu.matmul %175, %162, %cst_43 {dimension_numbers = #tpu.dot_dimension_numbers<[1], [0], [0], [1], [0, 0, 1, 1], [], []>} : vector<64x64xbf16>, vector<64x32xbf16>, vector<64x32xf32> -> vector<64x32xf32>
    %177 = tpu.reciprocal %174 {approx = true} : vector<64x1xf32> -> vector<64x1xf32>
    %178 = vector.broadcast %177 : vector<64x1xf32> to vector<64x32xf32>
    %179 = arith.mulf %176, %178 : vector<64x32xf32>
    %180 = vector.extract_strided_slice %32 {offsets = [64, 64], sizes = [64, 32], strides = [1, 1]} : vector<128x128xf32> to vector<64x32xf32>
    %181 = arith.truncf %180 : vector<64x32xf32> to vector<64x32xbf16>
    %182 = vector.extract_strided_slice %33 {offsets = [64, 64], sizes = [64, 32], strides = [1, 1]} : vector<128x128xf32> to vector<64x32xf32>
    %183 = arith.truncf %182 : vector<64x32xf32> to vector<64x32xbf16>
    %184 = vector.extract_strided_slice %34 {offsets = [64, 64], sizes = [64, 32], strides = [1, 1]} : vector<128x128xf32> to vector<64x32xf32>
    %185 = arith.truncf %184 : vector<64x32xf32> to vector<64x32xbf16>
    %186 = tpu.transpose %183, [1, 0] : vector<64x32xbf16> -> vector<32x64xbf16>
    %cst_44 = arith.constant dense<0.000000e+00> : vector<64x64xf32>
    %187 = tpu.matmul %181, %186, %cst_44 {dimension_numbers = #tpu.dot_dimension_numbers<[1], [0], [0], [1], [0, 0, 1, 1], [], []>} : vector<64x32xbf16>, vector<32x64xbf16>, vector<64x64xf32> -> vector<64x64xf32>
    %cst_45 = arith.constant 0.0883883461 : f32
    %188 = vector.broadcast %cst_45 : f32 to vector<64x64xf32>
    %189 = arith.mulf %187, %188 : vector<64x64xf32>
    %190 = arith.addf %189, %40 : vector<64x64xf32>
    %cst_46 = arith.constant dense<0xFF800000> : vector<64xf32>
    %191 = vector.multi_reduction <maximumf>, %190, %cst_46 [1] : vector<64x64xf32> to vector<64xf32>
    %192 = vector.shape_cast %191 : vector<64xf32> to vector<64x1xf32>
    %193 = vector.broadcast %192 : vector<64x1xf32> to vector<64x64xf32>
    %194 = arith.subf %190, %193 : vector<64x64xf32>
    %195 = math.exp %194 : vector<64x64xf32>
    %cst_47 = arith.constant dense<0.000000e+00> : vector<64xf32>
    %196 = vector.multi_reduction <add>, %195, %cst_47 [1] : vector<64x64xf32> to vector<64xf32>
    %197 = vector.shape_cast %196 : vector<64xf32> to vector<64x1xf32>
    %198 = arith.truncf %195 : vector<64x64xf32> to vector<64x64xbf16>
    %cst_48 = arith.constant dense<0.000000e+00> : vector<64x32xf32>
    %199 = tpu.matmul %198, %185, %cst_48 {dimension_numbers = #tpu.dot_dimension_numbers<[1], [0], [0], [1], [0, 0, 1, 1], [], []>} : vector<64x64xbf16>, vector<64x32xbf16>, vector<64x32xf32> -> vector<64x32xf32>
    %200 = tpu.reciprocal %197 {approx = true} : vector<64x1xf32> -> vector<64x1xf32>
    %201 = vector.broadcast %200 : vector<64x1xf32> to vector<64x32xf32>
    %202 = arith.mulf %199, %201 : vector<64x32xf32>
    %203 = vector.extract_strided_slice %32 {offsets = [64, 96], sizes = [64, 32], strides = [1, 1]} : vector<128x128xf32> to vector<64x32xf32>
    %204 = arith.truncf %203 : vector<64x32xf32> to vector<64x32xbf16>
    %205 = vector.extract_strided_slice %33 {offsets = [64, 96], sizes = [64, 32], strides = [1, 1]} : vector<128x128xf32> to vector<64x32xf32>
    %206 = arith.truncf %205 : vector<64x32xf32> to vector<64x32xbf16>
    %207 = vector.extract_strided_slice %34 {offsets = [64, 96], sizes = [64, 32], strides = [1, 1]} : vector<128x128xf32> to vector<64x32xf32>
    %208 = arith.truncf %207 : vector<64x32xf32> to vector<64x32xbf16>
    %209 = tpu.transpose %206, [1, 0] : vector<64x32xbf16> -> vector<32x64xbf16>
    %cst_49 = arith.constant dense<0.000000e+00> : vector<64x64xf32>
    %210 = tpu.matmul %204, %209, %cst_49 {dimension_numbers = #tpu.dot_dimension_numbers<[1], [0], [0], [1], [0, 0, 1, 1], [], []>} : vector<64x32xbf16>, vector<32x64xbf16>, vector<64x64xf32> -> vector<64x64xf32>
    %cst_50 = arith.constant 0.0883883461 : f32
    %211 = vector.broadcast %cst_50 : f32 to vector<64x64xf32>
    %212 = arith.mulf %210, %211 : vector<64x64xf32>
    %213 = arith.addf %212, %40 : vector<64x64xf32>
    %cst_51 = arith.constant dense<0xFF800000> : vector<64xf32>
    %214 = vector.multi_reduction <maximumf>, %213, %cst_51 [1] : vector<64x64xf32> to vector<64xf32>
    %215 = vector.shape_cast %214 : vector<64xf32> to vector<64x1xf32>
    %216 = vector.broadcast %215 : vector<64x1xf32> to vector<64x64xf32>
    %217 = arith.subf %213, %216 : vector<64x64xf32>
    %218 = math.exp %217 : vector<64x64xf32>
    %cst_52 = arith.constant dense<0.000000e+00> : vector<64xf32>
    %219 = vector.multi_reduction <add>, %218, %cst_52 [1] : vector<64x64xf32> to vector<64xf32>
    %220 = vector.shape_cast %219 : vector<64xf32> to vector<64x1xf32>
    %221 = arith.truncf %218 : vector<64x64xf32> to vector<64x64xbf16>
    %cst_53 = arith.constant dense<0.000000e+00> : vector<64x32xf32>
    %222 = tpu.matmul %221, %208, %cst_53 {dimension_numbers = #tpu.dot_dimension_numbers<[1], [0], [0], [1], [0, 0, 1, 1], [], []>} : vector<64x64xbf16>, vector<64x32xbf16>, vector<64x32xf32> -> vector<64x32xf32>
    %223 = tpu.reciprocal %220 {approx = true} : vector<64x1xf32> -> vector<64x1xf32>
    %224 = vector.broadcast %223 : vector<64x1xf32> to vector<64x32xf32>
    %225 = arith.mulf %222, %224 : vector<64x32xf32>
    %226 = tpu.concatenate %156, %179, %202, %225 in 1 : vector<64x32xf32>, vector<64x32xf32>, vector<64x32xf32>, vector<64x32xf32> -> vector<64x128xf32>
    %227 = tpu.concatenate %133, %226 in 0 : vector<64x128xf32>, vector<64x128xf32> -> vector<128x128xf32>
    %228 = arith.truncf %227 : vector<128x128xf32> to vector<128x128xbf16>
    %c0_54 = arith.constant 0 : index
    %c0_55 = arith.constant 0 : index
    %229 = vector.load %arg4[%c0_54, %c0_55] : memref<128x128xbf16, #tpu.memory_space<vmem>>, vector<128x128xbf16>
    %cst_56 = arith.constant dense<0.000000e+00> : vector<128x128xf32>
    %230 = tpu.matmul %228, %229, %cst_56 {dimension_numbers = #tpu.dot_dimension_numbers<[1], [0], [0], [1], [0, 0, 1, 1], [], []>} : vector<128x128xbf16>, vector<128x128xbf16>, vector<128x128xf32> -> vector<128x128xf32>
    %c0_57 = arith.constant 0 : index
    %c0_58 = arith.constant 0 : index
    %231 = vector.load %arg5[%c0_57, %c0_58] : memref<1x128xf32, #tpu.memory_space<vmem>>, vector<1x128xf32>
    %232 = vector.shape_cast %231 : vector<1x128xf32> to vector<128xf32>
    %233 = vector.shape_cast %232 : vector<128xf32> to vector<1x128xf32>
    %234 = vector.broadcast %233 : vector<1x128xf32> to vector<128x128xf32>
    %235 = arith.addf %230, %234 : vector<128x128xf32>
    %236 = arith.addf %0, %235 : vector<128x128xf32>
    %cst_59 = arith.constant dense<0.000000e+00> : vector<128xf32>
    %237 = vector.multi_reduction <add>, %236, %cst_59 [1] : vector<128x128xf32> to vector<128xf32>
    %238 = vector.shape_cast %237 : vector<128xf32> to vector<128x1xf32>
    %cst_60 = arith.constant 1.280000e+02 : f32
    %239 = vector.broadcast %cst_60 : f32 to vector<128x1xf32>
    %240 = arith.divf %238, %239 : vector<128x1xf32>
    %241 = vector.broadcast %240 : vector<128x1xf32> to vector<128x128xf32>
    %242 = arith.subf %236, %241 : vector<128x128xf32>
    %243 = arith.mulf %242, %242 : vector<128x128xf32>
    %cst_61 = arith.constant dense<0.000000e+00> : vector<128xf32>
    %244 = vector.multi_reduction <add>, %243, %cst_61 [1] : vector<128x128xf32> to vector<128xf32>
    %245 = vector.shape_cast %244 : vector<128xf32> to vector<128x1xf32>
    %cst_62 = arith.constant 1.280000e+02 : f32
    %246 = vector.broadcast %cst_62 : f32 to vector<128x1xf32>
    %247 = arith.divf %245, %246 : vector<128x1xf32>
    %248 = vector.broadcast %240 : vector<128x1xf32> to vector<128x128xf32>
    %249 = arith.subf %236, %248 : vector<128x128xf32>
    %cst_63 = arith.constant 9.99999974E-6 : f32
    %250 = vector.broadcast %cst_63 : f32 to vector<128x1xf32>
    %251 = arith.addf %247, %250 : vector<128x1xf32>
    %252 = math.rsqrt %251 : vector<128x1xf32>
    %253 = vector.broadcast %252 : vector<128x1xf32> to vector<128x128xf32>
    %254 = arith.mulf %249, %253 : vector<128x128xf32>
    %c0_64 = arith.constant 0 : index
    %c0_65 = arith.constant 0 : index
    %255 = vector.load %arg6[%c0_64, %c0_65] : memref<1x128xf32, #tpu.memory_space<vmem>>, vector<1x128xf32>
    %256 = vector.shape_cast %255 : vector<1x128xf32> to vector<128xf32>
    %257 = vector.shape_cast %256 : vector<128xf32> to vector<1x128xf32>
    %258 = vector.broadcast %257 : vector<1x128xf32> to vector<128x128xf32>
    %259 = arith.mulf %254, %258 : vector<128x128xf32>
    %c0_66 = arith.constant 0 : index
    %c0_67 = arith.constant 0 : index
    %260 = vector.load %arg7[%c0_66, %c0_67] : memref<1x128xf32, #tpu.memory_space<vmem>>, vector<1x128xf32>
    %261 = vector.shape_cast %260 : vector<1x128xf32> to vector<128xf32>
    %262 = vector.shape_cast %261 : vector<128xf32> to vector<1x128xf32>
    %263 = vector.broadcast %262 : vector<1x128xf32> to vector<128x128xf32>
    %264 = arith.addf %259, %263 : vector<128x128xf32>
    %265 = arith.truncf %264 : vector<128x128xf32> to vector<128x128xbf16>
    %c0_68 = arith.constant 0 : index
    %c0_69 = arith.constant 0 : index
    %266 = vector.load %arg9[%c0_68, %c0_69] : memref<1x512xf32, #tpu.memory_space<vmem>>, vector<1x512xf32>
    %267 = vector.shape_cast %266 : vector<1x512xf32> to vector<512xf32>
    %cst_70 = arith.constant 0.000000e+00 : f32
    %268 = vector.broadcast %cst_70 : f32 to vector<128x128xf32>
    %c0_71 = arith.constant 0 : index
    %c0_72 = arith.constant 0 : index
    %269 = vector.load %arg8[%c0_71, %c0_72] : memref<128x512xbf16, #tpu.memory_space<vmem>>, vector<128x128xbf16>
    %cst_73 = arith.constant dense<0.000000e+00> : vector<128x128xf32>
    %270 = tpu.matmul %265, %269, %cst_73 {dimension_numbers = #tpu.dot_dimension_numbers<[1], [0], [0], [1], [0, 0, 1, 1], [], []>} : vector<128x128xbf16>, vector<128x128xbf16>, vector<128x128xf32> -> vector<128x128xf32>
    %271 = vector.extract_strided_slice %267 {offsets = [0], sizes = [128], strides = [1]} : vector<512xf32> to vector<128xf32>
    %272 = vector.shape_cast %271 : vector<128xf32> to vector<1x128xf32>
    %273 = vector.broadcast %272 : vector<1x128xf32> to vector<128x128xf32>
    %274 = arith.addf %270, %273 : vector<128x128xf32>
    %cst_74 = arith.constant 0.000000e+00 : f32
    %275 = vector.broadcast %cst_74 : f32 to vector<128x128xf32>
    %276 = arith.maximumf %274, %275 : vector<128x128xf32>
    %277 = arith.truncf %276 : vector<128x128xf32> to vector<128x128xbf16>
    %c0_75 = arith.constant 0 : index
    %c0_76 = arith.constant 0 : index
    %278 = vector.load %arg10[%c0_75, %c0_76] : memref<512x128xbf16, #tpu.memory_space<vmem>>, vector<128x128xbf16>
    %cst_77 = arith.constant dense<0.000000e+00> : vector<128x128xf32>
    %279 = tpu.matmul %277, %278, %cst_77 {dimension_numbers = #tpu.dot_dimension_numbers<[1], [0], [0], [1], [0, 0, 1, 1], [], []>} : vector<128x128xbf16>, vector<128x128xbf16>, vector<128x128xf32> -> vector<128x128xf32>
    %280 = arith.addf %268, %279 : vector<128x128xf32>
    %c0_78 = arith.constant 0 : index
    %c128 = arith.constant 128 : index
    %281 = vector.load %arg8[%c0_78, %c128] : memref<128x512xbf16, #tpu.memory_space<vmem>>, vector<128x128xbf16>
    %cst_79 = arith.constant dense<0.000000e+00> : vector<128x128xf32>
    %282 = tpu.matmul %265, %281, %cst_79 {dimension_numbers = #tpu.dot_dimension_numbers<[1], [0], [0], [1], [0, 0, 1, 1], [], []>} : vector<128x128xbf16>, vector<128x128xbf16>, vector<128x128xf32> -> vector<128x128xf32>
    %283 = vector.extract_strided_slice %267 {offsets = [128], sizes = [128], strides = [1]} : vector<512xf32> to vector<128xf32>
    %284 = vector.shape_cast %283 : vector<128xf32> to vector<1x128xf32>
    %285 = vector.broadcast %284 : vector<1x128xf32> to vector<128x128xf32>
    %286 = arith.addf %282, %285 : vector<128x128xf32>
    %cst_80 = arith.constant 0.000000e+00 : f32
    %287 = vector.broadcast %cst_80 : f32 to vector<128x128xf32>
    %288 = arith.maximumf %286, %287 : vector<128x128xf32>
    %289 = arith.truncf %288 : vector<128x128xf32> to vector<128x128xbf16>
    %c128_81 = arith.constant 128 : index
    %c0_82 = arith.constant 0 : index
    %290 = vector.load %arg10[%c128_81, %c0_82] : memref<512x128xbf16, #tpu.memory_space<vmem>>, vector<128x128xbf16>
    %cst_83 = arith.constant dense<0.000000e+00> : vector<128x128xf32>
    %291 = tpu.matmul %289, %290, %cst_83 {dimension_numbers = #tpu.dot_dimension_numbers<[1], [0], [0], [1], [0, 0, 1, 1], [], []>} : vector<128x128xbf16>, vector<128x128xbf16>, vector<128x128xf32> -> vector<128x128xf32>
    %292 = arith.addf %280, %291 : vector<128x128xf32>
    %c0_84 = arith.constant 0 : index
    %c256 = arith.constant 256 : index
    %293 = vector.load %arg8[%c0_84, %c256] : memref<128x512xbf16, #tpu.memory_space<vmem>>, vector<128x128xbf16>
    %cst_85 = arith.constant dense<0.000000e+00> : vector<128x128xf32>
    %294 = tpu.matmul %265, %293, %cst_85 {dimension_numbers = #tpu.dot_dimension_numbers<[1], [0], [0], [1], [0, 0, 1, 1], [], []>} : vector<128x128xbf16>, vector<128x128xbf16>, vector<128x128xf32> -> vector<128x128xf32>
    %295 = vector.extract_strided_slice %267 {offsets = [256], sizes = [128], strides = [1]} : vector<512xf32> to vector<128xf32>
    %296 = vector.shape_cast %295 : vector<128xf32> to vector<1x128xf32>
    %297 = vector.broadcast %296 : vector<1x128xf32> to vector<128x128xf32>
    %298 = arith.addf %294, %297 : vector<128x128xf32>
    %cst_86 = arith.constant 0.000000e+00 : f32
    %299 = vector.broadcast %cst_86 : f32 to vector<128x128xf32>
    %300 = arith.maximumf %298, %299 : vector<128x128xf32>
    %301 = arith.truncf %300 : vector<128x128xf32> to vector<128x128xbf16>
    %c256_87 = arith.constant 256 : index
    %c0_88 = arith.constant 0 : index
    %302 = vector.load %arg10[%c256_87, %c0_88] : memref<512x128xbf16, #tpu.memory_space<vmem>>, vector<128x128xbf16>
    %cst_89 = arith.constant dense<0.000000e+00> : vector<128x128xf32>
    %303 = tpu.matmul %301, %302, %cst_89 {dimension_numbers = #tpu.dot_dimension_numbers<[1], [0], [0], [1], [0, 0, 1, 1], [], []>} : vector<128x128xbf16>, vector<128x128xbf16>, vector<128x128xf32> -> vector<128x128xf32>
    %304 = arith.addf %292, %303 : vector<128x128xf32>
    %c0_90 = arith.constant 0 : index
    %c384 = arith.constant 384 : index
    %305 = vector.load %arg8[%c0_90, %c384] : memref<128x512xbf16, #tpu.memory_space<vmem>>, vector<128x128xbf16>
    %cst_91 = arith.constant dense<0.000000e+00> : vector<128x128xf32>
    %306 = tpu.matmul %265, %305, %cst_91 {dimension_numbers = #tpu.dot_dimension_numbers<[1], [0], [0], [1], [0, 0, 1, 1], [], []>} : vector<128x128xbf16>, vector<128x128xbf16>, vector<128x128xf32> -> vector<128x128xf32>
    %307 = vector.extract_strided_slice %267 {offsets = [384], sizes = [128], strides = [1]} : vector<512xf32> to vector<128xf32>
    %308 = vector.shape_cast %307 : vector<128xf32> to vector<1x128xf32>
    %309 = vector.broadcast %308 : vector<1x128xf32> to vector<128x128xf32>
    %310 = arith.addf %306, %309 : vector<128x128xf32>
    %cst_92 = arith.constant 0.000000e+00 : f32
    %311 = vector.broadcast %cst_92 : f32 to vector<128x128xf32>
    %312 = arith.maximumf %310, %311 : vector<128x128xf32>
    %313 = arith.truncf %312 : vector<128x128xf32> to vector<128x128xbf16>
    %c384_93 = arith.constant 384 : index
    %c0_94 = arith.constant 0 : index
    %314 = vector.load %arg10[%c384_93, %c0_94] : memref<512x128xbf16, #tpu.memory_space<vmem>>, vector<128x128xbf16>
    %cst_95 = arith.constant dense<0.000000e+00> : vector<128x128xf32>
    %315 = tpu.matmul %313, %314, %cst_95 {dimension_numbers = #tpu.dot_dimension_numbers<[1], [0], [0], [1], [0, 0, 1, 1], [], []>} : vector<128x128xbf16>, vector<128x128xbf16>, vector<128x128xf32> -> vector<128x128xf32>
    %316 = arith.addf %304, %315 : vector<128x128xf32>
    %317 = arith.addf %236, %316 : vector<128x128xf32>
    %c0_96 = arith.constant 0 : index
    %c0_97 = arith.constant 0 : index
    %318 = vector.load %arg11[%c0_96, %c0_97] : memref<1x128xf32, #tpu.memory_space<vmem>>, vector<1x128xf32>
    %319 = vector.shape_cast %318 : vector<1x128xf32> to vector<128xf32>
    %320 = vector.shape_cast %319 : vector<128xf32> to vector<1x128xf32>
    %321 = vector.broadcast %320 : vector<1x128xf32> to vector<128x128xf32>
    %322 = arith.addf %317, %321 : vector<128x128xf32>
    %c0_98 = arith.constant 0 : index
    %c0_99 = arith.constant 0 : index
    %323 = vector.load %arg12[%c0_98, %c0_99] : memref<128x128xf32, #tpu.memory_space<vmem>>, vector<128x128xf32>
    tpu.vector_store %arg12[%c0_98, %c0_99], %322 {strides = array<i32>} : memref<128x128xf32, #tpu.memory_space<vmem>>, vector<128x128xf32>,
    return
  }
}

</mosaic_0001>

<llo_original>
// kernel: block_forward.1
$region0: #{block_forward.1}
  #allocation0 [shape = 'u32[]', space=smem, size = 0x4, offset = 0x4, fixed_abs, tag = 'smem constant byte address 0x4 - core index']
  #allocation1 [shape = 'u32[144,128]{1,0:T(1,128)}', space=vmem, size = 0x12000, scoped, tag = 'internal scratch']
  %s0 = inlined_call_operand.vmem [shape: f32[128,128], index: 0, kind: input, shape index: {}]
  %s1 = inlined_call_operand.vmem [shape: f32[1,128], index: 1, kind: input, shape index: {}]
  %s2 = inlined_call_operand.vmem [shape: f32[1,128], index: 2, kind: input, shape index: {}]
  %s3 = inlined_call_operand.vmem [shape: bf16[128,384], index: 3, kind: input, shape index: {}]
  %s4 = inlined_call_operand.vmem [shape: bf16[128,128], index: 4, kind: input, shape index: {}]
  %s5 = inlined_call_operand.vmem [shape: f32[1,128], index: 5, kind: input, shape index: {}]
  %s6 = inlined_call_operand.vmem [shape: f32[1,128], index: 6, kind: input, shape index: {}]
  %s7 = inlined_call_operand.vmem [shape: f32[1,128], index: 7, kind: input, shape index: {}]
  %s8 = inlined_call_operand.vmem [shape: bf16[128,512], index: 8, kind: input, shape index: {}]
  %s9 = inlined_call_operand.vmem [shape: f32[1,512], index: 9, kind: input, shape index: {}]
  %s10 = inlined_call_operand.vmem [shape: bf16[512,128], index: 10, kind: input, shape index: {}]
  %s11 = inlined_call_operand.vmem [shape: f32[1,128], index: 11, kind: input, shape index: {}]
  %s12 = inlined_call_operand.hbm [shape: f32[128,128], index: 12, kind: output, shape index: {}]
  %s13 = sld [smem:[#allocation0]]
  $region58: #{block_forward.1} parent=0
    _
  %s15 = ssub.s32 1, %s13
  %s16 = scalar_select 0, %s15, %s13
  $region1: #{block_forward.1} parent=0
    #allocation2 [shape = 'u8[65536]{0}', space=vmem, size = 0x10000, scoped, tag = 'output window, operand 0, single buffered']
    #allocation3 [shape = 's32[1]{0}', space=sflag, size = 0x4, scoped, tag = 'scoped memory for block_forward.1']
    %17 = vsyncpa [#allocation3], 0
    // Predicated region
    $region2: #{block_forward.1} parent=1 // pred_check
      _
    $region3: #{block_forward.1} parent=1 // pred_check_branch
      %19 = sbr.rel (0) target = $region5
    $region4: #{block_forward.1} parent=1 // pred_region
      _
    $region5: #{block_forward.1} parent=1 // pred_fallthru
      _
    // Predicated region
    $region6: #{block_forward.1} parent=1 // pred_check
      _
    $region7: #{block_forward.1} parent=1 // pred_check_branch
      %21 = sbr.rel (0) target = $region9
    $region8: #{block_forward.1} parent=1 // pred_region
      _
    $region9: #{block_forward.1} parent=1 // pred_fallthru
      _
    // Predicated region
    $region10: #{block_forward.1} parent=1 // pred_check
      _
    $region11: #{block_forward.1} parent=1 // pred_check_branch
      %23 = sbr.rel (0) target = $region13
    $region12: #{block_forward.1} parent=1 // pred_region
      _
    $region13: #{block_forward.1} parent=1 // pred_fallthru
      _
    // Predicated region
    $region14: #{block_forward.1} parent=1 // pred_check
      _
    $region15: #{block_forward.1} parent=1 // pred_check_branch
      %25 = sbr.rel (0) target = $region17
    $region16: #{block_forward.1} parent=1 // pred_region
      _
    $region17: #{block_forward.1} parent=1 // pred_fallthru
      _
    // Predicated region
    $region18: #{block_forward.1} parent=1 // pred_check
      _
    $region19: #{block_forward.1} parent=1 // pred_check_branch
      %27 = sbr.rel (0) target = $region21
    $region20: #{block_forward.1} parent=1 // pred_region
      _
    $region21: #{block_forward.1} parent=1 // pred_fallthru
      _
    // Predicated region
    $region22: #{block_forward.1} parent=1 // pred_check
      _
    $region23: #{block_forward.1} parent=1 // pred_check_branch
      %29 = sbr.rel (0) target = $region25
    $region24: #{block_forward.1} parent=1 // pred_region
      _
    $region25: #{block_forward.1} parent=1 // pred_fallthru
      _
    // Predicated region
    $region26: #{block_forward.1} parent=1 // pred_check
      _
    $region27: #{block_forward.1} parent=1 // pred_check_branch
      %31 = sbr.rel (0) target = $region29
    $region28: #{block_forward.1} parent=1 // pred_region
      _
    $region29: #{block_forward.1} parent=1 // pred_fallthru
      _
    // Predicated region
    $region30: #{block_forward.1} parent=1 // pred_check
      _
    $region31: #{block_forward.1} parent=1 // pred_check_branch
      %33 = sbr.rel (0) target = $region33
    $region32: #{block_forward.1} parent=1 // pred_region
      _
    $region33: #{block_forward.1} parent=1 // pred_fallthru
      _
    // Predicated region
    $region34: #{block_forward.1} parent=1 // pred_check
      _
    $region35: #{block_forward.1} parent=1 // pred_check_branch
      %35 = sbr.rel (0) target = $region37
    $region36: #{block_forward.1} parent=1 // pred_region
      _
    $region37: #{block_forward.1} parent=1 // pred_fallthru
      _
    // Predicated region
    $region38: #{block_forward.1} parent=1 // pred_check
      _
    $region39: #{block_forward.1} parent=1 // pred_check_branch
      %37 = sbr.rel (0) target = $region41
    $region40: #{block_forward.1} parent=1 // pred_region
      _
    $region41: #{block_forward.1} parent=1 // pred_fallthru
      _
    // Predicated region
    $region42: #{block_forward.1} parent=1 // pred_check
      _
    $region43: #{block_forward.1} parent=1 // pred_check_branch
      %39 = sbr.rel (0) target = $region45
    $region44: #{block_forward.1} parent=1 // pred_region
      _
    $region45: #{block_forward.1} parent=1 // pred_fallthru
      _
    // Predicated region
    $region46: #{block_forward.1} parent=1 // pred_check
      _
    $region47: #{block_forward.1} parent=1 // pred_check_branch
      %41 = sbr.rel (0) target = $region49
    $region48: #{block_forward.1} parent=1 // pred_region
      _
    $region49: #{block_forward.1} parent=1 // pred_fallthru
      _
    %v43 = vld [vmem:[%s0] sm:$0xff]
    %v44 = vld [vmem:[%s0 + $0x8] sm:$0xff]
    %v45 = vld [vmem:[%s0 + $0x10] sm:$0xff]
    %v46 = vld [vmem:[%s0 + $0x18] sm:$0xff]
    %v47 = vld [vmem:[%s0 + $0x20] sm:$0xff]
    %v48 = vld [vmem:[%s0 + $0x28] sm:$0xff]
    %v49 = vld [vmem:[%s0 + $0x30] sm:$0xff]
    %v50 = vld [vmem:[%s0 + $0x38] sm:$0xff]
    %v51 = vld [vmem:[%s0 + $0x40] sm:$0xff]
    %v52 = vld [vmem:[%s0 + $0x48] sm:$0xff]
    %v53 = vld [vmem:[%s0 + $0x50] sm:$0xff]
    %v54 = vld [vmem:[%s0 + $0x58] sm:$0xff]
    %v55 = vld [vmem:[%s0 + $0x60] sm:$0xff]
    %v56 = vld [vmem:[%s0 + $0x68] sm:$0xff]
    %v57 = vld [vmem:[%s0 + $0x70] sm:$0xff]
    %v58 = vld [vmem:[%s0 + $0x78] sm:$0xff]
    %59 = vadd.xlane.f32.xlu0 %v43
    %v60 = vpop.xlane.xlu0 %59
    %61 = vadd.xlane.f32.xlu0 %v44
    %v62 = vpop.xlane.xlu0 %61
    %63 = vadd.xlane.f32.xlu0 %v45
    %v64 = vpop.xlane.xlu0 %63
    %65 = vadd.xlane.f32.xlu0 %v46
    %v66 = vpop.xlane.xlu0 %65
    %67 = vadd.xlane.f32.xlu0 %v47
    %v68 = vpop.xlane.xlu0 %67
    %69 = vadd.xlane.f32.xlu0 %v48
    %v70 = vpop.xlane.xlu0 %69
    %71 = vadd.xlane.f32.xlu0 %v49
    %v72 = vpop.xlane.xlu0 %71
    %73 = vadd.xlane.f32.xlu0 %v50
    %v74 = vpop.xlane.xlu0 %73
    %75 = vadd.xlane.f32.xlu0 %v51
    %v76 = vpop.xlane.xlu0 %75
    %77 = vadd.xlane.f32.xlu0 %v52
    %v78 = vpop.xlane.xlu0 %77
    %79 = vadd.xlane.f32.xlu0 %v53
    %v80 = vpop.xlane.xlu0 %79
    %81 = vadd.xlane.f32.xlu0 %v54
    %v82 = vpop.xlane.xlu0 %81
    %83 = vadd.xlane.f32.xlu0 %v55
    %v84 = vpop.xlane.xlu0 %83
    %85 = vadd.xlane.f32.xlu0 %v56
    %v86 = vpop.xlane.xlu0 %85
    %87 = vadd.xlane.f32.xlu0 %v57
    %v88 = vpop.xlane.xlu0 %87
    %89 = vadd.xlane.f32.xlu0 %v58
    %v90 = vpop.xlane.xlu0 %89
    %v91 = vrcp.pop 128.0
    %v92 = vmul.f32 %v60, %v91
    %v93 = vmul.f32 %v62, %v91
    %v94 = vmul.f32 %v64, %v91
    %v95 = vmul.f32 %v66, %v91
    %v96 = vmul.f32 %v68, %v91
    %v97 = vmul.f32 %v70, %v91
    %v98 = vmul.f32 %v72, %v91
    %v99 = vmul.f32 %v74, %v91
    %v100 = vmul.f32 %v76, %v91
    %v101 = vmul.f32 %v78, %v91
    %v102 = vmul.f32 %v80, %v91
    %v103 = vmul.f32 %v82, %v91
    %v104 = vmul.f32 %v84, %v91
    %v105 = vmul.f32 %v86, %v91
    %v106 = vmul.f32 %v88, %v91
    %v107 = vmul.f32 %v90, %v91
    %v108 = vsub.f32 %v43, %v92
    %v109 = vsub.f32 %v44, %v93
    %v110 = vsub.f32 %v45, %v94
    %v111 = vsub.f32 %v46, %v95
    %v112 = vsub.f32 %v47, %v96
    %v113 = vsub.f32 %v48, %v97
    %v114 = vsub.f32 %v49, %v98
    %v115 = vsub.f32 %v50, %v99
    %v116 = vsub.f32 %v51, %v100
    %v117 = vsub.f32 %v52, %v101
    %v118 = vsub.f32 %v53, %v102
    %v119 = vsub.f32 %v54, %v103
    %v120 = vsub.f32 %v55, %v104
    %v121 = vsub.f32 %v56, %v105
    %v122 = vsub.f32 %v57, %v106
    %v123 = vsub.f32 %v58, %v107
    %v124 = vmul.f32 %v108, %v108
    %v125 = vmul.f32 %v109, %v109
    %v126 = vmul.f32 %v110, %v110
    %v127 = vmul.f32 %v111, %v111
    %v128 = vmul.f32 %v112, %v112
    %v129 = vmul.f32 %v113, %v113
    %v130 = vmul.f32 %v114, %v114
    %v131 = vmul.f32 %v115, %v115
    %v132 = vmul.f32 %v116, %v116
    %v133 = vmul.f32 %v117, %v117
    %v134 = vmul.f32 %v118, %v118
    %v135 = vmul.f32 %v119, %v119
    %v136 = vmul.f32 %v120, %v120
    %v137 = vmul.f32 %v121, %v121
    %v138 = vmul.f32 %v122, %v122
    %v139 = vmul.f32 %v123, %v123
    %140 = vadd.xlane.f32.xlu0 %v124
    %v141 = vpop.xlane.xlu0 %140
    %142 = vadd.xlane.f32.xlu0 %v125
    %v143 = vpop.xlane.xlu0 %142
    %144 = vadd.xlane.f32.xlu0 %v126
    %v145 = vpop.xlane.xlu0 %144
    %146 = vadd.xlane.f32.xlu0 %v127
    %v147 = vpop.xlane.xlu0 %146
    %148 = vadd.xlane.f32.xlu0 %v128
    %v149 = vpop.xlane.xlu0 %148
    %150 = vadd.xlane.f32.xlu0 %v129
    %v151 = vpop.xlane.xlu0 %150
    %152 = vadd.xlane.f32.xlu0 %v130
    %v153 = vpop.xlane.xlu0 %152
    %154 = vadd.xlane.f32.xlu0 %v131
    %v155 = vpop.xlane.xlu0 %154
    %156 = vadd.xlane.f32.xlu0 %v132
    %v157 = vpop.xlane.xlu0 %156
    %158 = vadd.xlane.f32.xlu0 %v133
    %v159 = vpop.xlane.xlu0 %158
    %160 = vadd.xlane.f32.xlu0 %v134
    %v161 = vpop.xlane.xlu0 %160
    %162 = vadd.xlane.f32.xlu0 %v135
    %v163 = vpop.xlane.xlu0 %162
    %164 = vadd.xlane.f32.xlu0 %v136
    %v165 = vpop.xlane.xlu0 %164
    %166 = vadd.xlane.f32.xlu0 %v137
    %v167 = vpop.xlane.xlu0 %166
    %168 = vadd.xlane.f32.xlu0 %v138
    %v169 = vpop.xlane.xlu0 %168
    %170 = vadd.xlane.f32.xlu0 %v139
    %v171 = vpop.xlane.xlu0 %170
    %v172 = vmul.f32 %v141, %v91
    %v173 = vmul.f32 %v143, %v91
    %v174 = vmul.f32 %v145, %v91
    %v175 = vmul.f32 %v147, %v91
    %v176 = vmul.f32 %v149, %v91
    %v177 = vmul.f32 %v151, %v91
    %v178 = vmul.f32 %v153, %v91
    %v179 = vmul.f32 %v155, %v91
    %v180 = vmul.f32 %v157, %v91
    %v181 = vmul.f32 %v159, %v91
    %v182 = vmul.f32 %v161, %v91
    %v183 = vmul.f32 %v163, %v91
    %v184 = vmul.f32 %v165, %v91
    %v185 = vmul.f32 %v167, %v91
    %v186 = vmul.f32 %v169, %v91
    %v187 = vmul.f32 %v171, %v91
    %v188 = vadd.f32 %v172, 1e-05
    %v189 = vadd.f32 %v173, 1e-05
    %v190 = vadd.f32 %v174, 1e-05
    %v191 = vadd.f32 %v175, 1e-05
    %v192 = vadd.f32 %v176, 1e-05
    %v193 = vadd.f32 %v177, 1e-05
    %v194 = vadd.f32 %v178, 1e-05
    %v195 = vadd.f32 %v179, 1e-05
    %v196 = vadd.f32 %v180, 1e-05
    %v197 = vadd.f32 %v181, 1e-05
    %v198 = vadd.f32 %v182, 1e-05
    %v199 = vadd.f32 %v183, 1e-05
    %v200 = vadd.f32 %v184, 1e-05
    %v201 = vadd.f32 %v185, 1e-05
    %v202 = vadd.f32 %v186, 1e-05
    %v203 = vadd.f32 %v187, 1e-05
    %v204 = vrsqrt.pop %v188
    %v205 = vrsqrt.pop %v189
    %v206 = vrsqrt.pop %v190
    %v207 = vrsqrt.pop %v191
    %v208 = vrsqrt.pop %v192
    %v209 = vrsqrt.pop %v193
    %v210 = vrsqrt.pop %v194
    %v211 = vrsqrt.pop %v195
    %v212 = vrsqrt.pop %v196
    %v213 = vrsqrt.pop %v197
    %v214 = vrsqrt.pop %v198
    %v215 = vrsqrt.pop %v199
    %v216 = vrsqrt.pop %v200
    %v217 = vrsqrt.pop %v201
    %v218 = vrsqrt.pop %v202
    %v219 = vrsqrt.pop %v203
    %v220 = vmul.f32 %v108, %v204
    %v221 = vmul.f32 %v109, %v205
    %v222 = vmul.f32 %v110, %v206
    %v223 = vmul.f32 %v111, %v207
    %v224 = vmul.f32 %v112, %v208
    %v225 = vmul.f32 %v113, %v209
    %v226 = vmul.f32 %v114, %v210
    %v227 = vmul.f32 %v115, %v211
    %v228 = vmul.f32 %v116, %v212
    %v229 = vmul.f32 %v117, %v213
    %v230 = vmul.f32 %v118, %v214
    %v231 = vmul.f32 %v119, %v215
    %v232 = vmul.f32 %v120, %v216
    %v233 = vmul.f32 %v121, %v217
    %v234 = vmul.f32 %v122, %v218
    %v235 = vmul.f32 %v123, %v219
    %v236 = vld [vmem:[%s1] sm:$0x1]
    %v238 = vlaneseq
    %v239 = vshrl.u32 %v238, 7
    %v240 = vsub.s32 0, %v239
    %v241 = vrot.slane %v236, %v240
    %v243 = vmul.f32 %v220, %v241
    %v244 = vmul.f32 %v221, %v241
    %v245 = vmul.f32 %v222, %v241
    %v246 = vmul.f32 %v223, %v241
    %v247 = vmul.f32 %v224, %v241
    %v248 = vmul.f32 %v225, %v241
    %v249 = vmul.f32 %v226, %v241
    %v250 = vmul.f32 %v227, %v241
    %v251 = vmul.f32 %v228, %v241
    %v252 = vmul.f32 %v229, %v241
    %v253 = vmul.f32 %v230, %v241
    %v254 = vmul.f32 %v231, %v241
    %v255 = vmul.f32 %v232, %v241
    %v256 = vmul.f32 %v233, %v241
    %v257 = vmul.f32 %v234, %v241
    %v258 = vmul.f32 %v235, %v241
    %v259 = vld [vmem:[%s2] sm:$0x1]
    %v261 = vlaneseq
    %v262 = vshrl.u32 %v261, 7
    %v263 = vsub.s32 0, %v262
    %v264 = vrot.slane %v259, %v263
    %v266 = vadd.f32 %v243, %v264
    %v267 = vadd.f32 %v244, %v264
    %v268 = vadd.f32 %v245, %v264
    %v269 = vadd.f32 %v246, %v264
    %v270 = vadd.f32 %v247, %v264
    %v271 = vadd.f32 %v248, %v264
    %v272 = vadd.f32 %v249, %v264
    %v273 = vadd.f32 %v250, %v264
    %v274 = vadd.f32 %v251, %v264
    %v275 = vadd.f32 %v252, %v264
    %v276 = vadd.f32 %v253, %v264
    %v277 = vadd.f32 %v254, %v264
    %v278 = vadd.f32 %v255, %v264
    %v279 = vadd.f32 %v256, %v264
    %v280 = vadd.f32 %v257, %v264
    %v281 = vadd.f32 %v258, %v264
    %v282 = vpack.c.bf16 %v267, %v266
    %v283 = vpack.c.bf16 %v269, %v268
    %v284 = vpack.c.bf16 %v271, %v270
    %v285 = vpack.c.bf16 %v273, %v272
    %v286 = vpack.c.bf16 %v275, %v274
    %v287 = vpack.c.bf16 %v277, %v276
    %v288 = vpack.c.bf16 %v279, %v278
    %v289 = vpack.c.bf16 %v281, %v280
    %v290 = vld [vmem:[%s3] sm:$0xff]
    %v291 = vld [vmem:[%s3 + $0x8] sm:$0xf]
    %v292 = vld [vmem:[%s3 + $0xc] sm:$0xff]
    %v293 = vld [vmem:[%s3 + $0x14] sm:$0xf]
    %v294 = vld [vmem:[%s3 + $0x18] sm:$0xff]
    %v295 = vld [vmem:[%s3 + $0x20] sm:$0xf]
    %v296 = vld [vmem:[%s3 + $0x24] sm:$0xff]
    %v297 = vld [vmem:[%s3 + $0x2c] sm:$0xf]
    %v298 = vld [vmem:[%s3 + $0x30] sm:$0xff]
    %v299 = vld [vmem:[%s3 + $0x38] sm:$0xf]
    %v300 = vld [vmem:[%s3 + $0x3c] sm:$0xff]
    %v301 = vld [vmem:[%s3 + $0x44] sm:$0xf]
    %v302 = vld [vmem:[%s3 + $0x48] sm:$0xff]
    %v303 = vld [vmem:[%s3 + $0x50] sm:$0xf]
    %v304 = vld [vmem:[%s3 + $0x54] sm:$0xff]
    %v305 = vld [vmem:[%s3 + $0x5c] sm:$0xf]
    %v306 = vld [vmem:[%s3 + $0x60] sm:$0xff]
    %v307 = vld [vmem:[%s3 + $0x68] sm:$0xf]
    %v308 = vld [vmem:[%s3 + $0x6c] sm:$0xff]
    %v309 = vld [vmem:[%s3 + $0x74] sm:$0xf]
    %v310 = vld [vmem:[%s3 + $0x78] sm:$0xff]
    %v311 = vld [vmem:[%s3 + $0x80] sm:$0xf]
    %v312 = vld [vmem:[%s3 + $0x84] sm:$0xff]
    %v313 = vld [vmem:[%s3 + $0x8c] sm:$0xf]
    %v314 = vld [vmem:[%s3 + $0x90] sm:$0xff]
    %v315 = vld [vmem:[%s3 + $0x98] sm:$0xf]
    %v316 = vld [vmem:[%s3 + $0x9c] sm:$0xff]
    %v317 = vld [vmem:[%s3 + $0xa4] sm:$0xf]
    %v318 = vld [vmem:[%s3 + $0xa8] sm:$0xff]
    %v319 = vld [vmem:[%s3 + $0xb0] sm:$0xf]
    %v320 = vld [vmem:[%s3 + $0xb4] sm:$0xff]
    %v321 = vld [vmem:[%s3 + $0xbc] sm:$0xf]
    %v354 = vunpack.c.l.b16 %v290
    %v355 = vunpack.c.h.b16 %v290
    %v356 = vunpack.c.l.b16 %v291
    %v357 = vunpack.c.l.b16 %v292
    %v358 = vunpack.c.h.b16 %v292
    %v359 = vunpack.c.l.b16 %v293
    %v360 = vunpack.c.l.b16 %v294
    %v361 = vunpack.c.h.b16 %v294
    %v362 = vunpack.c.l.b16 %v295
    %v363 = vunpack.c.l.b16 %v296
    %v364 = vunpack.c.h.b16 %v296
    %v365 = vunpack.c.l.b16 %v297
    %v366 = vunpack.c.l.b16 %v298
    %v367 = vunpack.c.h.b16 %v298
    %v368 = vunpack.c.l.b16 %v299
    %v369 = vunpack.c.l.b16 %v300
    %v370 = vunpack.c.h.b16 %v300
    %v371 = vunpack.c.l.b16 %v301
    %v372 = vunpack.c.l.b16 %v302
    %v373 = vunpack.c.h.b16 %v302
    %v374 = vunpack.c.l.b16 %v303
    %v375 = vunpack.c.l.b16 %v304
    %v376 = vunpack.c.h.b16 %v304
    %v377 = vunpack.c.l.b16 %v305
    %v378 = vunpack.c.l.b16 %v306
    %v379 = vunpack.c.h.b16 %v306
    %v380 = vunpack.c.l.b16 %v307
    %v381 = vunpack.c.l.b16 %v308
    %v382 = vunpack.c.h.b16 %v308
    %v383 = vunpack.c.l.b16 %v309
    %v384 = vunpack.c.l.b16 %v310
    %v385 = vunpack.c.h.b16 %v310
    %v386 = vunpack.c.l.b16 %v311
    %v387 = vunpack.c.l.b16 %v312
    %v388 = vunpack.c.h.b16 %v312
    %v389 = vunpack.c.l.b16 %v313
    %v390 = vunpack.c.l.b16 %v314
    %v391 = vunpack.c.h.b16 %v314
    %v392 = vunpack.c.l.b16 %v315
    %v393 = vunpack.c.l.b16 %v316
    %v394 = vunpack.c.h.b16 %v316
    %v395 = vunpack.c.l.b16 %v317
    %v396 = vunpack.c.l.b16 %v318
    %v397 = vunpack.c.h.b16 %v318
    %v398 = vunpack.c.l.b16 %v319
    %v399 = vunpack.c.l.b16 %v320
    %v400 = vunpack.c.h.b16 %v320
    %v401 = vunpack.c.l.b16 %v321
    %v402 = vpack.c.b16 %v357, %v354
    %v403 = vpack.c.b16 %v358, %v355
    %v404 = vpack.c.b16 %v359, %v356
    %v405 = vpack.c.b16 %v363, %v360
    %v406 = vpack.c.b16 %v364, %v361
    %v407 = vpack.c.b16 %v365, %v362
    %v408 = vpack.c.b16 %v369, %v366
    %v409 = vpack.c.b16 %v370, %v367
    %v410 = vpack.c.b16 %v371, %v368
    %v411 = vpack.c.b16 %v375, %v372
    %v412 = vpack.c.b16 %v376, %v373
    %v413 = vpack.c.b16 %v377, %v374
    %v414 = vpack.c.b16 %v381, %v378
    %v415 = vpack.c.b16 %v382, %v379
    %v416 = vpack.c.b16 %v383, %v380
    %v417 = vpack.c.b16 %v387, %v384
    %v418 = vpack.c.b16 %v388, %v385
    %v419 = vpack.c.b16 %v389, %v386
    %v420 = vpack.c.b16 %v393, %v390
    %v421 = vpack.c.b16 %v394, %v391
    %v422 = vpack.c.b16 %v395, %v392
    %v423 = vpack.c.b16 %v399, %v396
    %v424 = vpack.c.b16 %v400, %v397
    %v425 = vpack.c.b16 %v401, %v398
    %450 = vmatprep.subr.bf16.mxu0 %v424
    %451 = vmatpush1.bf16.msra.mxu0 %v423
    %452 = vmatprep.subr.bf16.mxu0 %v421
    %453 = vmatpush1.bf16.msra.mxu0 %v420
    %454 = vmatprep.subr.bf16.mxu0 %v418
    %455 = vmatpush1.bf16.msra.mxu0 %v417
    %456 = vmatprep.subr.bf16.mxu0 %v415
    %457 = vmatpush1.bf16.msra.mxu0 %v414
    %458 = vmatprep.subr.bf16.mxu0 %v412
    %459 = vmatpush1.bf16.msra.mxu0 %v411
    %460 = vmatprep.subr.bf16.mxu0 %v409
    %461 = vmatpush1.bf16.msra.mxu0 %v408
    %462 = vmatprep.subr.bf16.mxu0 %v406
    %463 = vmatpush1.bf16.msra.mxu0 %v405
    %464 = vmatprep.subr.bf16.mxu0 %v403
    %465 = vmatpush1.bf16.msra.mxu0 %v402
    %466 = vmatprep.subr.bf16.mxu0 0
    %467 = vmatpush2.bf16.msra.mxu0 0
    %468 = vmatprep.subr.bf16.mxu0 0
    %469 = vmatpush2.bf16.msra.mxu0 0
    %470 = vmatprep.subr.bf16.mxu0 0
    %471 = vmatpush2.bf16.msra.mxu0 0
    %472 = vmatprep.subr.bf16.mxu0 0
    %473 = vmatpush2.bf16.msra.mxu0 0
    %474 = vmatprep.subr.bf16.mxu0 0
    %475 = vmatpush2.bf16.msra.mxu0 0
    %476 = vmatprep.subr.bf16.mxu0 0
    %477 = vmatpush2.bf16.msra.mxu0 0
    %478 = vmatprep.subr.bf16.mxu0 0
    %479 = vmatpush2.bf16.msra.mxu0 0
    %480 = vmatprep.subr.bf16.mxu0 0
    %481 = vmatpush2.bf16.msra.mxu0 0
    %482 = vmatprep.mubr.bf16.mxu0 0
    %483 = vmatmul.mubr.bf16.gmra.mxu0 %v282
    %v484 = vpop.f32.mrf.mxu0
    %v485 = vadd.f32 0.0, %v484
    %v486 = vpop.f32.mrf.mxu0
    %v487 = vadd.f32 0.0, %v486
    %v488 = vpop.f32.mrf.mxu0
    %v489 = vadd.f32 0.0, %v488
    %v490 = vpop.f32.mrf.mxu0
    %v491 = vadd.f32 0.0, %v490
    %492 = vmatprep.mubr.bf16.mxu0 0
    %493 = vmatmul.mubr.bf16.gmra.mxu0 %v283
    %v494 = vpop.f32.mrf.mxu0
    %v495 = vadd.f32 0.0, %v494
    %v496 = vpop.f32.mrf.mxu0
    %v497 = vadd.f32 0.0, %v496
    %v498 = vpop.f32.mrf.mxu0
    %v499 = vadd.f32 0.0, %v498
    %v500 = vpop.f32.mrf.mxu0
    %v501 = vadd.f32 0.0, %v500
    %502 = vmatprep.mubr.bf16.mxu0 0
    %503 = vmatmul.mubr.bf16.gmra.mxu0 %v284
    %v504 = vpop.f32.mrf.mxu0
    %v505 = vadd.f32 0.0, %v504
    %v506 = vpop.f32.mrf.mxu0
    %v507 = vadd.f32 0.0, %v506
    %v508 = vpop.f32.mrf.mxu0
    %v509 = vadd.f32 0.0, %v508
    %v510 = vpop.f32.mrf.mxu0
    %v511 = vadd.f32 0.0, %v510
    %512 = vmatprep.mubr.bf16.mxu0 0
    %513 = vmatmul.mubr.bf16.gmra.mxu0 %v285
    %v514 = vpop.f32.mrf.mxu0
    %v515 = vadd.f32 0.0, %v514
    %v516 = vpop.f32.mrf.mxu0
    %v517 = vadd.f32 0.0, %v516
    %v518 = vpop.f32.mrf.mxu0
    %v519 = vadd.f32 0.0, %v518
    %v520 = vpop.f32.mrf.mxu0
    %v521 = vadd.f32 0.0, %v520
    %522 = vmatprep.mubr.bf16.mxu0 0
    %523 = vmatmul.mubr.bf16.gmra.mxu0 %v286
    %v524 = vpop.f32.mrf.mxu0
    %v525 = vadd.f32 0.0, %v524
    %v526 = vpop.f32.mrf.mxu0
    %v527 = vadd.f32 0.0, %v526
    %v528 = vpop.f32.mrf.mxu0
    %v529 = vadd.f32 0.0, %v528
    %v530 = vpop.f32.mrf.mxu0
    %v531 = vadd.f32 0.0, %v530
    %532 = vmatprep.mubr.bf16.mxu0 0
    %533 = vmatmul.mubr.bf16.gmra.mxu0 %v287
    %v534 = vpop.f32.mrf.mxu0
    %v535 = vadd.f32 0.0, %v534
    %v536 = vpop.f32.mrf.mxu0
    %v537 = vadd.f32 0.0, %v536
    %v538 = vpop.f32.mrf.mxu0
    %v539 = vadd.f32 0.0, %v538
    %v540 = vpop.f32.mrf.mxu0
    %v541 = vadd.f32 0.0, %v540
    %542 = vmatprep.mubr.bf16.mxu0 0
    %543 = vmatmul.mubr.bf16.gmra.mxu0 %v288
    %v544 = vpop.f32.mrf.mxu0
    %v545 = vadd.f32 0.0, %v544
    %v546 = vpop.f32.mrf.mxu0
    %v547 = vadd.f32 0.0, %v546
    %v548 = vpop.f32.mrf.mxu0
    %v549 = vadd.f32 0.0, %v548
    %v550 = vpop.f32.mrf.mxu0
    %v551 = vadd.f32 0.0, %v550
    %552 = vmatprep.mubr.bf16.mxu0 0
    %553 = vmatmul.mubr.bf16.gmra.mxu0 %v289
    %v554 = vpop.f32.mrf.mxu0
    %v555 = vadd.f32 0.0, %v554
    %v556 = vpop.f32.mrf.mxu0
    %v557 = vadd.f32 0.0, %v556
    %v558 = vpop.f32.mrf.mxu0
    %v559 = vadd.f32 0.0, %v558
    %v560 = vpop.f32.mrf.mxu0
    %v561 = vadd.f32 0.0, %v560
    %562 = vdwg.mxu0
    %563 = vmatprep.subr.bf16.mxu0 0
    %564 = vmatpush1.bf16.msra.mxu0 %v425
    %565 = vmatprep.subr.bf16.mxu0 0
    %566 = vmatpush1.bf16.msra.mxu0 %v422
    %567 = vmatprep.subr.bf16.mxu0 0
    %568 = vmatpush1.bf16.msra.mxu0 %v419
    %569 = vmatprep.subr.bf16.mxu0 0
    %570 = vmatpush1.bf16.msra.mxu0 %v416
    %571 = vmatprep.subr.bf16.mxu0 0
    %572 = vmatpush1.bf16.msra.mxu0 %v413
    %573 = vmatprep.subr.bf16.mxu0 0
    %574 = vmatpush1.bf16.msra.mxu0 %v410
    %575 = vmatprep.subr.bf16.mxu0 0
    %576 = vmatpush1.bf16.msra.mxu0 %v407
    %577 = vmatprep.subr.bf16.mxu0 0
    %578 = vmatpush1.bf16.msra.mxu0 %v404
    %579 = vmatprep.subr.bf16.mxu0 0
    %580 = vmatpush2.bf16.msra.mxu0 0
    %581 = vmatprep.subr.bf16.mxu0 0
    %582 = vmatpush2.bf16.msra.mxu0 0
    %583 = vmatprep.subr.bf16.mxu0 0
    %584 = vmatpush2.bf16.msra.mxu0 0
    %585 = vmatprep.subr.bf16.mxu0 0
    %586 = vmatpush2.bf16.msra.mxu0 0
    %587 = vmatprep.subr.bf16.mxu0 0
    %588 = vmatpush2.bf16.msra.mxu0 0
    %589 = vmatprep.subr.bf16.mxu0 0
    %590 = vmatpush2.bf16.msra.mxu0 0
    %591 = vmatprep.subr.bf16.mxu0 0
    %592 = vmatpush2.bf16.msra.mxu0 0
    %593 = vmatprep.subr.bf16.mxu0 0
    %594 = vmatpush2.bf16.msra.mxu0 0
    %595 = vmatprep.mubr.bf16.mxu0 0
    %596 = vmatmul.mubr.bf16.gmra.mxu0 %v282
    %v597 = vpop.f32.mrf.mxu0
    %v598 = vadd.f32 0.0, %v597
    %v599 = vpop.f32.mrf.mxu0
    %v600 = vpop.f32.mrf.mxu0
    %v601 = vadd.f32 0.0, %v600
    %v602 = vpop.f32.mrf.mxu0
    %603 = vmatprep.mubr.bf16.mxu0 0
    %604 = vmatmul.mubr.bf16.gmra.mxu0 %v283
    %v605 = vpop.f32.mrf.mxu0
    %v606 = vadd.f32 0.0, %v605
    %v607 = vpop.f32.mrf.mxu0
    %v608 = vpop.f32.mrf.mxu0
    %v609 = vadd.f32 0.0, %v608
    %v610 = vpop.f32.mrf.mxu0
    %611 = vmatprep.mubr.bf16.mxu0 0
    %612 = vmatmul.mubr.bf16.gmra.mxu0 %v284
    %v613 = vpop.f32.mrf.mxu0
    %v614 = vadd.f32 0.0, %v613
    %v615 = vpop.f32.mrf.mxu0
    %v616 = vpop.f32.mrf.mxu0
    %v617 = vadd.f32 0.0, %v616
    %v618 = vpop.f32.mrf.mxu0
    %619 = vmatprep.mubr.bf16.mxu0 0
    %620 = vmatmul.mubr.bf16.gmra.mxu0 %v285
    %v621 = vpop.f32.mrf.mxu0
    %v622 = vadd.f32 0.0, %v621
    %v623 = vpop.f32.mrf.mxu0
    %v624 = vpop.f32.mrf.mxu0
    %v625 = vadd.f32 0.0, %v624
    %v626 = vpop.f32.mrf.mxu0
    %627 = vmatprep.mubr.bf16.mxu0 0
    %628 = vmatmul.mubr.bf16.gmra.mxu0 %v286
    %v629 = vpop.f32.mrf.mxu0
    %v630 = vadd.f32 0.0, %v629
    %v631 = vpop.f32.mrf.mxu0
    %v632 = vpop.f32.mrf.mxu0
    %v633 = vadd.f32 0.0, %v632
    %v634 = vpop.f32.mrf.mxu0
    %635 = vmatprep.mubr.bf16.mxu0 0
    %636 = vmatmul.mubr.bf16.gmra.mxu0 %v287
    %v637 = vpop.f32.mrf.mxu0
    %v638 = vadd.f32 0.0, %v637
    %v639 = vpop.f32.mrf.mxu0
    %v640 = vpop.f32.mrf.mxu0
    %v641 = vadd.f32 0.0, %v640
    %v642 = vpop.f32.mrf.mxu0
    %643 = vmatprep.mubr.bf16.mxu0 0
    %644 = vmatmul.mubr.bf16.gmra.mxu0 %v288
    %v645 = vpop.f32.mrf.mxu0
    %v646 = vadd.f32 0.0, %v645
    %v647 = vpop.f32.mrf.mxu0
    %v648 = vpop.f32.mrf.mxu0
    %v649 = vadd.f32 0.0, %v648
    %v650 = vpop.f32.mrf.mxu0
    %651 = vmatprep.mubr.bf16.mxu0 0
    %652 = vmatmul.mubr.bf16.gmra.mxu0 %v289
    %v653 = vpop.f32.mrf.mxu0
    %v654 = vadd.f32 0.0, %v653
    %v655 = vpop.f32.mrf.mxu0
    %v656 = vpop.f32.mrf.mxu0
    %v657 = vadd.f32 0.0, %v656
    %v658 = vpop.f32.mrf.mxu0
    %659 = vdwg.mxu0
    %v660 = vlaneseq
    %v661 = vshrl.u32 %v660, 7
    %v662 = vadd.s32 %v661, 8
    %v663 = vadd.s32 %v661, 16
    %v664 = vadd.s32 %v661, 24
    %v665 = vadd.s32 %v661, 32
    %v666 = vadd.s32 %v661, 40
    %v667 = vadd.s32 %v661, 48
    %v668 = vadd.s32 %v661, 56
    %v669 = vlaneseq
    %v670 = vand.u32 %v669, 127
    %vm671 = vcmp.le.s32.totalorder %v670, %v661
    %vm672 = vcmp.le.s32.totalorder %v670, %v662
    %vm673 = vcmp.le.s32.totalorder %v670, %v663
    %vm674 = vcmp.le.s32.totalorder %v670, %v664
    %vm675 = vcmp.le.s32.totalorder %v670, %v665
    %vm676 = vcmp.le.s32.totalorder %v670, %v666
    %vm677 = vcmp.le.s32.totalorder %v670, %v667
    %vm678 = vcmp.le.s32.totalorder %v670, %v668
    %v679 = vsel %vm671, 0.0, -1e+30
    %v680 = vsel %vm672, 0.0, -1e+30
    %v681 = vsel %vm673, 0.0, -1e+30
    %v682 = vsel %vm674, 0.0, -1e+30
    %v683 = vsel %vm675, 0.0, -1e+30
    %v684 = vsel %vm676, 0.0, -1e+30
    %v685 = vsel %vm677, 0.0, -1e+30
    %v686 = vsel %vm678, 0.0, -1e+30
    %v687 = vpack.c.bf16 %v489, %v485
    %v688 = vpack.c.bf16 %v499, %v495
    %v689 = vpack.c.bf16 %v509, %v505
    %v690 = vpack.c.bf16 %v519, %v515
    %v691 = vpack.c.bf16 %v491, %v487
    %v692 = vpack.c.bf16 %v501, %v497
    %v693 = vpack.c.bf16 %v511, %v507
    %v694 = vpack.c.bf16 %v521, %v517
    %v695 = vpack.c.bf16 %v601, %v598
    %v696 = vpack.c.bf16 %v609, %v606
    %v697 = vpack.c.bf16 %v617, %v614
    %v698 = vpack.c.bf16 %v625, %v622
    %vm699 = vcmask 261120
    %v701 = vsel %vm699, %v687, 0
    %v704 = vsel %vm699, %v688, 0
    %v707 = vsel %vm699, %v689, 0
    %v710 = vsel %vm699, %v690, 0
    %v713 = vsel %vm699, %v691, 0
    %v716 = vsel %vm699, %v692, 0
    %v719 = vsel %vm699, %v693, 0
    %v722 = vsel %vm699, %v694, 0
    %724 = vmatprep.subr.bf16.mxu0 0
    %725 = vmatpush1.bf16.xpose.msra.mxu0 0
    %726 = vmatprep.subr.bf16.mxu0 0
    %727 = vmatpush1.bf16.xpose.msra.mxu0 0
    %728 = vmatprep.subr.bf16.mxu0 0
    %729 = vmatpush1.bf16.xpose.msra.mxu0 0
    %730 = vmatprep.subr.bf16.mxu0 0
    %731 = vmatpush1.bf16.xpose.msra.mxu0 0
    %732 = vmatprep.subr.bf16.mxu0 0
    %733 = vmatpush1.bf16.xpose.msra.mxu0 %v722
    %734 = vmatprep.subr.bf16.mxu0 0
    %735 = vmatpush1.bf16.xpose.msra.mxu0 %v719
    %736 = vmatprep.subr.bf16.mxu0 0
    %737 = vmatpush1.bf16.xpose.msra.mxu0 %v716
    %738 = vmatprep.subr.bf16.mxu0 0
    %739 = vmatpush1.bf16.xpose.msra.mxu0 %v713
    %740 = vmatprep.subr.bf16.mxu0 0
    %741 = vmatpush2.bf16.xpose.msra.mxu0 0
    %742 = vmatprep.subr.bf16.mxu0 0
    %743 = vmatpush2.bf16.xpose.msra.mxu0 0
    %744 = vmatprep.subr.bf16.mxu0 0
    %745 = vmatpush2.bf16.xpose.msra.mxu0 0
    %746 = vmatprep.subr.bf16.mxu0 0
    %747 = vmatpush2.bf16.xpose.msra.mxu0 0
    %748 = vmatprep.subr.bf16.mxu0 0
    %749 = vmatpush2.bf16.xpose.msra.mxu0 0
    %750 = vmatprep.subr.bf16.mxu0 0
    %751 = vmatpush2.bf16.xpose.msra.mxu0 0
    %752 = vmatprep.subr.bf16.mxu0 0
    %753 = vmatpush2.bf16.xpose.msra.mxu0 0
    %754 = vmatprep.subr.bf16.mxu0 0
    %755 = vmatpush2.bf16.xpose.msra.mxu0 0
    %756 = vmatprep.mubr.bf16.mxu0 0
    %757 = vmatmul.mubr.bf16.gmra.mxu0 %v701
    %v758 = vpop.f32.mrf.mxu0
    %v759 = vadd.f32 0.0, %v758
    %v760 = vpop.f32.mrf.mxu0
    %v761 = vpop.f32.mrf.mxu0
    %v762 = vadd.f32 0.0, %v761
    %v763 = vpop.f32.mrf.mxu0
    %764 = vmatprep.mubr.bf16.mxu0 0
    %765 = vmatmul.mubr.bf16.gmra.mxu0 %v704
    %v766 = vpop.f32.mrf.mxu0
    %v767 = vadd.f32 0.0, %v766
    %v768 = vpop.f32.mrf.mxu0
    %v769 = vpop.f32.mrf.mxu0
    %v770 = vadd.f32 0.0, %v769
    %v771 = vpop.f32.mrf.mxu0
    %772 = vmatprep.mubr.bf16.mxu0 0
    %773 = vmatmul.mubr.bf16.gmra.mxu0 %v707
    %v774 = vpop.f32.mrf.mxu0
    %v775 = vadd.f32 0.0, %v774
    %v776 = vpop.f32.mrf.mxu0
    %v777 = vpop.f32.mrf.mxu0
    %v778 = vadd.f32 0.0, %v777
    %v779 = vpop.f32.mrf.mxu0
    %780 = vmatprep.mubr.bf16.mxu0 0
    %781 = vmatmul.mubr.bf16.gmra.mxu0 %v710
    %v782 = vpop.f32.mrf.mxu0
    %v783 = vadd.f32 0.0, %v782
    %v784 = vpop.f32.mrf.mxu0
    %v785 = vpop.f32.mrf.mxu0
    %v786 = vadd.f32 0.0, %v785
    %v787 = vpop.f32.mrf.mxu0
    %788 = vdwg.mxu0
    %v789 = vmul.f32 %v759, 0.088388346
    %v790 = vmul.f32 %v762, 0.088388346
    %v791 = vmul.f32 %v767, 0.088388346
    %v792 = vmul.f32 %v770, 0.088388346
    %v793 = vmul.f32 %v775, 0.088388346
    %v794 = vmul.f32 %v778, 0.088388346
    %v795 = vmul.f32 %v783, 0.088388346
    %v796 = vmul.f32 %v786, 0.088388346
    %v797 = vadd.f32 %v789, %v679
    %v798 = vadd.f32 %v790, %v680
    %v799 = vadd.f32 %v791, %v681
    %v800 = vadd.f32 %v792, %v682
    %v801 = vadd.f32 %v793, %v683
    %v802 = vadd.f32 %v794, %v684
    %v803 = vadd.f32 %v795, %v685
    %v804 = vadd.f32 %v796, %v686
    %vm805 = vcmask 523264
    %v806 = vsel %vm805, %v797, -inf
    %807 = vmax.xlane.f32.xlu0 %v806
    %v808 = vpop.xlane.xlu0 %807
    %v809 = vsel %vm805, %v798, -inf
    %810 = vmax.xlane.f32.xlu0 %v809
    %v811 = vpop.xlane.xlu0 %810
    %v812 = vsel %vm805, %v799, -inf
    %813 = vmax.xlane.f32.xlu0 %v812
    %v814 = vpop.xlane.xlu0 %813
    %v815 = vsel %vm805, %v800, -inf
    %816 = vmax.xlane.f32.xlu0 %v815
    %v817 = vpop.xlane.xlu0 %816
    %v818 = vsel %vm805, %v801, -inf
    %819 = vmax.xlane.f32.xlu0 %v818
    %v820 = vpop.xlane.xlu0 %819
    %v821 = vsel %vm805, %v802, -inf
    %822 = vmax.xlane.f32.xlu0 %v821
    %v823 = vpop.xlane.xlu0 %822
    %v824 = vsel %vm805, %v803, -inf
    %825 = vmax.xlane.f32.xlu0 %v824
    %v826 = vpop.xlane.xlu0 %825
    %v827 = vsel %vm805, %v804, -inf
    %828 = vmax.xlane.f32.xlu0 %v827
    %v829 = vpop.xlane.xlu0 %828
    %v830 = vsub.f32 %v797, %v808
    %v831 = vsub.f32 %v798, %v811
    %v832 = vsub.f32 %v799, %v814
    %v833 = vsub.f32 %v800, %v817
    %v834 = vsub.f32 %v801, %v820
    %v835 = vsub.f32 %v802, %v823
    %v836 = vsub.f32 %v803, %v826
    %v837 = vsub.f32 %v804, %v829
    %v838 = vmul.f32 %v830, 1.442695
    %v839 = vpow.pop %v838
    %v840 = vmul.f32 %v831, 1.442695
    %v841 = vpow.pop %v840
    %v842 = vmul.f32 %v832, 1.442695
    %v843 = vpow.pop %v842
    %v844 = vmul.f32 %v833, 1.442695
    %v845 = vpow.pop %v844
    %v846 = vmul.f32 %v834, 1.442695
    %v847 = vpow.pop %v846
    %v848 = vmul.f32 %v835, 1.442695
    %v849 = vpow.pop %v848
    %v850 = vmul.f32 %v836, 1.442695
    %v851 = vpow.pop %v850
    %v852 = vmul.f32 %v837, 1.442695
    %v853 = vpow.pop %v852
    %v854 = vsel %vm805, %v839, 0.0
    %855 = vadd.xlane.f32.xlu0 %v854
    %v856 = vpop.xlane.xlu0 %855
    %v857 = vsel %vm805, %v841, 0.0
    %858 = vadd.xlane.f32.xlu0 %v857
    %v859 = vpop.xlane.xlu0 %858
    %v860 = vsel %vm805, %v843, 0.0
    %861 = vadd.xlane.f32.xlu0 %v860
    %v862 = vpop.xlane.xlu0 %861
    %v863 = vsel %vm805, %v845, 0.0
    %864 = vadd.xlane.f32.xlu0 %v863
    %v865 = vpop.xlane.xlu0 %864
    %v866 = vsel %vm805, %v847, 0.0
    %867 = vadd.xlane.f32.xlu0 %v866
    %v868 = vpop.xlane.xlu0 %867
    %v869 = vsel %vm805, %v849, 0.0
    %870 = vadd.xlane.f32.xlu0 %v869
    %v871 = vpop.xlane.xlu0 %870
    %v872 = vsel %vm805, %v851, 0.0
    %873 = vadd.xlane.f32.xlu0 %v872
    %v874 = vpop.xlane.xlu0 %873
    %v875 = vsel %vm805, %v853, 0.0
    %876 = vadd.xlane.f32.xlu0 %v875
    %v877 = vpop.xlane.xlu0 %876
    %v878 = vpack.c.bf16 %v841, %v839
    %v879 = vpack.c.bf16 %v845, %v843
    %v880 = vpack.c.bf16 %v849, %v847
    %v881 = vpack.c.bf16 %v853, %v851
    %v883 = vsel %vm805, %v878, 0
    %v886 = vsel %vm805, %v879, 0
    %v889 = vsel %vm805, %v880, 0
    %v892 = vsel %vm805, %v881, 0
    %894 = vmatprep.subr.bf16.mxu0 0
    %895 = vmatpush1.bf16.msra.mxu0 0
    %896 = vmatprep.subr.bf16.mxu0 0
    %897 = vmatpush1.bf16.msra.mxu0 0
    %898 = vmatprep.subr.bf16.mxu0 0
    %899 = vmatpush1.bf16.msra.mxu0 0
    %900 = vmatprep.subr.bf16.mxu0 0
    %901 = vmatpush1.bf16.msra.mxu0 0
    %902 = vmatprep.subr.bf16.mxu0 0
    %903 = vmatpush1.bf16.msra.mxu0 %v698
    %904 = vmatprep.subr.bf16.mxu0 0
    %905 = vmatpush1.bf16.msra.mxu0 %v697
    %906 = vmatprep.subr.bf16.mxu0 0
    %907 = vmatpush1.bf16.msra.mxu0 %v696
    %908 = vmatprep.subr.bf16.mxu0 0
    %909 = vmatpush1.bf16.msra.mxu0 %v695
    %910 = vmatprep.subr.bf16.mxu0 0
    %911 = vmatpush2.bf16.msra.mxu0 0
    %912 = vmatprep.subr.bf16.mxu0 0
    %913 = vmatpush2.bf16.msra.mxu0 0
    %914 = vmatprep.subr.bf16.mxu0 0
    %915 = vmatpush2.bf16.msra.mxu0 0
    %916 = vmatprep.subr.bf16.mxu0 0
    %917 = vmatpush2.bf16.msra.mxu0 0
    %918 = vmatprep.subr.bf16.mxu0 0
    %919 = vmatpush2.bf16.msra.mxu0 0
    %920 = vmatprep.subr.bf16.mxu0 0
    %921 = vmatpush2.bf16.msra.mxu0 0
    %922 = vmatprep.subr.bf16.mxu0 0
    %923 = vmatpush2.bf16.msra.mxu0 0
    %924 = vmatprep.subr.bf16.mxu0 0
    %925 = vmatpush2.bf16.msra.mxu0 0
    %926 = vmatprep.mubr.bf16.mxu0 0
    %927 = vmatmul.mubr.bf16.gmra.mxu0 %v883
    %v928 = vpop.f32.mrf.mxu0
    %v929 = vadd.f32 0.0, %v928
    %v930 = vpop.f32.mrf.mxu0
    %v931 = vpop.f32.mrf.mxu0
    %v932 = vadd.f32 0.0, %v931
    %v933 = vpop.f32.mrf.mxu0
    %934 = vmatprep.mubr.bf16.mxu0 0
    %935 = vmatmul.mubr.bf16.gmra.mxu0 %v886
    %v936 = vpop.f32.mrf.mxu0
    %v937 = vadd.f32 0.0, %v936
    %v938 = vpop.f32.mrf.mxu0
    %v939 = vpop.f32.mrf.mxu0
    %v940 = vadd.f32 0.0, %v939
    %v941 = vpop.f32.mrf.mxu0
    %942 = vmatprep.mubr.bf16.mxu0 0
    %943 = vmatmul.mubr.bf16.gmra.mxu0 %v889
    %v944 = vpop.f32.mrf.mxu0
    %v945 = vadd.f32 0.0, %v944
    %v946 = vpop.f32.mrf.mxu0
    %v947 = vpop.f32.mrf.mxu0
    %v948 = vadd.f32 0.0, %v947
    %v949 = vpop.f32.mrf.mxu0
    %950 = vmatprep.mubr.bf16.mxu0 0
    %951 = vmatmul.mubr.bf16.gmra.mxu0 %v892
    %v952 = vpop.f32.mrf.mxu0
    %v953 = vadd.f32 0.0, %v952
    %v954 = vpop.f32.mrf.mxu0
    %v955 = vpop.f32.mrf.mxu0
    %v956 = vadd.f32 0.0, %v955
    %v957 = vpop.f32.mrf.mxu0
    %958 = vdwg.mxu0
    %v959 = vrcp.pop %v856
    %v960 = vrcp.pop %v859
    %v961 = vrcp.pop %v862
    %v962 = vrcp.pop %v865
    %v963 = vrcp.pop %v868
    %v964 = vrcp.pop %v871
    %v965 = vrcp.pop %v874
    %v966 = vrcp.pop %v877
    %v967 = vmul.f32 %v929, %v959
    %v968 = vmul.f32 %v932, %v960
    %v969 = vmul.f32 %v937, %v961
    %v970 = vmul.f32 %v940, %v962
    %v971 = vmul.f32 %v945, %v963
    %v972 = vmul.f32 %v948, %v964
    %v973 = vmul.f32 %v953, %v965
    %v974 = vmul.f32 %v956, %v966
    %979 = vrot.lane.b32.xlu0 %v687, 96
    %v980 = vpop.permute.xlu0 %979
    %981 = vrot.lane.b32.xlu0 %v688, 96
    %v982 = vpop.permute.xlu0 %981
    %983 = vrot.lane.b32.xlu0 %v689, 96
    %v984 = vpop.permute.xlu0 %983
    %985 = vrot.lane.b32.xlu0 %v690, 96
    %v986 = vpop.permute.xlu0 %985
    %991 = vrot.lane.b32.xlu0 %v691, 96
    %v992 = vpop.permute.xlu0 %991
    %993 = vrot.lane.b32.xlu0 %v692, 96
    %v994 = vpop.permute.xlu0 %993
    %995 = vrot.lane.b32.xlu0 %v693, 96
    %v996 = vpop.permute.xlu0 %995
    %997 = vrot.lane.b32.xlu0 %v694, 96
    %v998 = vpop.permute.xlu0 %997
    %v1000 = vsel %vm699, %v980, 0
    %v1003 = vsel %vm699, %v982, 0
    %v1006 = vsel %vm699, %v984, 0
    %v1009 = vsel %vm699, %v986, 0
    %v1012 = vsel %vm699, %v992, 0
    %v1015 = vsel %vm699, %v994, 0
    %v1018 = vsel %vm699, %v996, 0
    %v1021 = vsel %vm699, %v998, 0
    %1023 = vmatprep.subr.bf16.mxu0 0
    %1024 = vmatpush1.bf16.xpose.msra.mxu0 0
    %1025 = vmatprep.subr.bf16.mxu0 0
    %1026 = vmatpush1.bf16.xpose.msra.mxu0 0
    %1027 = vmatprep.subr.bf16.mxu0 0
    %1028 = vmatpush1.bf16.xpose.msra.mxu0 0
    %1029 = vmatprep.subr.bf16.mxu0 0
    %1030 = vmatpush1.bf16.xpose.msra.mxu0 0
    %1031 = vmatprep.subr.bf16.mxu0 0
    %1032 = vmatpush1.bf16.xpose.msra.mxu0 %v1021
    %1033 = vmatprep.subr.bf16.mxu0 0
    %1034 = vmatpush1.bf16.xpose.msra.mxu0 %v1018
    %1035 = vmatprep.subr.bf16.mxu0 0
    %1036 = vmatpush1.bf16.xpose.msra.mxu0 %v1015
    %1037 = vmatprep.subr.bf16.mxu0 0
    %1038 = vmatpush1.bf16.xpose.msra.mxu0 %v1012
    %1039 = vmatprep.subr.bf16.mxu0 0
    %1040 = vmatpush2.bf16.xpose.msra.mxu0 0
    %1041 = vmatprep.subr.bf16.mxu0 0
    %1042 = vmatpush2.bf16.xpose.msra.mxu0 0
    %1043 = vmatprep.subr.bf16.mxu0 0
    %1044 = vmatpush2.bf16.xpose.msra.mxu0 0
    %1045 = vmatprep.subr.bf16.mxu0 0
    %1046 = vmatpush2.bf16.xpose.msra.mxu0 0
    %1047 = vmatprep.subr.bf16.mxu0 0
    %1048 = vmatpush2.bf16.xpose.msra.mxu0 0
    %1049 = vmatprep.subr.bf16.mxu0 0
    %1050 = vmatpush2.bf16.xpose.msra.mxu0 0
    %1051 = vmatprep.subr.bf16.mxu0 0
    %1052 = vmatpush2.bf16.xpose.msra.mxu0 0
    %1053 = vmatprep.subr.bf16.mxu0 0
    %1054 = vmatpush2.bf16.xpose.msra.mxu0 0
    %1055 = vmatprep.mubr.bf16.mxu0 0
    %1056 = vmatmul.mubr.bf16.gmra.mxu0 %v1000
    %v1057 = vpop.f32.mrf.mxu0
    %v1058 = vadd.f32 0.0, %v1057
    %v1059 = vpop.f32.mrf.mxu0
    %v1060 = vpop.f32.mrf.mxu0
    %v1061 = vadd.f32 0.0, %v1060
    %v1062 = vpop.f32.mrf.mxu0
    %1063 = vmatprep.mubr.bf16.mxu0 0
    %1064 = vmatmul.mubr.bf16.gmra.mxu0 %v1003
    %v1065 = vpop.f32.mrf.mxu0
    %v1066 = vadd.f32 0.0, %v1065
    %v1067 = vpop.f32.mrf.mxu0
    %v1068 = vpop.f32.mrf.mxu0
    %v1069 = vadd.f32 0.0, %v1068
    %v1070 = vpop.f32.mrf.mxu0
    %1071 = vmatprep.mubr.bf16.mxu0 0
    %1072 = vmatmul.mubr.bf16.gmra.mxu0 %v1006
    %v1073 = vpop.f32.mrf.mxu0
    %v1074 = vadd.f32 0.0, %v1073
    %v1075 = vpop.f32.mrf.mxu0
    %v1076 = vpop.f32.mrf.mxu0
    %v1077 = vadd.f32 0.0, %v1076
    %v1078 = vpop.f32.mrf.mxu0
    %1079 = vmatprep.mubr.bf16.mxu0 0
    %1080 = vmatmul.mubr.bf16.gmra.mxu0 %v1009
    %v1081 = vpop.f32.mrf.mxu0
    %v1082 = vadd.f32 0.0, %v1081
    %v1083 = vpop.f32.mrf.mxu0
    %v1084 = vpop.f32.mrf.mxu0
    %v1085 = vadd.f32 0.0, %v1084
    %v1086 = vpop.f32.mrf.mxu0
    %1087 = vdwg.mxu0
    %v1088 = vmul.f32 %v1058, 0.088388346
    %v1089 = vmul.f32 %v1061, 0.088388346
    %v1090 = vmul.f32 %v1066, 0.088388346
    %v1091 = vmul.f32 %v1069, 0.088388346
    %v1092 = vmul.f32 %v1074, 0.088388346
    %v1093 = vmul.f32 %v1077, 0.088388346
    %v1094 = vmul.f32 %v1082, 0.088388346
    %v1095 = vmul.f32 %v1085, 0.088388346
    %v1096 = vadd.f32 %v1088, %v679
    %v1097 = vadd.f32 %v1089, %v680
    %v1098 = vadd.f32 %v1090, %v681
    %v1099 = vadd.f32 %v1091, %v682
    %v1100 = vadd.f32 %v1092, %v683
    %v1101 = vadd.f32 %v1093, %v684
    %v1102 = vadd.f32 %v1094, %v685
    %v1103 = vadd.f32 %v1095, %v686
    %v1104 = vsel %vm805, %v1096, -inf
    %1105 = vmax.xlane.f32.xlu0 %v1104
    %v1106 = vpop.xlane.xlu0 %1105
    %v1107 = vsel %vm805, %v1097, -inf
    %1108 = vmax.xlane.f32.xlu0 %v1107
    %v1109 = vpop.xlane.xlu0 %1108
    %v1110 = vsel %vm805, %v1098, -inf
    %1111 = vmax.xlane.f32.xlu0 %v1110
    %v1112 = vpop.xlane.xlu0 %1111
    %v1113 = vsel %vm805, %v1099, -inf
    %1114 = vmax.xlane.f32.xlu0 %v1113
    %v1115 = vpop.xlane.xlu0 %1114
    %v1116 = vsel %vm805, %v1100, -inf
    %1117 = vmax.xlane.f32.xlu0 %v1116
    %v1118 = vpop.xlane.xlu0 %1117
    %v1119 = vsel %vm805, %v1101, -inf
    %1120 = vmax.xlane.f32.xlu0 %v1119
    %v1121 = vpop.xlane.xlu0 %1120
    %v1122 = vsel %vm805, %v1102, -inf
    %1123 = vmax.xlane.f32.xlu0 %v1122
    %v1124 = vpop.xlane.xlu0 %1123
    %v1125 = vsel %vm805, %v1103, -inf
    %1126 = vmax.xlane.f32.xlu0 %v1125
    %v1127 = vpop.xlane.xlu0 %1126
    %v1128 = vsub.f32 %v1096, %v1106
    %v1129 = vsub.f32 %v1097, %v1109
    %v1130 = vsub.f32 %v1098, %v1112
    %v1131 = vsub.f32 %v1099, %v1115
    %v1132 = vsub.f32 %v1100, %v1118
    %v1133 = vsub.f32 %v1101, %v1121
    %v1134 = vsub.f32 %v1102, %v1124
    %v1135 = vsub.f32 %v1103, %v1127
    %v1136 = vmul.f32 %v1128, 1.442695
    %v1137 = vpow.pop %v1136
    %v1138 = vmul.f32 %v1129, 1.442695
    %v1139 = vpow.pop %v1138
    %v1140 = vmul.f32 %v1130, 1.442695
    %v1141 = vpow.pop %v1140
    %v1142 = vmul.f32 %v1131, 1.442695
    %v1143 = vpow.pop %v1142
    %v1144 = vmul.f32 %v1132, 1.442695
    %v1145 = vpow.pop %v1144
    %v1146 = vmul.f32 %v1133, 1.442695
    %v1147 = vpow.pop %v1146
    %v1148 = vmul.f32 %v1134, 1.442695
    %v1149 = vpow.pop %v1148
    %v1150 = vmul.f32 %v1135, 1.442695
    %v1151 = vpow.pop %v1150
    %v1152 = vsel %vm805, %v1137, 0.0
    %1153 = vadd.xlane.f32.xlu0 %v1152
    %v1154 = vpop.xlane.xlu0 %1153
    %v1155 = vsel %vm805, %v1139, 0.0
    %1156 = vadd.xlane.f32.xlu0 %v1155
    %v1157 = vpop.xlane.xlu0 %1156
    %v1158 = vsel %vm805, %v1141, 0.0
    %1159 = vadd.xlane.f32.xlu0 %v1158
    %v1160 = vpop.xlane.xlu0 %1159
    %v1161 = vsel %vm805, %v1143, 0.0
    %1162 = vadd.xlane.f32.xlu0 %v1161
    %v1163 = vpop.xlane.xlu0 %1162
    %v1164 = vsel %vm805, %v1145, 0.0
    %1165 = vadd.xlane.f32.xlu0 %v1164
    %v1166 = vpop.xlane.xlu0 %1165
    %v1167 = vsel %vm805, %v1147, 0.0
    %1168 = vadd.xlane.f32.xlu0 %v1167
    %v1169 = vpop.xlane.xlu0 %1168
    %v1170 = vsel %vm805, %v1149, 0.0
    %1171 = vadd.xlane.f32.xlu0 %v1170
    %v1172 = vpop.xlane.xlu0 %1171
    %v1173 = vsel %vm805, %v1151, 0.0
    %1174 = vadd.xlane.f32.xlu0 %v1173
    %v1175 = vpop.xlane.xlu0 %1174
    %v1176 = vpack.c.bf16 %v1139, %v1137
    %v1177 = vpack.c.bf16 %v1143, %v1141
    %v1178 = vpack.c.bf16 %v1147, %v1145
    %v1179 = vpack.c.bf16 %v1151, %v1149
    %1184 = vrot.lane.b32.xlu0 %v695, 96
    %v1185 = vpop.permute.xlu0 %1184
    %1186 = vrot.lane.b32.xlu0 %v696, 96
    %v1187 = vpop.permute.xlu0 %1186
    %1188 = vrot.lane.b32.xlu0 %v697, 96
    %v1189 = vpop.permute.xlu0 %1188
    %1190 = vrot.lane.b32.xlu0 %v698, 96
    %v1191 = vpop.permute.xlu0 %1190
    %v1197 = vsel %vm805, %v1176, 0
    %v1200 = vsel %vm805, %v1177, 0
    %v1203 = vsel %vm805, %v1178, 0
    %v1206 = vsel %vm805, %v1179, 0
    %1208 = vmatprep.subr.bf16.mxu0 0
    %1209 = vmatpush1.bf16.msra.mxu0 0
    %1210 = vmatprep.subr.bf16.mxu0 0
    %1211 = vmatpush1.bf16.msra.mxu0 0
    %1212 = vmatprep.subr.bf16.mxu0 0
    %1213 = vmatpush1.bf16.msra.mxu0 0
    %1214 = vmatprep.subr.bf16.mxu0 0
    %1215 = vmatpush1.bf16.msra.mxu0 0
    %1216 = vmatprep.subr.bf16.mxu0 0
    %1217 = vmatpush1.bf16.msra.mxu0 %v1191
    %1218 = vmatprep.subr.bf16.mxu0 0
    %1219 = vmatpush1.bf16.msra.mxu0 %v1189
    %1220 = vmatprep.subr.bf16.mxu0 0
    %1221 = vmatpush1.bf16.msra.mxu0 %v1187
    %1222 = vmatprep.subr.bf16.mxu0 0
    %1223 = vmatpush1.bf16.msra.mxu0 %v1185
    %1224 = vmatprep.subr.bf16.mxu0 0
    %1225 = vmatpush2.bf16.msra.mxu0 0
    %1226 = vmatprep.subr.bf16.mxu0 0
    %1227 = vmatpush2.bf16.msra.mxu0 0
    %1228 = vmatprep.subr.bf16.mxu0 0
    %1229 = vmatpush2.bf16.msra.mxu0 0
    %1230 = vmatprep.subr.bf16.mxu0 0
    %1231 = vmatpush2.bf16.msra.mxu0 0
    %1232 = vmatprep.subr.bf16.mxu0 0
    %1233 = vmatpush2.bf16.msra.mxu0 0
    %1234 = vmatprep.subr.bf16.mxu0 0
    %1235 = vmatpush2.bf16.msra.mxu0 0
    %1236 = vmatprep.subr.bf16.mxu0 0
    %1237 = vmatpush2.bf16.msra.mxu0 0
    %1238 = vmatprep.subr.bf16.mxu0 0
    %1239 = vmatpush2.bf16.msra.mxu0 0
    %1240 = vmatprep.mubr.bf16.mxu0 0
    %1241 = vmatmul.mubr.bf16.gmra.mxu0 %v1197
    %v1242 = vpop.f32.mrf.mxu0
    %v1243 = vadd.f32 0.0, %v1242
    %v1244 = vpop.f32.mrf.mxu0
    %v1245 = vpop.f32.mrf.mxu0
    %v1246 = vadd.f32 0.0, %v1245
    %v1247 = vpop.f32.mrf.mxu0
    %1248 = vmatprep.mubr.bf16.mxu0 0
    %1249 = vmatmul.mubr.bf16.gmra.mxu0 %v1200
    %v1250 = vpop.f32.mrf.mxu0
    %v1251 = vadd.f32 0.0, %v1250
    %v1252 = vpop.f32.mrf.mxu0
    %v1253 = vpop.f32.mrf.mxu0
    %v1254 = vadd.f32 0.0, %v1253
    %v1255 = vpop.f32.mrf.mxu0
    %1256 = vmatprep.mubr.bf16.mxu0 0
    %1257 = vmatmul.mubr.bf16.gmra.mxu0 %v1203
    %v1258 = vpop.f32.mrf.mxu0
    %v1259 = vadd.f32 0.0, %v1258
    %v1260 = vpop.f32.mrf.mxu0
    %v1261 = vpop.f32.mrf.mxu0
    %v1262 = vadd.f32 0.0, %v1261
    %v1263 = vpop.f32.mrf.mxu0
    %1264 = vmatprep.mubr.bf16.mxu0 0
    %1265 = vmatmul.mubr.bf16.gmra.mxu0 %v1206
    %v1266 = vpop.f32.mrf.mxu0
    %v1267 = vadd.f32 0.0, %v1266
    %v1268 = vpop.f32.mrf.mxu0
    %v1269 = vpop.f32.mrf.mxu0
    %v1270 = vadd.f32 0.0, %v1269
    %v1271 = vpop.f32.mrf.mxu0
    %1272 = vdwg.mxu0
    %v1273 = vrcp.pop %v1154
    %v1274 = vrcp.pop %v1157
    %v1275 = vrcp.pop %v1160
    %v1276 = vrcp.pop %v1163
    %v1277 = vrcp.pop %v1166
    %v1278 = vrcp.pop %v1169
    %v1279 = vrcp.pop %v1172
    %v1280 = vrcp.pop %v1175
    %v1281 = vmul.f32 %v1243, %v1273
    %v1282 = vmul.f32 %v1246, %v1274
    %v1283 = vmul.f32 %v1251, %v1275
    %v1284 = vmul.f32 %v1254, %v1276
    %v1285 = vmul.f32 %v1259, %v1277
    %v1286 = vmul.f32 %v1262, %v1278
    %v1287 = vmul.f32 %v1267, %v1279
    %v1288 = vmul.f32 %v1270, %v1280
    %1289 = vrot.lane.b32.xlu0 %v687, 64
    %v1290 = vpop.permute.xlu0 %1289
    %1291 = vrot.lane.b32.xlu0 %v688, 64
    %v1292 = vpop.permute.xlu0 %1291
    %1293 = vrot.lane.b32.xlu0 %v689, 64
    %v1294 = vpop.permute.xlu0 %1293
    %1295 = vrot.lane.b32.xlu0 %v690, 64
    %v1296 = vpop.permute.xlu0 %1295
    %1297 = vrot.lane.b32.xlu0 %v691, 64
    %v1298 = vpop.permute.xlu0 %1297
    %1299 = vrot.lane.b32.xlu0 %v692, 64
    %v1300 = vpop.permute.xlu0 %1299
    %1301 = vrot.lane.b32.xlu0 %v693, 64
    %v1302 = vpop.permute.xlu0 %1301
    %1303 = vrot.lane.b32.xlu0 %v694, 64
    %v1304 = vpop.permute.xlu0 %1303
    %v1306 = vsel %vm699, %v1290, 0
    %v1309 = vsel %vm699, %v1292, 0
    %v1312 = vsel %vm699, %v1294, 0
    %v1315 = vsel %vm699, %v1296, 0
    %v1318 = vsel %vm699, %v1298, 0
    %v1321 = vsel %vm699, %v1300, 0
    %v1324 = vsel %vm699, %v1302, 0
    %v1327 = vsel %vm699, %v1304, 0
    %1329 = vmatprep.subr.bf16.mxu0 0
    %1330 = vmatpush1.bf16.xpose.msra.mxu0 0
    %1331 = vmatprep.subr.bf16.mxu0 0
    %1332 = vmatpush1.bf16.xpose.msra.mxu0 0
    %1333 = vmatprep.subr.bf16.mxu0 0
    %1334 = vmatpush1.bf16.xpose.msra.mxu0 0
    %1335 = vmatprep.subr.bf16.mxu0 0
    %1336 = vmatpush1.bf16.xpose.msra.mxu0 0
    %1337 = vmatprep.subr.bf16.mxu0 0
    %1338 = vmatpush1.bf16.xpose.msra.mxu0 %v1327
    %1339 = vmatprep.subr.bf16.mxu0 0
    %1340 = vmatpush1.bf16.xpose.msra.mxu0 %v1324
    %1341 = vmatprep.subr.bf16.mxu0 0
    %1342 = vmatpush1.bf16.xpose.msra.mxu0 %v1321
    %1343 = vmatprep.subr.bf16.mxu0 0
    %1344 = vmatpush1.bf16.xpose.msra.mxu0 %v1318
    %1345 = vmatprep.subr.bf16.mxu0 0
    %1346 = vmatpush2.bf16.xpose.msra.mxu0 0
    %1347 = vmatprep.subr.bf16.mxu0 0
    %1348 = vmatpush2.bf16.xpose.msra.mxu0 0
    %1349 = vmatprep.subr.bf16.mxu0 0
    %1350 = vmatpush2.bf16.xpose.msra.mxu0 0
    %1351 = vmatprep.subr.bf16.mxu0 0
    %1352 = vmatpush2.bf16.xpose.msra.mxu0 0
    %1353 = vmatprep.subr.bf16.mxu0 0
    %1354 = vmatpush2.bf16.xpose.msra.mxu0 0
    %1355 = vmatprep.subr.bf16.mxu0 0
    %1356 = vmatpush2.bf16.xpose.msra.mxu0 0
    %1357 = vmatprep.subr.bf16.mxu0 0
    %1358 = vmatpush2.bf16.xpose.msra.mxu0 0
    %1359 = vmatprep.subr.bf16.mxu0 0
    %1360 = vmatpush2.bf16.xpose.msra.mxu0 0
    %1361 = vmatprep.mubr.bf16.mxu0 0
    %1362 = vmatmul.mubr.bf16.gmra.mxu0 %v1306
    %v1363 = vpop.f32.mrf.mxu0
    %v1364 = vadd.f32 0.0, %v1363
    %v1365 = vpop.f32.mrf.mxu0
    %v1366 = vpop.f32.mrf.mxu0
    %v1367 = vadd.f32 0.0, %v1366
    %v1368 = vpop.f32.mrf.mxu0
    %1369 = vmatprep.mubr.bf16.mxu0 0
    %1370 = vmatmul.mubr.bf16.gmra.mxu0 %v1309
    %v1371 = vpop.f32.mrf.mxu0
    %v1372 = vadd.f32 0.0, %v1371
    %v1373 = vpop.f32.mrf.mxu0
    %v1374 = vpop.f32.mrf.mxu0
    %v1375 = vadd.f32 0.0, %v1374
    %v1376 = vpop.f32.mrf.mxu0
    %1377 = vmatprep.mubr.bf16.mxu0 0
    %1378 = vmatmul.mubr.bf16.gmra.mxu0 %v1312
    %v1379 = vpop.f32.mrf.mxu0
    %v1380 = vadd.f32 0.0, %v1379
    %v1381 = vpop.f32.mrf.mxu0
    %v1382 = vpop.f32.mrf.mxu0
    %v1383 = vadd.f32 0.0, %v1382
    %v1384 = vpop.f32.mrf.mxu0
    %1385 = vmatprep.mubr.bf16.mxu0 0
    %1386 = vmatmul.mubr.bf16.gmra.mxu0 %v1315
    %v1387 = vpop.f32.mrf.mxu0
    %v1388 = vadd.f32 0.0, %v1387
    %v1389 = vpop.f32.mrf.mxu0
    %v1390 = vpop.f32.mrf.mxu0
    %v1391 = vadd.f32 0.0, %v1390
    %v1392 = vpop.f32.mrf.mxu0
    %1393 = vdwg.mxu0
    %v1394 = vmul.f32 %v1364, 0.088388346
    %v1395 = vmul.f32 %v1367, 0.088388346
    %v1396 = vmul.f32 %v1372, 0.088388346
    %v1397 = vmul.f32 %v1375, 0.088388346
    %v1398 = vmul.f32 %v1380, 0.088388346
    %v1399 = vmul.f32 %v1383, 0.088388346
    %v1400 = vmul.f32 %v1388, 0.088388346
    %v1401 = vmul.f32 %v1391, 0.088388346
    %v1402 = vadd.f32 %v1394, %v679
    %v1403 = vadd.f32 %v1395, %v680
    %v1404 = vadd.f32 %v1396, %v681
    %v1405 = vadd.f32 %v1397, %v682
    %v1406 = vadd.f32 %v1398, %v683
    %v1407 = vadd.f32 %v1399, %v684
    %v1408 = vadd.f32 %v1400, %v685
    %v1409 = vadd.f32 %v1401, %v686
    %v1410 = vsel %vm805, %v1402, -inf
    %1411 = vmax.xlane.f32.xlu0 %v1410
    %v1412 = vpop.xlane.xlu0 %1411
    %v1413 = vsel %vm805, %v1403, -inf
    %1414 = vmax.xlane.f32.xlu0 %v1413
    %v1415 = vpop.xlane.xlu0 %1414
    %v1416 = vsel %vm805, %v1404, -inf
    %1417 = vmax.xlane.f32.xlu0 %v1416
    %v1418 = vpop.xlane.xlu0 %1417
    %v1419 = vsel %vm805, %v1405, -inf
    %1420 = vmax.xlane.f32.xlu0 %v1419
    %v1421 = vpop.xlane.xlu0 %1420
    %v1422 = vsel %vm805, %v1406, -inf
    %1423 = vmax.xlane.f32.xlu0 %v1422
    %v1424 = vpop.xlane.xlu0 %1423
    %v1425 = vsel %vm805, %v1407, -inf
    %1426 = vmax.xlane.f32.xlu0 %v1425
    %v1427 = vpop.xlane.xlu0 %1426
    %v1428 = vsel %vm805, %v1408, -inf
    %1429 = vmax.xlane.f32.xlu0 %v1428
    %v1430 = vpop.xlane.xlu0 %1429
    %v1431 = vsel %vm805, %v1409, -inf
    %1432 = vmax.xlane.f32.xlu0 %v1431
    %v1433 = vpop.xlane.xlu0 %1432
    %v1434 = vsub.f32 %v1402, %v1412
    %v1435 = vsub.f32 %v1403, %v1415
    %v1436 = vsub.f32 %v1404, %v1418
    %v1437 = vsub.f32 %v1405, %v1421
    %v1438 = vsub.f32 %v1406, %v1424
    %v1439 = vsub.f32 %v1407, %v1427
    %v1440 = vsub.f32 %v1408, %v1430
    %v1441 = vsub.f32 %v1409, %v1433
    %v1442 = vmul.f32 %v1434, 1.442695
    %v1443 = vpow.pop %v1442
    %v1444 = vmul.f32 %v1435, 1.442695
    %v1445 = vpow.pop %v1444
    %v1446 = vmul.f32 %v1436, 1.442695
    %v1447 = vpow.pop %v1446
    %v1448 = vmul.f32 %v1437, 1.442695
    %v1449 = vpow.pop %v1448
    %v1450 = vmul.f32 %v1438, 1.442695
    %v1451 = vpow.pop %v1450
    %v1452 = vmul.f32 %v1439, 1.442695
    %v1453 = vpow.pop %v1452
    %v1454 = vmul.f32 %v1440, 1.442695
    %v1455 = vpow.pop %v1454
    %v1456 = vmul.f32 %v1441, 1.442695
    %v1457 = vpow.pop %v1456
    %v1458 = vsel %vm805, %v1443, 0.0
    %1459 = vadd.xlane.f32.xlu0 %v1458
    %v1460 = vpop.xlane.xlu0 %1459
    %v1461 = vsel %vm805, %v1445, 0.0
    %1462 = vadd.xlane.f32.xlu0 %v1461
    %v1463 = vpop.xlane.xlu0 %1462
    %v1464 = vsel %vm805, %v1447, 0.0
    %1465 = vadd.xlane.f32.xlu0 %v1464
    %v1466 = vpop.xlane.xlu0 %1465
    %v1467 = vsel %vm805, %v1449, 0.0
    %1468 = vadd.xlane.f32.xlu0 %v1467
    %v1469 = vpop.xlane.xlu0 %1468
    %v1470 = vsel %vm805, %v1451, 0.0
    %1471 = vadd.xlane.f32.xlu0 %v1470
    %v1472 = vpop.xlane.xlu0 %1471
    %v1473 = vsel %vm805, %v1453, 0.0
    %1474 = vadd.xlane.f32.xlu0 %v1473
    %v1475 = vpop.xlane.xlu0 %1474
    %v1476 = vsel %vm805, %v1455, 0.0
    %1477 = vadd.xlane.f32.xlu0 %v1476
    %v1478 = vpop.xlane.xlu0 %1477
    %v1479 = vsel %vm805, %v1457, 0.0
    %1480 = vadd.xlane.f32.xlu0 %v1479
    %v1481 = vpop.xlane.xlu0 %1480
    %v1482 = vpack.c.bf16 %v1445, %v1443
    %v1483 = vpack.c.bf16 %v1449, %v1447
    %v1484 = vpack.c.bf16 %v1453, %v1451
    %v1485 = vpack.c.bf16 %v1457, %v1455
    %1486 = vrot.lane.b32.xlu0 %v695, 64
    %v1487 = vpop.permute.xlu0 %1486
    %1488 = vrot.lane.b32.xlu0 %v696, 64
    %v1489 = vpop.permute.xlu0 %1488
    %1490 = vrot.lane.b32.xlu0 %v697, 64
    %v1491 = vpop.permute.xlu0 %1490
    %1492 = vrot.lane.b32.xlu0 %v698, 64
    %v1493 = vpop.permute.xlu0 %1492
    %v1499 = vsel %vm805, %v1482, 0
    %v1502 = vsel %vm805, %v1483, 0
    %v1505 = vsel %vm805, %v1484, 0
    %v1508 = vsel %vm805, %v1485, 0
    %1510 = vmatprep.subr.bf16.mxu0 0
    %1511 = vmatpush1.bf16.msra.mxu0 0
    %1512 = vmatprep.subr.bf16.mxu0 0
    %1513 = vmatpush1.bf16.msra.mxu0 0
    %1514 = vmatprep.subr.bf16.mxu0 0
    %1515 = vmatpush1.bf16.msra.mxu0 0
    %1516 = vmatprep.subr.bf16.mxu0 0
    %1517 = vmatpush1.bf16.msra.mxu0 0
    %1518 = vmatprep.subr.bf16.mxu0 0
    %1519 = vmatpush1.bf16.msra.mxu0 %v1493
    %1520 = vmatprep.subr.bf16.mxu0 0
    %1521 = vmatpush1.bf16.msra.mxu0 %v1491
    %1522 = vmatprep.subr.bf16.mxu0 0
    %1523 = vmatpush1.bf16.msra.mxu0 %v1489
    %1524 = vmatprep.subr.bf16.mxu0 0
    %1525 = vmatpush1.bf16.msra.mxu0 %v1487
    %1526 = vmatprep.subr.bf16.mxu0 0
    %1527 = vmatpush2.bf16.msra.mxu0 0
    %1528 = vmatprep.subr.bf16.mxu0 0
    %1529 = vmatpush2.bf16.msra.mxu0 0
    %1530 = vmatprep.subr.bf16.mxu0 0
    %1531 = vmatpush2.bf16.msra.mxu0 0
    %1532 = vmatprep.subr.bf16.mxu0 0
    %1533 = vmatpush2.bf16.msra.mxu0 0
    %1534 = vmatprep.subr.bf16.mxu0 0
    %1535 = vmatpush2.bf16.msra.mxu0 0
    %1536 = vmatprep.subr.bf16.mxu0 0
    %1537 = vmatpush2.bf16.msra.mxu0 0
    %1538 = vmatprep.subr.bf16.mxu0 0
    %1539 = vmatpush2.bf16.msra.mxu0 0
    %1540 = vmatprep.subr.bf16.mxu0 0
    %1541 = vmatpush2.bf16.msra.mxu0 0
    %1542 = vmatprep.mubr.bf16.mxu0 0
    %1543 = vmatmul.mubr.bf16.gmra.mxu0 %v1499
    %v1544 = vpop.f32.mrf.mxu0
    %v1545 = vadd.f32 0.0, %v1544
    %v1546 = vpop.f32.mrf.mxu0
    %v1547 = vpop.f32.mrf.mxu0
    %v1548 = vadd.f32 0.0, %v1547
    %v1549 = vpop.f32.mrf.mxu0
    %1550 = vmatprep.mubr.bf16.mxu0 0
    %1551 = vmatmul.mubr.bf16.gmra.mxu0 %v1502
    %v1552 = vpop.f32.mrf.mxu0
    %v1553 = vadd.f32 0.0, %v1552
    %v1554 = vpop.f32.mrf.mxu0
    %v1555 = vpop.f32.mrf.mxu0
    %v1556 = vadd.f32 0.0, %v1555
    %v1557 = vpop.f32.mrf.mxu0
    %1558 = vmatprep.mubr.bf16.mxu0 0
    %1559 = vmatmul.mubr.bf16.gmra.mxu0 %v1505
    %v1560 = vpop.f32.mrf.mxu0
    %v1561 = vadd.f32 0.0, %v1560
    %v1562 = vpop.f32.mrf.mxu0
    %v1563 = vpop.f32.mrf.mxu0
    %v1564 = vadd.f32 0.0, %v1563
    %v1565 = vpop.f32.mrf.mxu0
    %1566 = vmatprep.mubr.bf16.mxu0 0
    %1567 = vmatmul.mubr.bf16.gmra.mxu0 %v1508
    %v1568 = vpop.f32.mrf.mxu0
    %v1569 = vadd.f32 0.0, %v1568
    %v1570 = vpop.f32.mrf.mxu0
    %v1571 = vpop.f32.mrf.mxu0
    %v1572 = vadd.f32 0.0, %v1571
    %v1573 = vpop.f32.mrf.mxu0
    %1574 = vdwg.mxu0
    %v1575 = vrcp.pop %v1460
    %v1576 = vrcp.pop %v1463
    %v1577 = vrcp.pop %v1466
    %v1578 = vrcp.pop %v1469
    %v1579 = vrcp.pop %v1472
    %v1580 = vrcp.pop %v1475
    %v1581 = vrcp.pop %v1478
    %v1582 = vrcp.pop %v1481
    %v1583 = vmul.f32 %v1545, %v1575
    %v1584 = vmul.f32 %v1548, %v1576
    %v1585 = vmul.f32 %v1553, %v1577
    %v1586 = vmul.f32 %v1556, %v1578
    %v1587 = vmul.f32 %v1561, %v1579
    %v1588 = vmul.f32 %v1564, %v1580
    %v1589 = vmul.f32 %v1569, %v1581
    %v1590 = vmul.f32 %v1572, %v1582
    %1591 = vrot.lane.b32.xlu0 %v687, 32
    %v1592 = vpop.permute.xlu0 %1591
    %1593 = vrot.lane.b32.xlu0 %v688, 32
    %v1594 = vpop.permute.xlu0 %1593
    %1595 = vrot.lane.b32.xlu0 %v689, 32
    %v1596 = vpop.permute.xlu0 %1595
    %1597 = vrot.lane.b32.xlu0 %v690, 32
    %v1598 = vpop.permute.xlu0 %1597
    %1599 = vrot.lane.b32.xlu0 %v691, 32
    %v1600 = vpop.permute.xlu0 %1599
    %1601 = vrot.lane.b32.xlu0 %v692, 32
    %v1602 = vpop.permute.xlu0 %1601
    %1603 = vrot.lane.b32.xlu0 %v693, 32
    %v1604 = vpop.permute.xlu0 %1603
    %1605 = vrot.lane.b32.xlu0 %v694, 32
    %v1606 = vpop.permute.xlu0 %1605
    %v1608 = vsel %vm699, %v1592, 0
    %v1611 = vsel %vm699, %v1594, 0
    %v1614 = vsel %vm699, %v1596, 0
    %v1617 = vsel %vm699, %v1598, 0
    %v1620 = vsel %vm699, %v1600, 0
    %v1623 = vsel %vm699, %v1602, 0
    %v1626 = vsel %vm699, %v1604, 0
    %v1629 = vsel %vm699, %v1606, 0
    %1631 = vmatprep.subr.bf16.mxu0 0
    %1632 = vmatpush1.bf16.xpose.msra.mxu0 0
    %1633 = vmatprep.subr.bf16.mxu0 0
    %1634 = vmatpush1.bf16.xpose.msra.mxu0 0
    %1635 = vmatprep.subr.bf16.mxu0 0
    %1636 = vmatpush1.bf16.xpose.msra.mxu0 0
    %1637 = vmatprep.subr.bf16.mxu0 0
    %1638 = vmatpush1.bf16.xpose.msra.mxu0 0
    %1639 = vmatprep.subr.bf16.mxu0 0
    %1640 = vmatpush1.bf16.xpose.msra.mxu0 %v1629
    %1641 = vmatprep.subr.bf16.mxu0 0
    %1642 = vmatpush1.bf16.xpose.msra.mxu0 %v1626
    %1643 = vmatprep.subr.bf16.mxu0 0
    %1644 = vmatpush1.bf16.xpose.msra.mxu0 %v1623
    %1645 = vmatprep.subr.bf16.mxu0 0
    %1646 = vmatpush1.bf16.xpose.msra.mxu0 %v1620
    %1647 = vmatprep.subr.bf16.mxu0 0
    %1648 = vmatpush2.bf16.xpose.msra.mxu0 0
    %1649 = vmatprep.subr.bf16.mxu0 0
    %1650 = vmatpush2.bf16.xpose.msra.mxu0 0
    %1651 = vmatprep.subr.bf16.mxu0 0
    %1652 = vmatpush2.bf16.xpose.msra.mxu0 0
    %1653 = vmatprep.subr.bf16.mxu0 0
    %1654 = vmatpush2.bf16.xpose.msra.mxu0 0
    %1655 = vmatprep.subr.bf16.mxu0 0
    %1656 = vmatpush2.bf16.xpose.msra.mxu0 0
    %1657 = vmatprep.subr.bf16.mxu0 0
    %1658 = vmatpush2.bf16.xpose.msra.mxu0 0
    %1659 = vmatprep.subr.bf16.mxu0 0
    %1660 = vmatpush2.bf16.xpose.msra.mxu0 0
    %1661 = vmatprep.subr.bf16.mxu0 0
    %1662 = vmatpush2.bf16.xpose.msra.mxu0 0
    %1663 = vmatprep.mubr.bf16.mxu0 0
    %1664 = vmatmul.mubr.bf16.gmra.mxu0 %v1608
    %v1665 = vpop.f32.mrf.mxu0
    %v1666 = vadd.f32 0.0, %v1665
    %v1667 = vpop.f32.mrf.mxu0
    %v1668 = vpop.f32.mrf.mxu0
    %v1669 = vadd.f32 0.0, %v1668
    %v1670 = vpop.f32.mrf.mxu0
    %1671 = vmatprep.mubr.bf16.mxu0 0
    %1672 = vmatmul.mubr.bf16.gmra.mxu0 %v1611
    %v1673 = vpop.f32.mrf.mxu0
    %v1674 = vadd.f32 0.0, %v1673
    %v1675 = vpop.f32.mrf.mxu0
    %v1676 = vpop.f32.mrf.mxu0
    %v1677 = vadd.f32 0.0, %v1676
    %v1678 = vpop.f32.mrf.mxu0
    %1679 = vmatprep.mubr.bf16.mxu0 0
    %1680 = vmatmul.mubr.bf16.gmra.mxu0 %v1614
    %v1681 = vpop.f32.mrf.mxu0
    %v1682 = vadd.f32 0.0, %v1681
    %v1683 = vpop.f32.mrf.mxu0
    %v1684 = vpop.f32.mrf.mxu0
    %v1685 = vadd.f32 0.0, %v1684
    %v1686 = vpop.f32.mrf.mxu0
    %1687 = vmatprep.mubr.bf16.mxu0 0
    %1688 = vmatmul.mubr.bf16.gmra.mxu0 %v1617
    %v1689 = vpop.f32.mrf.mxu0
    %v1690 = vadd.f32 0.0, %v1689
    %v1691 = vpop.f32.mrf.mxu0
    %v1692 = vpop.f32.mrf.mxu0
    %v1693 = vadd.f32 0.0, %v1692
    %v1694 = vpop.f32.mrf.mxu0
    %1695 = vdwg.mxu0
    %v1696 = vmul.f32 %v1666, 0.088388346
    %v1697 = vmul.f32 %v1669, 0.088388346
    %v1698 = vmul.f32 %v1674, 0.088388346
    %v1699 = vmul.f32 %v1677, 0.088388346
    %v1700 = vmul.f32 %v1682, 0.088388346
    %v1701 = vmul.f32 %v1685, 0.088388346
    %v1702 = vmul.f32 %v1690, 0.088388346
    %v1703 = vmul.f32 %v1693, 0.088388346
    %v1704 = vadd.f32 %v1696, %v679
    %v1705 = vadd.f32 %v1697, %v680
    %v1706 = vadd.f32 %v1698, %v681
    %v1707 = vadd.f32 %v1699, %v682
    %v1708 = vadd.f32 %v1700, %v683
    %v1709 = vadd.f32 %v1701, %v684
    %v1710 = vadd.f32 %v1702, %v685
    %v1711 = vadd.f32 %v1703, %v686
    %v1712 = vsel %vm805, %v1704, -inf
    %1713 = vmax.xlane.f32.xlu0 %v1712
    %v1714 = vpop.xlane.xlu0 %1713
    %v1715 = vsel %vm805, %v1705, -inf
    %1716 = vmax.xlane.f32.xlu0 %v1715
    %v1717 = vpop.xlane.xlu0 %1716
    %v1718 = vsel %vm805, %v1706, -inf
    %1719 = vmax.xlane.f32.xlu0 %v1718
    %v1720 = vpop.xlane.xlu0 %1719
    %v1721 = vsel %vm805, %v1707, -inf
    %1722 = vmax.xlane.f32.xlu0 %v1721
    %v1723 = vpop.xlane.xlu0 %1722
    %v1724 = vsel %vm805, %v1708, -inf
    %1725 = vmax.xlane.f32.xlu0 %v1724
    %v1726 = vpop.xlane.xlu0 %1725
    %v1727 = vsel %vm805, %v1709, -inf
    %1728 = vmax.xlane.f32.xlu0 %v1727
    %v1729 = vpop.xlane.xlu0 %1728
    %v1730 = vsel %vm805, %v1710, -inf
    %1731 = vmax.xlane.f32.xlu0 %v1730
    %v1732 = vpop.xlane.xlu0 %1731
    %v1733 = vsel %vm805, %v1711, -inf
    %1734 = vmax.xlane.f32.xlu0 %v1733
    %v1735 = vpop.xlane.xlu0 %1734
    %v1736 = vsub.f32 %v1704, %v1714
    %v1737 = vsub.f32 %v1705, %v1717
    %v1738 = vsub.f32 %v1706, %v1720
    %v1739 = vsub.f32 %v1707, %v1723
    %v1740 = vsub.f32 %v1708, %v1726
    %v1741 = vsub.f32 %v1709, %v1729
    %v1742 = vsub.f32 %v1710, %v1732
    %v1743 = vsub.f32 %v1711, %v1735
    %v1744 = vmul.f32 %v1736, 1.442695
    %v1745 = vpow.pop %v1744
    %v1746 = vmul.f32 %v1737, 1.442695
    %v1747 = vpow.pop %v1746
    %v1748 = vmul.f32 %v1738, 1.442695
    %v1749 = vpow.pop %v1748
    %v1750 = vmul.f32 %v1739, 1.442695
    %v1751 = vpow.pop %v1750
    %v1752 = vmul.f32 %v1740, 1.442695
    %v1753 = vpow.pop %v1752
    %v1754 = vmul.f32 %v1741, 1.442695
    %v1755 = vpow.pop %v1754
    %v1756 = vmul.f32 %v1742, 1.442695
    %v1757 = vpow.pop %v1756
    %v1758 = vmul.f32 %v1743, 1.442695
    %v1759 = vpow.pop %v1758
    %v1760 = vsel %vm805, %v1745, 0.0
    %1761 = vadd.xlane.f32.xlu0 %v1760
    %v1762 = vpop.xlane.xlu0 %1761
    %v1763 = vsel %vm805, %v1747, 0.0
    %1764 = vadd.xlane.f32.xlu0 %v1763
    %v1765 = vpop.xlane.xlu0 %1764
    %v1766 = vsel %vm805, %v1749, 0.0
    %1767 = vadd.xlane.f32.xlu0 %v1766
    %v1768 = vpop.xlane.xlu0 %1767
    %v1769 = vsel %vm805, %v1751, 0.0
    %1770 = vadd.xlane.f32.xlu0 %v1769
    %v1771 = vpop.xlane.xlu0 %1770
    %v1772 = vsel %vm805, %v1753, 0.0
    %1773 = vadd.xlane.f32.xlu0 %v1772
    %v1774 = vpop.xlane.xlu0 %1773
    %v1775 = vsel %vm805, %v1755, 0.0
    %1776 = vadd.xlane.f32.xlu0 %v1775
    %v1777 = vpop.xlane.xlu0 %1776
    %v1778 = vsel %vm805, %v1757, 0.0
    %1779 = vadd.xlane.f32.xlu0 %v1778
    %v1780 = vpop.xlane.xlu0 %1779
    %v1781 = vsel %vm805, %v1759, 0.0
    %1782 = vadd.xlane.f32.xlu0 %v1781
    %v1783 = vpop.xlane.xlu0 %1782
    %v1784 = vpack.c.bf16 %v1747, %v1745
    %v1785 = vpack.c.bf16 %v1751, %v1749
    %v1786 = vpack.c.bf16 %v1755, %v1753
    %v1787 = vpack.c.bf16 %v1759, %v1757
    %1788 = vrot.lane.b32.xlu0 %v695, 32
    %v1789 = vpop.permute.xlu0 %1788
    %1790 = vrot.lane.b32.xlu0 %v696, 32
    %v1791 = vpop.permute.xlu0 %1790
    %1792 = vrot.lane.b32.xlu0 %v697, 32
    %v1793 = vpop.permute.xlu0 %1792
    %1794 = vrot.lane.b32.xlu0 %v698, 32
    %v1795 = vpop.permute.xlu0 %1794
    %v1801 = vsel %vm805, %v1784, 0
    %v1804 = vsel %vm805, %v1785, 0
    %v1807 = vsel %vm805, %v1786, 0
    %v1810 = vsel %vm805, %v1787, 0
    %1812 = vmatprep.subr.bf16.mxu0 0
    %1813 = vmatpush1.bf16.msra.mxu0 0
    %1814 = vmatprep.subr.bf16.mxu0 0
    %1815 = vmatpush1.bf16.msra.mxu0 0
    %1816 = vmatprep.subr.bf16.mxu0 0
    %1817 = vmatpush1.bf16.msra.mxu0 0
    %1818 = vmatprep.subr.bf16.mxu0 0
    %1819 = vmatpush1.bf16.msra.mxu0 0
    %1820 = vmatprep.subr.bf16.mxu0 0
    %1821 = vmatpush1.bf16.msra.mxu0 %v1795
    %1822 = vmatprep.subr.bf16.mxu0 0
    %1823 = vmatpush1.bf16.msra.mxu0 %v1793
    %1824 = vmatprep.subr.bf16.mxu0 0
    %1825 = vmatpush1.bf16.msra.mxu0 %v1791
    %1826 = vmatprep.subr.bf16.mxu0 0
    %1827 = vmatpush1.bf16.msra.mxu0 %v1789
    %1828 = vmatprep.subr.bf16.mxu0 0
    %1829 = vmatpush2.bf16.msra.mxu0 0
    %1830 = vmatprep.subr.bf16.mxu0 0
    %1831 = vmatpush2.bf16.msra.mxu0 0
    %1832 = vmatprep.subr.bf16.mxu0 0
    %1833 = vmatpush2.bf16.msra.mxu0 0
    %1834 = vmatprep.subr.bf16.mxu0 0
    %1835 = vmatpush2.bf16.msra.mxu0 0
    %1836 = vmatprep.subr.bf16.mxu0 0
    %1837 = vmatpush2.bf16.msra.mxu0 0
    %1838 = vmatprep.subr.bf16.mxu0 0
    %1839 = vmatpush2.bf16.msra.mxu0 0
    %1840 = vmatprep.subr.bf16.mxu0 0
    %1841 = vmatpush2.bf16.msra.mxu0 0
    %1842 = vmatprep.subr.bf16.mxu0 0
    %1843 = vmatpush2.bf16.msra.mxu0 0
    %1844 = vmatprep.mubr.bf16.mxu0 0
    %1845 = vmatmul.mubr.bf16.gmra.mxu0 %v1801
    %v1846 = vpop.f32.mrf.mxu0
    %v1847 = vadd.f32 0.0, %v1846
    %v1848 = vpop.f32.mrf.mxu0
    %v1849 = vpop.f32.mrf.mxu0
    %v1850 = vadd.f32 0.0, %v1849
    %v1851 = vpop.f32.mrf.mxu0
    %1852 = vmatprep.mubr.bf16.mxu0 0
    %1853 = vmatmul.mubr.bf16.gmra.mxu0 %v1804
    %v1854 = vpop.f32.mrf.mxu0
    %v1855 = vadd.f32 0.0, %v1854
    %v1856 = vpop.f32.mrf.mxu0
    %v1857 = vpop.f32.mrf.mxu0
    %v1858 = vadd.f32 0.0, %v1857
    %v1859 = vpop.f32.mrf.mxu0
    %1860 = vmatprep.mubr.bf16.mxu0 0
    %1861 = vmatmul.mubr.bf16.gmra.mxu0 %v1807
    %v1862 = vpop.f32.mrf.mxu0
    %v1863 = vadd.f32 0.0, %v1862
    %v1864 = vpop.f32.mrf.mxu0
    %v1865 = vpop.f32.mrf.mxu0
    %v1866 = vadd.f32 0.0, %v1865
    %v1867 = vpop.f32.mrf.mxu0
    %1868 = vmatprep.mubr.bf16.mxu0 0
    %1869 = vmatmul.mubr.bf16.gmra.mxu0 %v1810
    %v1870 = vpop.f32.mrf.mxu0
    %v1871 = vadd.f32 0.0, %v1870
    %v1872 = vpop.f32.mrf.mxu0
    %v1873 = vpop.f32.mrf.mxu0
    %v1874 = vadd.f32 0.0, %v1873
    %v1875 = vpop.f32.mrf.mxu0
    %1876 = vdwg.mxu0
    %v1877 = vrcp.pop %v1762
    %v1878 = vrcp.pop %v1765
    %v1879 = vrcp.pop %v1768
    %v1880 = vrcp.pop %v1771
    %v1881 = vrcp.pop %v1774
    %v1882 = vrcp.pop %v1777
    %v1883 = vrcp.pop %v1780
    %v1884 = vrcp.pop %v1783
    %v1885 = vmul.f32 %v1847, %v1877
    %v1886 = vmul.f32 %v1850, %v1878
    %v1887 = vmul.f32 %v1855, %v1879
    %v1888 = vmul.f32 %v1858, %v1880
    %v1889 = vmul.f32 %v1863, %v1881
    %v1890 = vmul.f32 %v1866, %v1882
    %v1891 = vmul.f32 %v1871, %v1883
    %v1892 = vmul.f32 %v1874, %v1884
    %1901 = vrot.lane.b32.xlu0 %v1281, 32
    %v1902 = vpop.permute.xlu0 %1901
    %1903 = vrot.lane.b32.xlu0 %v1282, 32
    %v1904 = vpop.permute.xlu0 %1903
    %1905 = vrot.lane.b32.xlu0 %v1283, 32
    %v1906 = vpop.permute.xlu0 %1905
    %1907 = vrot.lane.b32.xlu0 %v1284, 32
    %v1908 = vpop.permute.xlu0 %1907
    %1909 = vrot.lane.b32.xlu0 %v1285, 32
    %v1910 = vpop.permute.xlu0 %1909
    %1911 = vrot.lane.b32.xlu0 %v1286, 32
    %v1912 = vpop.permute.xlu0 %1911
    %1913 = vrot.lane.b32.xlu0 %v1287, 32
    %v1914 = vpop.permute.xlu0 %1913
    %1915 = vrot.lane.b32.xlu0 %v1288, 32
    %v1916 = vpop.permute.xlu0 %1915
    %1933 = vrot.lane.b32.xlu0 %v1583, 64
    %v1934 = vpop.permute.xlu0 %1933
    %1935 = vrot.lane.b32.xlu0 %v1584, 64
    %v1936 = vpop.permute.xlu0 %1935
    %1937 = vrot.lane.b32.xlu0 %v1585, 64
    %v1938 = vpop.permute.xlu0 %1937
    %1939 = vrot.lane.b32.xlu0 %v1586, 64
    %v1940 = vpop.permute.xlu0 %1939
    %1941 = vrot.lane.b32.xlu0 %v1587, 64
    %v1942 = vpop.permute.xlu0 %1941
    %1943 = vrot.lane.b32.xlu0 %v1588, 64
    %v1944 = vpop.permute.xlu0 %1943
    %1945 = vrot.lane.b32.xlu0 %v1589, 64
    %v1946 = vpop.permute.xlu0 %1945
    %1947 = vrot.lane.b32.xlu0 %v1590, 64
    %v1948 = vpop.permute.xlu0 %1947
    %1965 = vrot.lane.b32.xlu0 %v1885, 96
    %v1966 = vpop.permute.xlu0 %1965
    %1967 = vrot.lane.b32.xlu0 %v1886, 96
    %v1968 = vpop.permute.xlu0 %1967
    %1969 = vrot.lane.b32.xlu0 %v1887, 96
    %v1970 = vpop.permute.xlu0 %1969
    %1971 = vrot.lane.b32.xlu0 %v1888, 96
    %v1972 = vpop.permute.xlu0 %1971
    %1973 = vrot.lane.b32.xlu0 %v1889, 96
    %v1974 = vpop.permute.xlu0 %1973
    %1975 = vrot.lane.b32.xlu0 %v1890, 96
    %v1976 = vpop.permute.xlu0 %1975
    %1977 = vrot.lane.b32.xlu0 %v1891, 96
    %v1978 = vpop.permute.xlu0 %1977
    %1979 = vrot.lane.b32.xlu0 %v1892, 96
    %v1980 = vpop.permute.xlu0 %1979
    %v1989 = vsel %vm699, %v967, %v1902
    %v1990 = vsel %vm699, %v968, %v1904
    %v1991 = vsel %vm699, %v969, %v1906
    %v1992 = vsel %vm699, %v970, %v1908
    %v1993 = vsel %vm699, %v971, %v1910
    %v1994 = vsel %vm699, %v972, %v1912
    %v1995 = vsel %vm699, %v973, %v1914
    %v1996 = vsel %vm699, %v974, %v1916
    %v1997 = vsel %vm805, %v1989, %v1934
    %v1998 = vsel %vm805, %v1990, %v1936
    %v1999 = vsel %vm805, %v1991, %v1938
    %v2000 = vsel %vm805, %v1992, %v1940
    %v2001 = vsel %vm805, %v1993, %v1942
    %v2002 = vsel %vm805, %v1994, %v1944
    %v2003 = vsel %vm805, %v1995, %v1946
    %v2004 = vsel %vm805, %v1996, %v1948
    %vm2005 = vcmask 785408
    %v2006 = vsel %vm2005, %v1997, %v1966
    %v2007 = vsel %vm2005, %v1998, %v1968
    %v2008 = vsel %vm2005, %v1999, %v1970
    %v2009 = vsel %vm2005, %v2000, %v1972
    %v2010 = vsel %vm2005, %v2001, %v1974
    %v2011 = vsel %vm2005, %v2002, %v1976
    %v2012 = vsel %vm2005, %v2003, %v1978
    %v2013 = vsel %vm2005, %v2004, %v1980
    %v2014 = vpack.c.bf16 %v529, %v525
    %v2015 = vpack.c.bf16 %v539, %v535
    %v2016 = vpack.c.bf16 %v549, %v545
    %v2017 = vpack.c.bf16 %v559, %v555
    %v2018 = vpack.c.bf16 %v531, %v527
    %v2019 = vpack.c.bf16 %v541, %v537
    %v2020 = vpack.c.bf16 %v551, %v547
    %v2021 = vpack.c.bf16 %v561, %v557
    %v2022 = vpack.c.bf16 %v633, %v630
    %v2023 = vpack.c.bf16 %v641, %v638
    %v2024 = vpack.c.bf16 %v649, %v646
    %v2025 = vpack.c.bf16 %v657, %v654
    %v2027 = vsel %vm699, %v2014, 0
    %v2030 = vsel %vm699, %v2015, 0
    %v2033 = vsel %vm699, %v2016, 0
    %v2036 = vsel %vm699, %v2017, 0
    %v2039 = vsel %vm699, %v2018, 0
    %v2042 = vsel %vm699, %v2019, 0
    %v2045 = vsel %vm699, %v2020, 0
    %v2048 = vsel %vm699, %v2021, 0
    %2050 = vmatprep.subr.bf16.mxu0 0
    %2051 = vmatpush1.bf16.xpose.msra.mxu0 0
    %2052 = vmatprep.subr.bf16.mxu0 0
    %2053 = vmatpush1.bf16.xpose.msra.mxu0 0
    %2054 = vmatprep.subr.bf16.mxu0 0
    %2055 = vmatpush1.bf16.xpose.msra.mxu0 0
    %2056 = vmatprep.subr.bf16.mxu0 0
    %2057 = vmatpush1.bf16.xpose.msra.mxu0 0
    %2058 = vmatprep.subr.bf16.mxu0 0
    %2059 = vmatpush1.bf16.xpose.msra.mxu0 %v2048
    %2060 = vmatprep.subr.bf16.mxu0 0
    %2061 = vmatpush1.bf16.xpose.msra.mxu0 %v2045
    %2062 = vmatprep.subr.bf16.mxu0 0
    %2063 = vmatpush1.bf16.xpose.msra.mxu0 %v2042
    %2064 = vmatprep.subr.bf16.mxu0 0
    %2065 = vmatpush1.bf16.xpose.msra.mxu0 %v2039
    %2066 = vmatprep.subr.bf16.mxu0 0
    %2067 = vmatpush2.bf16.xpose.msra.mxu0 0
    %2068 = vmatprep.subr.bf16.mxu0 0
    %2069 = vmatpush2.bf16.xpose.msra.mxu0 0
    %2070 = vmatprep.subr.bf16.mxu0 0
    %2071 = vmatpush2.bf16.xpose.msra.mxu0 0
    %2072 = vmatprep.subr.bf16.mxu0 0
    %2073 = vmatpush2.bf16.xpose.msra.mxu0 0
    %2074 = vmatprep.subr.bf16.mxu0 0
    %2075 = vmatpush2.bf16.xpose.msra.mxu0 0
    %2076 = vmatprep.subr.bf16.mxu0 0
    %2077 = vmatpush2.bf16.xpose.msra.mxu0 0
    %2078 = vmatprep.subr.bf16.mxu0 0
    %2079 = vmatpush2.bf16.xpose.msra.mxu0 0
    %2080 = vmatprep.subr.bf16.mxu0 0
    %2081 = vmatpush2.bf16.xpose.msra.mxu0 0
    %2082 = vmatprep.mubr.bf16.mxu0 0
    %2083 = vmatmul.mubr.bf16.gmra.mxu0 %v2027
    %v2084 = vpop.f32.mrf.mxu0
    %v2085 = vadd.f32 0.0, %v2084
    %v2086 = vpop.f32.mrf.mxu0
    %v2087 = vpop.f32.mrf.mxu0
    %v2088 = vadd.f32 0.0, %v2087
    %v2089 = vpop.f32.mrf.mxu0
    %2090 = vmatprep.mubr.bf16.mxu0 0
    %2091 = vmatmul.mubr.bf16.gmra.mxu0 %v2030
    %v2092 = vpop.f32.mrf.mxu0
    %v2093 = vadd.f32 0.0, %v2092
    %v2094 = vpop.f32.mrf.mxu0
    %v2095 = vpop.f32.mrf.mxu0
    %v2096 = vadd.f32 0.0, %v2095
    %v2097 = vpop.f32.mrf.mxu0
    %2098 = vmatprep.mubr.bf16.mxu0 0
    %2099 = vmatmul.mubr.bf16.gmra.mxu0 %v2033
    %v2100 = vpop.f32.mrf.mxu0
    %v2101 = vadd.f32 0.0, %v2100
    %v2102 = vpop.f32.mrf.mxu0
    %v2103 = vpop.f32.mrf.mxu0
    %v2104 = vadd.f32 0.0, %v2103
    %v2105 = vpop.f32.mrf.mxu0
    %2106 = vmatprep.mubr.bf16.mxu0 0
    %2107 = vmatmul.mubr.bf16.gmra.mxu0 %v2036
    %v2108 = vpop.f32.mrf.mxu0
    %v2109 = vadd.f32 0.0, %v2108
    %v2110 = vpop.f32.mrf.mxu0
    %v2111 = vpop.f32.mrf.mxu0
    %v2112 = vadd.f32 0.0, %v2111
    %v2113 = vpop.f32.mrf.mxu0
    %2114 = vdwg.mxu0
    %v2115 = vmul.f32 %v2085, 0.088388346
    %v2116 = vmul.f32 %v2088, 0.088388346
    %v2117 = vmul.f32 %v2093, 0.088388346
    %v2118 = vmul.f32 %v2096, 0.088388346
    %v2119 = vmul.f32 %v2101, 0.088388346
    %v2120 = vmul.f32 %v2104, 0.088388346
    %v2121 = vmul.f32 %v2109, 0.088388346
    %v2122 = vmul.f32 %v2112, 0.088388346
    %v2123 = vadd.f32 %v2115, %v679
    %v2124 = vadd.f32 %v2116, %v680
    %v2125 = vadd.f32 %v2117, %v681
    %v2126 = vadd.f32 %v2118, %v682
    %v2127 = vadd.f32 %v2119, %v683
    %v2128 = vadd.f32 %v2120, %v684
    %v2129 = vadd.f32 %v2121, %v685
    %v2130 = vadd.f32 %v2122, %v686
    %v2131 = vsel %vm805, %v2123, -inf
    %2132 = vmax.xlane.f32.xlu0 %v2131
    %v2133 = vpop.xlane.xlu0 %2132
    %v2134 = vsel %vm805, %v2124, -inf
    %2135 = vmax.xlane.f32.xlu0 %v2134
    %v2136 = vpop.xlane.xlu0 %2135
    %v2137 = vsel %vm805, %v2125, -inf
    %2138 = vmax.xlane.f32.xlu0 %v2137
    %v2139 = vpop.xlane.xlu0 %2138
    %v2140 = vsel %vm805, %v2126, -inf
    %2141 = vmax.xlane.f32.xlu0 %v2140
    %v2142 = vpop.xlane.xlu0 %2141
    %v2143 = vsel %vm805, %v2127, -inf
    %2144 = vmax.xlane.f32.xlu0 %v2143
    %v2145 = vpop.xlane.xlu0 %2144
    %v2146 = vsel %vm805, %v2128, -inf
    %2147 = vmax.xlane.f32.xlu0 %v2146
    %v2148 = vpop.xlane.xlu0 %2147
    %v2149 = vsel %vm805, %v2129, -inf
    %2150 = vmax.xlane.f32.xlu0 %v2149
    %v2151 = vpop.xlane.xlu0 %2150
    %v2152 = vsel %vm805, %v2130, -inf
    %2153 = vmax.xlane.f32.xlu0 %v2152
    %v2154 = vpop.xlane.xlu0 %2153
    %v2155 = vsub.f32 %v2123, %v2133
    %v2156 = vsub.f32 %v2124, %v2136
    %v2157 = vsub.f32 %v2125, %v2139
    %v2158 = vsub.f32 %v2126, %v2142
    %v2159 = vsub.f32 %v2127, %v2145
    %v2160 = vsub.f32 %v2128, %v2148
    %v2161 = vsub.f32 %v2129, %v2151
    %v2162 = vsub.f32 %v2130, %v2154
    %v2163 = vmul.f32 %v2155, 1.442695
    %v2164 = vpow.pop %v2163
    %v2165 = vmul.f32 %v2156, 1.442695
    %v2166 = vpow.pop %v2165
    %v2167 = vmul.f32 %v2157, 1.442695
    %v2168 = vpow.pop %v2167
    %v2169 = vmul.f32 %v2158, 1.442695
    %v2170 = vpow.pop %v2169
    %v2171 = vmul.f32 %v2159, 1.442695
    %v2172 = vpow.pop %v2171
    %v2173 = vmul.f32 %v2160, 1.442695
    %v2174 = vpow.pop %v2173
    %v2175 = vmul.f32 %v2161, 1.442695
    %v2176 = vpow.pop %v2175
    %v2177 = vmul.f32 %v2162, 1.442695
    %v2178 = vpow.pop %v2177
    %v2179 = vsel %vm805, %v2164, 0.0
    %2180 = vadd.xlane.f32.xlu0 %v2179
    %v2181 = vpop.xlane.xlu0 %2180
    %v2182 = vsel %vm805, %v2166, 0.0
    %2183 = vadd.xlane.f32.xlu0 %v2182
    %v2184 = vpop.xlane.xlu0 %2183
    %v2185 = vsel %vm805, %v2168, 0.0
    %2186 = vadd.xlane.f32.xlu0 %v2185
    %v2187 = vpop.xlane.xlu0 %2186
    %v2188 = vsel %vm805, %v2170, 0.0
    %2189 = vadd.xlane.f32.xlu0 %v2188
    %v2190 = vpop.xlane.xlu0 %2189
    %v2191 = vsel %vm805, %v2172, 0.0
    %2192 = vadd.xlane.f32.xlu0 %v2191
    %v2193 = vpop.xlane.xlu0 %2192
    %v2194 = vsel %vm805, %v2174, 0.0
    %2195 = vadd.xlane.f32.xlu0 %v2194
    %v2196 = vpop.xlane.xlu0 %2195
    %v2197 = vsel %vm805, %v2176, 0.0
    %2198 = vadd.xlane.f32.xlu0 %v2197
    %v2199 = vpop.xlane.xlu0 %2198
    %v2200 = vsel %vm805, %v2178, 0.0
    %2201 = vadd.xlane.f32.xlu0 %v2200
    %v2202 = vpop.xlane.xlu0 %2201
    %v2203 = vpack.c.bf16 %v2166, %v2164
    %v2204 = vpack.c.bf16 %v2170, %v2168
    %v2205 = vpack.c.bf16 %v2174, %v2172
    %v2206 = vpack.c.bf16 %v2178, %v2176
    %v2208 = vsel %vm805, %v2203, 0
    %v2211 = vsel %vm805, %v2204, 0
    %v2214 = vsel %vm805, %v2205, 0
    %v2217 = vsel %vm805, %v2206, 0
    %2219 = vmatprep.subr.bf16.mxu0 0
    %2220 = vmatpush1.bf16.msra.mxu0 0
    %2221 = vmatprep.subr.bf16.mxu0 0
    %2222 = vmatpush1.bf16.msra.mxu0 0
    %2223 = vmatprep.subr.bf16.mxu0 0
    %2224 = vmatpush1.bf16.msra.mxu0 0
    %2225 = vmatprep.subr.bf16.mxu0 0
    %2226 = vmatpush1.bf16.msra.mxu0 0
    %2227 = vmatprep.subr.bf16.mxu0 0
    %2228 = vmatpush1.bf16.msra.mxu0 %v2025
    %2229 = vmatprep.subr.bf16.mxu0 0
    %2230 = vmatpush1.bf16.msra.mxu0 %v2024
    %2231 = vmatprep.subr.bf16.mxu0 0
    %2232 = vmatpush1.bf16.msra.mxu0 %v2023
    %2233 = vmatprep.subr.bf16.mxu0 0
    %2234 = vmatpush1.bf16.msra.mxu0 %v2022
    %2235 = vmatprep.subr.bf16.mxu0 0
    %2236 = vmatpush2.bf16.msra.mxu0 0
    %2237 = vmatprep.subr.bf16.mxu0 0
    %2238 = vmatpush2.bf16.msra.mxu0 0
    %2239 = vmatprep.subr.bf16.mxu0 0
    %2240 = vmatpush2.bf16.msra.mxu0 0
    %2241 = vmatprep.subr.bf16.mxu0 0
    %2242 = vmatpush2.bf16.msra.mxu0 0
    %2243 = vmatprep.subr.bf16.mxu0 0
    %2244 = vmatpush2.bf16.msra.mxu0 0
    %2245 = vmatprep.subr.bf16.mxu0 0
    %2246 = vmatpush2.bf16.msra.mxu0 0
    %2247 = vmatprep.subr.bf16.mxu0 0
    %2248 = vmatpush2.bf16.msra.mxu0 0
    %2249 = vmatprep.subr.bf16.mxu0 0
    %2250 = vmatpush2.bf16.msra.mxu0 0
    %2251 = vmatprep.mubr.bf16.mxu0 0
    %2252 = vmatmul.mubr.bf16.gmra.mxu0 %v2208
    %v2253 = vpop.f32.mrf.mxu0
    %v2254 = vadd.f32 0.0, %v2253
    %v2255 = vpop.f32.mrf.mxu0
    %v2256 = vpop.f32.mrf.mxu0
    %v2257 = vadd.f32 0.0, %v2256
    %v2258 = vpop.f32.mrf.mxu0
    %2259 = vmatprep.mubr.bf16.mxu0 0
    %2260 = vmatmul.mubr.bf16.gmra.mxu0 %v2211
    %v2261 = vpop.f32.mrf.mxu0
    %v2262 = vadd.f32 0.0, %v2261
    %v2263 = vpop.f32.mrf.mxu0
    %v2264 = vpop.f32.mrf.mxu0
    %v2265 = vadd.f32 0.0, %v2264
    %v2266 = vpop.f32.mrf.mxu0
    %2267 = vmatprep.mubr.bf16.mxu0 0
    %2268 = vmatmul.mubr.bf16.gmra.mxu0 %v2214
    %v2269 = vpop.f32.mrf.mxu0
    %v2270 = vadd.f32 0.0, %v2269
    %v2271 = vpop.f32.mrf.mxu0
    %v2272 = vpop.f32.mrf.mxu0
    %v2273 = vadd.f32 0.0, %v2272
    %v2274 = vpop.f32.mrf.mxu0
    %2275 = vmatprep.mubr.bf16.mxu0 0
    %2276 = vmatmul.mubr.bf16.gmra.mxu0 %v2217
    %v2277 = vpop.f32.mrf.mxu0
    %v2278 = vadd.f32 0.0, %v2277
    %v2279 = vpop.f32.mrf.mxu0
    %v2280 = vpop.f32.mrf.mxu0
    %v2281 = vadd.f32 0.0, %v2280
    %v2282 = vpop.f32.mrf.mxu0
    %2283 = vdwg.mxu0
    %v2284 = vrcp.pop %v2181
    %v2285 = vrcp.pop %v2184
    %v2286 = vrcp.pop %v2187
    %v2287 = vrcp.pop %v2190
    %v2288 = vrcp.pop %v2193
    %v2289 = vrcp.pop %v2196
    %v2290 = vrcp.pop %v2199
    %v2291 = vrcp.pop %v2202
    %v2292 = vmul.f32 %v2254, %v2284
    %v2293 = vmul.f32 %v2257, %v2285
    %v2294 = vmul.f32 %v2262, %v2286
    %v2295 = vmul.f32 %v2265, %v2287
    %v2296 = vmul.f32 %v2270, %v2288
    %v2297 = vmul.f32 %v2273, %v2289
    %v2298 = vmul.f32 %v2278, %v2290
    %v2299 = vmul.f32 %v2281, %v2291
    %2304 = vrot.lane.b32.xlu0 %v2014, 96
    %v2305 = vpop.permute.xlu0 %2304
    %2306 = vrot.lane.b32.xlu0 %v2015, 96
    %v2307 = vpop.permute.xlu0 %2306
    %2308 = vrot.lane.b32.xlu0 %v2016, 96
    %v2309 = vpop.permute.xlu0 %2308
    %2310 = vrot.lane.b32.xlu0 %v2017, 96
    %v2311 = vpop.permute.xlu0 %2310
    %2316 = vrot.lane.b32.xlu0 %v2018, 96
    %v2317 = vpop.permute.xlu0 %2316
    %2318 = vrot.lane.b32.xlu0 %v2019, 96
    %v2319 = vpop.permute.xlu0 %2318
    %2320 = vrot.lane.b32.xlu0 %v2020, 96
    %v2321 = vpop.permute.xlu0 %2320
    %2322 = vrot.lane.b32.xlu0 %v2021, 96
    %v2323 = vpop.permute.xlu0 %2322
    %v2325 = vsel %vm699, %v2305, 0
    %v2328 = vsel %vm699, %v2307, 0
    %v2331 = vsel %vm699, %v2309, 0
    %v2334 = vsel %vm699, %v2311, 0
    %v2337 = vsel %vm699, %v2317, 0
    %v2340 = vsel %vm699, %v2319, 0
    %v2343 = vsel %vm699, %v2321, 0
    %v2346 = vsel %vm699, %v2323, 0
    %2348 = vmatprep.subr.bf16.mxu0 0
    %2349 = vmatpush1.bf16.xpose.msra.mxu0 0
    %2350 = vmatprep.subr.bf16.mxu0 0
    %2351 = vmatpush1.bf16.xpose.msra.mxu0 0
    %2352 = vmatprep.subr.bf16.mxu0 0
    %2353 = vmatpush1.bf16.xpose.msra.mxu0 0
    %2354 = vmatprep.subr.bf16.mxu0 0
    %2355 = vmatpush1.bf16.xpose.msra.mxu0 0
    %2356 = vmatprep.subr.bf16.mxu0 0
    %2357 = vmatpush1.bf16.xpose.msra.mxu0 %v2346
    %2358 = vmatprep.subr.bf16.mxu0 0
    %2359 = vmatpush1.bf16.xpose.msra.mxu0 %v2343
    %2360 = vmatprep.subr.bf16.mxu0 0
    %2361 = vmatpush1.bf16.xpose.msra.mxu0 %v2340
    %2362 = vmatprep.subr.bf16.mxu0 0
    %2363 = vmatpush1.bf16.xpose.msra.mxu0 %v2337
    %2364 = vmatprep.subr.bf16.mxu0 0
    %2365 = vmatpush2.bf16.xpose.msra.mxu0 0
    %2366 = vmatprep.subr.bf16.mxu0 0
    %2367 = vmatpush2.bf16.xpose.msra.mxu0 0
    %2368 = vmatprep.subr.bf16.mxu0 0
    %2369 = vmatpush2.bf16.xpose.msra.mxu0 0
    %2370 = vmatprep.subr.bf16.mxu0 0
    %2371 = vmatpush2.bf16.xpose.msra.mxu0 0
    %2372 = vmatprep.subr.bf16.mxu0 0
    %2373 = vmatpush2.bf16.xpose.msra.mxu0 0
    %2374 = vmatprep.subr.bf16.mxu0 0
    %2375 = vmatpush2.bf16.xpose.msra.mxu0 0
    %2376 = vmatprep.subr.bf16.mxu0 0
    %2377 = vmatpush2.bf16.xpose.msra.mxu0 0
    %2378 = vmatprep.subr.bf16.mxu0 0
    %2379 = vmatpush2.bf16.xpose.msra.mxu0 0
    %2380 = vmatprep.mubr.bf16.mxu0 0
    %2381 = vmatmul.mubr.bf16.gmra.mxu0 %v2325
    %v2382 = vpop.f32.mrf.mxu0
    %v2383 = vadd.f32 0.0, %v2382
    %v2384 = vpop.f32.mrf.mxu0
    %v2385 = vpop.f32.mrf.mxu0
    %v2386 = vadd.f32 0.0, %v2385
    %v2387 = vpop.f32.mrf.mxu0
    %2388 = vmatprep.mubr.bf16.mxu0 0
    %2389 = vmatmul.mubr.bf16.gmra.mxu0 %v2328
    %v2390 = vpop.f32.mrf.mxu0
    %v2391 = vadd.f32 0.0, %v2390
    %v2392 = vpop.f32.mrf.mxu0
    %v2393 = vpop.f32.mrf.mxu0
    %v2394 = vadd.f32 0.0, %v2393
    %v2395 = vpop.f32.mrf.mxu0
    %2396 = vmatprep.mubr.bf16.mxu0 0
    %2397 = vmatmul.mubr.bf16.gmra.mxu0 %v2331
    %v2398 = vpop.f32.mrf.mxu0
    %v2399 = vadd.f32 0.0, %v2398
    %v2400 = vpop.f32.mrf.mxu0
    %v2401 = vpop.f32.mrf.mxu0
    %v2402 = vadd.f32 0.0, %v2401
    %v2403 = vpop.f32.mrf.mxu0
    %2404 = vmatprep.mubr.bf16.mxu0 0
    %2405 = vmatmul.mubr.bf16.gmra.mxu0 %v2334
    %v2406 = vpop.f32.mrf.mxu0
    %v2407 = vadd.f32 0.0, %v2406
    %v2408 = vpop.f32.mrf.mxu0
    %v2409 = vpop.f32.mrf.mxu0
    %v2410 = vadd.f32 0.0, %v2409
    %v2411 = vpop.f32.mrf.mxu0
    %2412 = vdwg.mxu0
    %v2413 = vmul.f32 %v2383, 0.088388346
    %v2414 = vmul.f32 %v2386, 0.088388346
    %v2415 = vmul.f32 %v2391, 0.088388346
    %v2416 = vmul.f32 %v2394, 0.088388346
    %v2417 = vmul.f32 %v2399, 0.088388346
    %v2418 = vmul.f32 %v2402, 0.088388346
    %v2419 = vmul.f32 %v2407, 0.088388346
    %v2420 = vmul.f32 %v2410, 0.088388346
    %v2421 = vadd.f32 %v2413, %v679
    %v2422 = vadd.f32 %v2414, %v680
    %v2423 = vadd.f32 %v2415, %v681
    %v2424 = vadd.f32 %v2416, %v682
    %v2425 = vadd.f32 %v2417, %v683
    %v2426 = vadd.f32 %v2418, %v684
    %v2427 = vadd.f32 %v2419, %v685
    %v2428 = vadd.f32 %v2420, %v686
    %v2429 = vsel %vm805, %v2421, -inf
    %2430 = vmax.xlane.f32.xlu0 %v2429
    %v2431 = vpop.xlane.xlu0 %2430
    %v2432 = vsel %vm805, %v2422, -inf
    %2433 = vmax.xlane.f32.xlu0 %v2432
    %v2434 = vpop.xlane.xlu0 %2433
    %v2435 = vsel %vm805, %v2423, -inf
    %2436 = vmax.xlane.f32.xlu0 %v2435
    %v2437 = vpop.xlane.xlu0 %2436
    %v2438 = vsel %vm805, %v2424, -inf
    %2439 = vmax.xlane.f32.xlu0 %v2438
    %v2440 = vpop.xlane.xlu0 %2439
    %v2441 = vsel %vm805, %v2425, -inf
    %2442 = vmax.xlane.f32.xlu0 %v2441
    %v2443 = vpop.xlane.xlu0 %2442
    %v2444 = vsel %vm805, %v2426, -inf
    %2445 = vmax.xlane.f32.xlu0 %v2444
    %v2446 = vpop.xlane.xlu0 %2445
    %v2447 = vsel %vm805, %v2427, -inf
    %2448 = vmax.xlane.f32.xlu0 %v2447
    %v2449 = vpop.xlane.xlu0 %2448
    %v2450 = vsel %vm805, %v2428, -inf
    %2451 = vmax.xlane.f32.xlu0 %v2450
    %v2452 = vpop.xlane.xlu0 %2451
    %v2453 = vsub.f32 %v2421, %v2431
    %v2454 = vsub.f32 %v2422, %v2434
    %v2455 = vsub.f32 %v2423, %v2437
    %v2456 = vsub.f32 %v2424, %v2440
    %v2457 = vsub.f32 %v2425, %v2443
    %v2458 = vsub.f32 %v2426, %v2446
    %v2459 = vsub.f32 %v2427, %v2449
    %v2460 = vsub.f32 %v2428, %v2452
    %v2461 = vmul.f32 %v2453, 1.442695
    %v2462 = vpow.pop %v2461
    %v2463 = vmul.f32 %v2454, 1.442695
    %v2464 = vpow.pop %v2463
    %v2465 = vmul.f32 %v2455, 1.442695
    %v2466 = vpow.pop %v2465
    %v2467 = vmul.f32 %v2456, 1.442695
    %v2468 = vpow.pop %v2467
    %v2469 = vmul.f32 %v2457, 1.442695
    %v2470 = vpow.pop %v2469
    %v2471 = vmul.f32 %v2458, 1.442695
    %v2472 = vpow.pop %v2471
    %v2473 = vmul.f32 %v2459, 1.442695
    %v2474 = vpow.pop %v2473
    %v2475 = vmul.f32 %v2460, 1.442695
    %v2476 = vpow.pop %v2475
    %v2477 = vsel %vm805, %v2462, 0.0
    %2478 = vadd.xlane.f32.xlu0 %v2477
    %v2479 = vpop.xlane.xlu0 %2478
    %v2480 = vsel %vm805, %v2464, 0.0
    %2481 = vadd.xlane.f32.xlu0 %v2480
    %v2482 = vpop.xlane.xlu0 %2481
    %v2483 = vsel %vm805, %v2466, 0.0
    %2484 = vadd.xlane.f32.xlu0 %v2483
    %v2485 = vpop.xlane.xlu0 %2484
    %v2486 = vsel %vm805, %v2468, 0.0
    %2487 = vadd.xlane.f32.xlu0 %v2486
    %v2488 = vpop.xlane.xlu0 %2487
    %v2489 = vsel %vm805, %v2470, 0.0
    %2490 = vadd.xlane.f32.xlu0 %v2489
    %v2491 = vpop.xlane.xlu0 %2490
    %v2492 = vsel %vm805, %v2472, 0.0
    %2493 = vadd.xlane.f32.xlu0 %v2492
    %v2494 = vpop.xlane.xlu0 %2493
    %v2495 = vsel %vm805, %v2474, 0.0
    %2496 = vadd.xlane.f32.xlu0 %v2495
    %v2497 = vpop.xlane.xlu0 %2496
    %v2498 = vsel %vm805, %v2476, 0.0
    %2499 = vadd.xlane.f32.xlu0 %v2498
    %v2500 = vpop.xlane.xlu0 %2499
    %v2501 = vpack.c.bf16 %v2464, %v2462
    %v2502 = vpack.c.bf16 %v2468, %v2466
    %v2503 = vpack.c.bf16 %v2472, %v2470
    %v2504 = vpack.c.bf16 %v2476, %v2474
    %2509 = vrot.lane.b32.xlu0 %v2022, 96
    %v2510 = vpop.permute.xlu0 %2509
    %2511 = vrot.lane.b32.xlu0 %v2023, 96
    %v2512 = vpop.permute.xlu0 %2511
    %2513 = vrot.lane.b32.xlu0 %v2024, 96
    %v2514 = vpop.permute.xlu0 %2513
    %2515 = vrot.lane.b32.xlu0 %v2025, 96
    %v2516 = vpop.permute.xlu0 %2515
    %v2522 = vsel %vm805, %v2501, 0
    %v2525 = vsel %vm805, %v2502, 0
    %v2528 = vsel %vm805, %v2503, 0
    %v2531 = vsel %vm805, %v2504, 0
    %2533 = vmatprep.subr.bf16.mxu0 0
    %2534 = vmatpush1.bf16.msra.mxu0 0
    %2535 = vmatprep.subr.bf16.mxu0 0
    %2536 = vmatpush1.bf16.msra.mxu0 0
    %2537 = vmatprep.subr.bf16.mxu0 0
    %2538 = vmatpush1.bf16.msra.mxu0 0
    %2539 = vmatprep.subr.bf16.mxu0 0
    %2540 = vmatpush1.bf16.msra.mxu0 0
    %2541 = vmatprep.subr.bf16.mxu0 0
    %2542 = vmatpush1.bf16.msra.mxu0 %v2516
    %2543 = vmatprep.subr.bf16.mxu0 0
    %2544 = vmatpush1.bf16.msra.mxu0 %v2514
    %2545 = vmatprep.subr.bf16.mxu0 0
    %2546 = vmatpush1.bf16.msra.mxu0 %v2512
    %2547 = vmatprep.subr.bf16.mxu0 0
    %2548 = vmatpush1.bf16.msra.mxu0 %v2510
    %2549 = vmatprep.subr.bf16.mxu0 0
    %2550 = vmatpush2.bf16.msra.mxu0 0
    %2551 = vmatprep.subr.bf16.mxu0 0
    %2552 = vmatpush2.bf16.msra.mxu0 0
    %2553 = vmatprep.subr.bf16.mxu0 0
    %2554 = vmatpush2.bf16.msra.mxu0 0
    %2555 = vmatprep.subr.bf16.mxu0 0
    %2556 = vmatpush2.bf16.msra.mxu0 0
    %2557 = vmatprep.subr.bf16.mxu0 0
    %2558 = vmatpush2.bf16.msra.mxu0 0
    %2559 = vmatprep.subr.bf16.mxu0 0
    %2560 = vmatpush2.bf16.msra.mxu0 0
    %2561 = vmatprep.subr.bf16.mxu0 0
    %2562 = vmatpush2.bf16.msra.mxu0 0
    %2563 = vmatprep.subr.bf16.mxu0 0
    %2564 = vmatpush2.bf16.msra.mxu0 0
    %2565 = vmatprep.mubr.bf16.mxu0 0
    %2566 = vmatmul.mubr.bf16.gmra.mxu0 %v2522
    %v2567 = vpop.f32.mrf.mxu0
    %v2568 = vadd.f32 0.0, %v2567
    %v2569 = vpop.f32.mrf.mxu0
    %v2570 = vpop.f32.mrf.mxu0
    %v2571 = vadd.f32 0.0, %v2570
    %v2572 = vpop.f32.mrf.mxu0
    %2573 = vmatprep.mubr.bf16.mxu0 0
    %2574 = vmatmul.mubr.bf16.gmra.mxu0 %v2525
    %v2575 = vpop.f32.mrf.mxu0
    %v2576 = vadd.f32 0.0, %v2575
    %v2577 = vpop.f32.mrf.mxu0
    %v2578 = vpop.f32.mrf.mxu0
    %v2579 = vadd.f32 0.0, %v2578
    %v2580 = vpop.f32.mrf.mxu0
    %2581 = vmatprep.mubr.bf16.mxu0 0
    %2582 = vmatmul.mubr.bf16.gmra.mxu0 %v2528
    %v2583 = vpop.f32.mrf.mxu0
    %v2584 = vadd.f32 0.0, %v2583
    %v2585 = vpop.f32.mrf.mxu0
    %v2586 = vpop.f32.mrf.mxu0
    %v2587 = vadd.f32 0.0, %v2586
    %v2588 = vpop.f32.mrf.mxu0
    %2589 = vmatprep.mubr.bf16.mxu0 0
    %2590 = vmatmul.mubr.bf16.gmra.mxu0 %v2531
    %v2591 = vpop.f32.mrf.mxu0
    %v2592 = vadd.f32 0.0, %v2591
    %v2593 = vpop.f32.mrf.mxu0
    %v2594 = vpop.f32.mrf.mxu0
    %v2595 = vadd.f32 0.0, %v2594
    %v2596 = vpop.f32.mrf.mxu0
    %2597 = vdwg.mxu0
    %v2598 = vrcp.pop %v2479
    %v2599 = vrcp.pop %v2482
    %v2600 = vrcp.pop %v2485
    %v2601 = vrcp.pop %v2488
    %v2602 = vrcp.pop %v2491
    %v2603 = vrcp.pop %v2494
    %v2604 = vrcp.pop %v2497
    %v2605 = vrcp.pop %v2500
    %v2606 = vmul.f32 %v2568, %v2598
    %v2607 = vmul.f32 %v2571, %v2599
    %v2608 = vmul.f32 %v2576, %v2600
    %v2609 = vmul.f32 %v2579, %v2601
    %v2610 = vmul.f32 %v2584, %v2602
    %v2611 = vmul.f32 %v2587, %v2603
    %v2612 = vmul.f32 %v2592, %v2604
    %v2613 = vmul.f32 %v2595, %v2605
    %2614 = vrot.lane.b32.xlu0 %v2014, 64
    %v2615 = vpop.permute.xlu0 %2614
    %2616 = vrot.lane.b32.xlu0 %v2015, 64
    %v2617 = vpop.permute.xlu0 %2616
    %2618 = vrot.lane.b32.xlu0 %v2016, 64
    %v2619 = vpop.permute.xlu0 %2618
    %2620 = vrot.lane.b32.xlu0 %v2017, 64
    %v2621 = vpop.permute.xlu0 %2620
    %2622 = vrot.lane.b32.xlu0 %v2018, 64
    %v2623 = vpop.permute.xlu0 %2622
    %2624 = vrot.lane.b32.xlu0 %v2019, 64
    %v2625 = vpop.permute.xlu0 %2624
    %2626 = vrot.lane.b32.xlu0 %v2020, 64
    %v2627 = vpop.permute.xlu0 %2626
    %2628 = vrot.lane.b32.xlu0 %v2021, 64
    %v2629 = vpop.permute.xlu0 %2628
    %v2631 = vsel %vm699, %v2615, 0
    %v2634 = vsel %vm699, %v2617, 0
    %v2637 = vsel %vm699, %v2619, 0
    %v2640 = vsel %vm699, %v2621, 0
    %v2643 = vsel %vm699, %v2623, 0
    %v2646 = vsel %vm699, %v2625, 0
    %v2649 = vsel %vm699, %v2627, 0
    %v2652 = vsel %vm699, %v2629, 0
    %2654 = vmatprep.subr.bf16.mxu0 0
    %2655 = vmatpush1.bf16.xpose.msra.mxu0 0
    %2656 = vmatprep.subr.bf16.mxu0 0
    %2657 = vmatpush1.bf16.xpose.msra.mxu0 0
    %2658 = vmatprep.subr.bf16.mxu0 0
    %2659 = vmatpush1.bf16.xpose.msra.mxu0 0
    %2660 = vmatprep.subr.bf16.mxu0 0
    %2661 = vmatpush1.bf16.xpose.msra.mxu0 0
    %2662 = vmatprep.subr.bf16.mxu0 0
    %2663 = vmatpush1.bf16.xpose.msra.mxu0 %v2652
    %2664 = vmatprep.subr.bf16.mxu0 0
    %2665 = vmatpush1.bf16.xpose.msra.mxu0 %v2649
    %2666 = vmatprep.subr.bf16.mxu0 0
    %2667 = vmatpush1.bf16.xpose.msra.mxu0 %v2646
    %2668 = vmatprep.subr.bf16.mxu0 0
    %2669 = vmatpush1.bf16.xpose.msra.mxu0 %v2643
    %2670 = vmatprep.subr.bf16.mxu0 0
    %2671 = vmatpush2.bf16.xpose.msra.mxu0 0
    %2672 = vmatprep.subr.bf16.mxu0 0
    %2673 = vmatpush2.bf16.xpose.msra.mxu0 0
    %2674 = vmatprep.subr.bf16.mxu0 0
    %2675 = vmatpush2.bf16.xpose.msra.mxu0 0
    %2676 = vmatprep.subr.bf16.mxu0 0
    %2677 = vmatpush2.bf16.xpose.msra.mxu0 0
    %2678 = vmatprep.subr.bf16.mxu0 0
    %2679 = vmatpush2.bf16.xpose.msra.mxu0 0
    %2680 = vmatprep.subr.bf16.mxu0 0
    %2681 = vmatpush2.bf16.xpose.msra.mxu0 0
    %2682 = vmatprep.subr.bf16.mxu0 0
    %2683 = vmatpush2.bf16.xpose.msra.mxu0 0
    %2684 = vmatprep.subr.bf16.mxu0 0
    %2685 = vmatpush2.bf16.xpose.msra.mxu0 0
    %2686 = vmatprep.mubr.bf16.mxu0 0
    %2687 = vmatmul.mubr.bf16.gmra.mxu0 %v2631
    %v2688 = vpop.f32.mrf.mxu0
    %v2689 = vadd.f32 0.0, %v2688
    %v2690 = vpop.f32.mrf.mxu0
    %v2691 = vpop.f32.mrf.mxu0
    %v2692 = vadd.f32 0.0, %v2691
    %v2693 = vpop.f32.mrf.mxu0
    %2694 = vmatprep.mubr.bf16.mxu0 0
    %2695 = vmatmul.mubr.bf16.gmra.mxu0 %v2634
    %v2696 = vpop.f32.mrf.mxu0
    %v2697 = vadd.f32 0.0, %v2696
    %v2698 = vpop.f32.mrf.mxu0
    %v2699 = vpop.f32.mrf.mxu0
    %v2700 = vadd.f32 0.0, %v2699
    %v2701 = vpop.f32.mrf.mxu0
    %2702 = vmatprep.mubr.bf16.mxu0 0
    %2703 = vmatmul.mubr.bf16.gmra.mxu0 %v2637
    %v2704 = vpop.f32.mrf.mxu0
    %v2705 = vadd.f32 0.0, %v2704
    %v2706 = vpop.f32.mrf.mxu0
    %v2707 = vpop.f32.mrf.mxu0
    %v2708 = vadd.f32 0.0, %v2707
    %v2709 = vpop.f32.mrf.mxu0
    %2710 = vmatprep.mubr.bf16.mxu0 0
    %2711 = vmatmul.mubr.bf16.gmra.mxu0 %v2640
    %v2712 = vpop.f32.mrf.mxu0
    %v2713 = vadd.f32 0.0, %v2712
    %v2714 = vpop.f32.mrf.mxu0
    %v2715 = vpop.f32.mrf.mxu0
    %v2716 = vadd.f32 0.0, %v2715
    %v2717 = vpop.f32.mrf.mxu0
    %2718 = vdwg.mxu0
    %v2719 = vmul.f32 %v2689, 0.088388346
    %v2720 = vmul.f32 %v2692, 0.088388346
    %v2721 = vmul.f32 %v2697, 0.088388346
    %v2722 = vmul.f32 %v2700, 0.088388346
    %v2723 = vmul.f32 %v2705, 0.088388346
    %v2724 = vmul.f32 %v2708, 0.088388346
    %v2725 = vmul.f32 %v2713, 0.088388346
    %v2726 = vmul.f32 %v2716, 0.088388346
    %v2727 = vadd.f32 %v2719, %v679
    %v2728 = vadd.f32 %v2720, %v680
    %v2729 = vadd.f32 %v2721, %v681
    %v2730 = vadd.f32 %v2722, %v682
    %v2731 = vadd.f32 %v2723, %v683
    %v2732 = vadd.f32 %v2724, %v684
    %v2733 = vadd.f32 %v2725, %v685
    %v2734 = vadd.f32 %v2726, %v686
    %v2735 = vsel %vm805, %v2727, -inf
    %2736 = vmax.xlane.f32.xlu0 %v2735
    %v2737 = vpop.xlane.xlu0 %2736
    %v2738 = vsel %vm805, %v2728, -inf
    %2739 = vmax.xlane.f32.xlu0 %v2738
    %v2740 = vpop.xlane.xlu0 %2739
    %v2741 = vsel %vm805, %v2729, -inf
    %2742 = vmax.xlane.f32.xlu0 %v2741
    %v2743 = vpop.xlane.xlu0 %2742
    %v2744 = vsel %vm805, %v2730, -inf
    %2745 = vmax.xlane.f32.xlu0 %v2744
    %v2746 = vpop.xlane.xlu0 %2745
    %v2747 = vsel %vm805, %v2731, -inf
    %2748 = vmax.xlane.f32.xlu0 %v2747
    %v2749 = vpop.xlane.xlu0 %2748
    %v2750 = vsel %vm805, %v2732, -inf
    %2751 = vmax.xlane.f32.xlu0 %v2750
    %v2752 = vpop.xlane.xlu0 %2751
    %v2753 = vsel %vm805, %v2733, -inf
    %2754 = vmax.xlane.f32.xlu0 %v2753
    %v2755 = vpop.xlane.xlu0 %2754
    %v2756 = vsel %vm805, %v2734, -inf
    %2757 = vmax.xlane.f32.xlu0 %v2756
    %v2758 = vpop.xlane.xlu0 %2757
    %v2759 = vsub.f32 %v2727, %v2737
    %v2760 = vsub.f32 %v2728, %v2740
    %v2761 = vsub.f32 %v2729, %v2743
    %v2762 = vsub.f32 %v2730, %v2746
    %v2763 = vsub.f32 %v2731, %v2749
    %v2764 = vsub.f32 %v2732, %v2752
    %v2765 = vsub.f32 %v2733, %v2755
    %v2766 = vsub.f32 %v2734, %v2758
    %v2767 = vmul.f32 %v2759, 1.442695
    %v2768 = vpow.pop %v2767
    %v2769 = vmul.f32 %v2760, 1.442695
    %v2770 = vpow.pop %v2769
    %v2771 = vmul.f32 %v2761, 1.442695
    %v2772 = vpow.pop %v2771
    %v2773 = vmul.f32 %v2762, 1.442695
    %v2774 = vpow.pop %v2773
    %v2775 = vmul.f32 %v2763, 1.442695
    %v2776 = vpow.pop %v2775
    %v2777 = vmul.f32 %v2764, 1.442695
    %v2778 = vpow.pop %v2777
    %v2779 = vmul.f32 %v2765, 1.442695
    %v2780 = vpow.pop %v2779
    %v2781 = vmul.f32 %v2766, 1.442695
    %v2782 = vpow.pop %v2781
    %v2783 = vsel %vm805, %v2768, 0.0
    %2784 = vadd.xlane.f32.xlu0 %v2783
    %v2785 = vpop.xlane.xlu0 %2784
    %v2786 = vsel %vm805, %v2770, 0.0
    %2787 = vadd.xlane.f32.xlu0 %v2786
    %v2788 = vpop.xlane.xlu0 %2787
    %v2789 = vsel %vm805, %v2772, 0.0
    %2790 = vadd.xlane.f32.xlu0 %v2789
    %v2791 = vpop.xlane.xlu0 %2790
    %v2792 = vsel %vm805, %v2774, 0.0
    %2793 = vadd.xlane.f32.xlu0 %v2792
    %v2794 = vpop.xlane.xlu0 %2793
    %v2795 = vsel %vm805, %v2776, 0.0
    %2796 = vadd.xlane.f32.xlu0 %v2795
    %v2797 = vpop.xlane.xlu0 %2796
    %v2798 = vsel %vm805, %v2778, 0.0
    %2799 = vadd.xlane.f32.xlu0 %v2798
    %v2800 = vpop.xlane.xlu0 %2799
    %v2801 = vsel %vm805, %v2780, 0.0
    %2802 = vadd.xlane.f32.xlu0 %v2801
    %v2803 = vpop.xlane.xlu0 %2802
    %v2804 = vsel %vm805, %v2782, 0.0
    %2805 = vadd.xlane.f32.xlu0 %v2804
    %v2806 = vpop.xlane.xlu0 %2805
    %v2807 = vpack.c.bf16 %v2770, %v2768
    %v2808 = vpack.c.bf16 %v2774, %v2772
    %v2809 = vpack.c.bf16 %v2778, %v2776
    %v2810 = vpack.c.bf16 %v2782, %v2780
    %2811 = vrot.lane.b32.xlu0 %v2022, 64
    %v2812 = vpop.permute.xlu0 %2811
    %2813 = vrot.lane.b32.xlu0 %v2023, 64
    %v2814 = vpop.permute.xlu0 %2813
    %2815 = vrot.lane.b32.xlu0 %v2024, 64
    %v2816 = vpop.permute.xlu0 %2815
    %2817 = vrot.lane.b32.xlu0 %v2025, 64
    %v2818 = vpop.permute.xlu0 %2817
    %v2824 = vsel %vm805, %v2807, 0
    %v2827 = vsel %vm805, %v2808, 0
    %v2830 = vsel %vm805, %v2809, 0
    %v2833 = vsel %vm805, %v2810, 0
    %2835 = vmatprep.subr.bf16.mxu0 0
    %2836 = vmatpush1.bf16.msra.mxu0 0
    %2837 = vmatprep.subr.bf16.mxu0 0
    %2838 = vmatpush1.bf16.msra.mxu0 0
    %2839 = vmatprep.subr.bf16.mxu0 0
    %2840 = vmatpush1.bf16.msra.mxu0 0
    %2841 = vmatprep.subr.bf16.mxu0 0
    %2842 = vmatpush1.bf16.msra.mxu0 0
    %2843 = vmatprep.subr.bf16.mxu0 0
    %2844 = vmatpush1.bf16.msra.mxu0 %v2818
    %2845 = vmatprep.subr.bf16.mxu0 0
    %2846 = vmatpush1.bf16.msra.mxu0 %v2816
    %2847 = vmatprep.subr.bf16.mxu0 0
    %2848 = vmatpush1.bf16.msra.mxu0 %v2814
    %2849 = vmatprep.subr.bf16.mxu0 0
    %2850 = vmatpush1.bf16.msra.mxu0 %v2812
    %2851 = vmatprep.subr.bf16.mxu0 0
    %2852 = vmatpush2.bf16.msra.mxu0 0
    %2853 = vmatprep.subr.bf16.mxu0 0
    %2854 = vmatpush2.bf16.msra.mxu0 0
    %2855 = vmatprep.subr.bf16.mxu0 0
    %2856 = vmatpush2.bf16.msra.mxu0 0
    %2857 = vmatprep.subr.bf16.mxu0 0
    %2858 = vmatpush2.bf16.msra.mxu0 0
    %2859 = vmatprep.subr.bf16.mxu0 0
    %2860 = vmatpush2.bf16.msra.mxu0 0
    %2861 = vmatprep.subr.bf16.mxu0 0
    %2862 = vmatpush2.bf16.msra.mxu0 0
    %2863 = vmatprep.subr.bf16.mxu0 0
    %2864 = vmatpush2.bf16.msra.mxu0 0
    %2865 = vmatprep.subr.bf16.mxu0 0
    %2866 = vmatpush2.bf16.msra.mxu0 0
    %2867 = vmatprep.mubr.bf16.mxu0 0
    %2868 = vmatmul.mubr.bf16.gmra.mxu0 %v2824
    %v2869 = vpop.f32.mrf.mxu0
    %v2870 = vadd.f32 0.0, %v2869
    %v2871 = vpop.f32.mrf.mxu0
    %v2872 = vpop.f32.mrf.mxu0
    %v2873 = vadd.f32 0.0, %v2872
    %v2874 = vpop.f32.mrf.mxu0
    %2875 = vmatprep.mubr.bf16.mxu0 0
    %2876 = vmatmul.mubr.bf16.gmra.mxu0 %v2827
    %v2877 = vpop.f32.mrf.mxu0
    %v2878 = vadd.f32 0.0, %v2877
    %v2879 = vpop.f32.mrf.mxu0
    %v2880 = vpop.f32.mrf.mxu0
    %v2881 = vadd.f32 0.0, %v2880
    %v2882 = vpop.f32.mrf.mxu0
    %2883 = vmatprep.mubr.bf16.mxu0 0
    %2884 = vmatmul.mubr.bf16.gmra.mxu0 %v2830
    %v2885 = vpop.f32.mrf.mxu0
    %v2886 = vadd.f32 0.0, %v2885
    %v2887 = vpop.f32.mrf.mxu0
    %v2888 = vpop.f32.mrf.mxu0
    %v2889 = vadd.f32 0.0, %v2888
    %v2890 = vpop.f32.mrf.mxu0
    %2891 = vmatprep.mubr.bf16.mxu0 0
    %2892 = vmatmul.mubr.bf16.gmra.mxu0 %v2833
    %v2893 = vpop.f32.mrf.mxu0
    %v2894 = vadd.f32 0.0, %v2893
    %v2895 = vpop.f32.mrf.mxu0
    %v2896 = vpop.f32.mrf.mxu0
    %v2897 = vadd.f32 0.0, %v2896
    %v2898 = vpop.f32.mrf.mxu0
    %2899 = vdwg.mxu0
    %v2900 = vrcp.pop %v2785
    %v2901 = vrcp.pop %v2788
    %v2902 = vrcp.pop %v2791
    %v2903 = vrcp.pop %v2794
    %v2904 = vrcp.pop %v2797
    %v2905 = vrcp.pop %v2800
    %v2906 = vrcp.pop %v2803
    %v2907 = vrcp.pop %v2806
    %v2908 = vmul.f32 %v2870, %v2900
    %v2909 = vmul.f32 %v2873, %v2901
    %v2910 = vmul.f32 %v2878, %v2902
    %v2911 = vmul.f32 %v2881, %v2903
    %v2912 = vmul.f32 %v2886, %v2904
    %v2913 = vmul.f32 %v2889, %v2905
    %v2914 = vmul.f32 %v2894, %v2906
    %v2915 = vmul.f32 %v2897, %v2907
    %2916 = vrot.lane.b32.xlu0 %v2014, 32
    %v2917 = vpop.permute.xlu0 %2916
    %2918 = vrot.lane.b32.xlu0 %v2015, 32
    %v2919 = vpop.permute.xlu0 %2918
    %2920 = vrot.lane.b32.xlu0 %v2016, 32
    %v2921 = vpop.permute.xlu0 %2920
    %2922 = vrot.lane.b32.xlu0 %v2017, 32
    %v2923 = vpop.permute.xlu0 %2922
    %2924 = vrot.lane.b32.xlu0 %v2018, 32
    %v2925 = vpop.permute.xlu0 %2924
    %2926 = vrot.lane.b32.xlu0 %v2019, 32
    %v2927 = vpop.permute.xlu0 %2926
    %2928 = vrot.lane.b32.xlu0 %v2020, 32
    %v2929 = vpop.permute.xlu0 %2928
    %2930 = vrot.lane.b32.xlu0 %v2021, 32
    %v2931 = vpop.permute.xlu0 %2930
    %v2933 = vsel %vm699, %v2917, 0
    %v2936 = vsel %vm699, %v2919, 0
    %v2939 = vsel %vm699, %v2921, 0
    %v2942 = vsel %vm699, %v2923, 0
    %v2945 = vsel %vm699, %v2925, 0
    %v2948 = vsel %vm699, %v2927, 0
    %v2951 = vsel %vm699, %v2929, 0
    %v2954 = vsel %vm699, %v2931, 0
    %2956 = vmatprep.subr.bf16.mxu0 0
    %2957 = vmatpush1.bf16.xpose.msra.mxu0 0
    %2958 = vmatprep.subr.bf16.mxu0 0
    %2959 = vmatpush1.bf16.xpose.msra.mxu0 0
    %2960 = vmatprep.subr.bf16.mxu0 0
    %2961 = vmatpush1.bf16.xpose.msra.mxu0 0
    %2962 = vmatprep.subr.bf16.mxu0 0
    %2963 = vmatpush1.bf16.xpose.msra.mxu0 0
    %2964 = vmatprep.subr.bf16.mxu0 0
    %2965 = vmatpush1.bf16.xpose.msra.mxu0 %v2954
    %2966 = vmatprep.subr.bf16.mxu0 0
    %2967 = vmatpush1.bf16.xpose.msra.mxu0 %v2951
    %2968 = vmatprep.subr.bf16.mxu0 0
    %2969 = vmatpush1.bf16.xpose.msra.mxu0 %v2948
    %2970 = vmatprep.subr.bf16.mxu0 0
    %2971 = vmatpush1.bf16.xpose.msra.mxu0 %v2945
    %2972 = vmatprep.subr.bf16.mxu0 0
    %2973 = vmatpush2.bf16.xpose.msra.mxu0 0
    %2974 = vmatprep.subr.bf16.mxu0 0
    %2975 = vmatpush2.bf16.xpose.msra.mxu0 0
    %2976 = vmatprep.subr.bf16.mxu0 0
    %2977 = vmatpush2.bf16.xpose.msra.mxu0 0
    %2978 = vmatprep.subr.bf16.mxu0 0
    %2979 = vmatpush2.bf16.xpose.msra.mxu0 0
    %2980 = vmatprep.subr.bf16.mxu0 0
    %2981 = vmatpush2.bf16.xpose.msra.mxu0 0
    %2982 = vmatprep.subr.bf16.mxu0 0
    %2983 = vmatpush2.bf16.xpose.msra.mxu0 0
    %2984 = vmatprep.subr.bf16.mxu0 0
    %2985 = vmatpush2.bf16.xpose.msra.mxu0 0
    %2986 = vmatprep.subr.bf16.mxu0 0
    %2987 = vmatpush2.bf16.xpose.msra.mxu0 0
    %2988 = vmatprep.mubr.bf16.mxu0 0
    %2989 = vmatmul.mubr.bf16.gmra.mxu0 %v2933
    %v2990 = vpop.f32.mrf.mxu0
    %v2991 = vadd.f32 0.0, %v2990
    %v2992 = vpop.f32.mrf.mxu0
    %v2993 = vpop.f32.mrf.mxu0
    %v2994 = vadd.f32 0.0, %v2993
    %v2995 = vpop.f32.mrf.mxu0
    %2996 = vmatprep.mubr.bf16.mxu0 0
    %2997 = vmatmul.mubr.bf16.gmra.mxu0 %v2936
    %v2998 = vpop.f32.mrf.mxu0
    %v2999 = vadd.f32 0.0, %v2998
    %v3000 = vpop.f32.mrf.mxu0
    %v3001 = vpop.f32.mrf.mxu0
    %v3002 = vadd.f32 0.0, %v3001
    %v3003 = vpop.f32.mrf.mxu0
    %3004 = vmatprep.mubr.bf16.mxu0 0
    %3005 = vmatmul.mubr.bf16.gmra.mxu0 %v2939
    %v3006 = vpop.f32.mrf.mxu0
    %v3007 = vadd.f32 0.0, %v3006
    %v3008 = vpop.f32.mrf.mxu0
    %v3009 = vpop.f32.mrf.mxu0
    %v3010 = vadd.f32 0.0, %v3009
    %v3011 = vpop.f32.mrf.mxu0
    %3012 = vmatprep.mubr.bf16.mxu0 0
    %3013 = vmatmul.mubr.bf16.gmra.mxu0 %v2942
    %v3014 = vpop.f32.mrf.mxu0
    %v3015 = vadd.f32 0.0, %v3014
    %v3016 = vpop.f32.mrf.mxu0
    %v3017 = vpop.f32.mrf.mxu0
    %v3018 = vadd.f32 0.0, %v3017
    %v3019 = vpop.f32.mrf.mxu0
    %3020 = vdwg.mxu0
    %v3021 = vmul.f32 %v2991, 0.088388346
    %v3022 = vmul.f32 %v2994, 0.088388346
    %v3023 = vmul.f32 %v2999, 0.088388346
    %v3024 = vmul.f32 %v3002, 0.088388346
    %v3025 = vmul.f32 %v3007, 0.088388346
    %v3026 = vmul.f32 %v3010, 0.088388346
    %v3027 = vmul.f32 %v3015, 0.088388346
    %v3028 = vmul.f32 %v3018, 0.088388346
    %v3029 = vadd.f32 %v3021, %v679
    %v3030 = vadd.f32 %v3022, %v680
    %v3031 = vadd.f32 %v3023, %v681
    %v3032 = vadd.f32 %v3024, %v682
    %v3033 = vadd.f32 %v3025, %v683
    %v3034 = vadd.f32 %v3026, %v684
    %v3035 = vadd.f32 %v3027, %v685
    %v3036 = vadd.f32 %v3028, %v686
    %v3037 = vsel %vm805, %v3029, -inf
    %3038 = vmax.xlane.f32.xlu0 %v3037
    %v3039 = vpop.xlane.xlu0 %3038
    %v3040 = vsel %vm805, %v3030, -inf
    %3041 = vmax.xlane.f32.xlu0 %v3040
    %v3042 = vpop.xlane.xlu0 %3041
    %v3043 = vsel %vm805, %v3031, -inf
    %3044 = vmax.xlane.f32.xlu0 %v3043
    %v3045 = vpop.xlane.xlu0 %3044
    %v3046 = vsel %vm805, %v3032, -inf
    %3047 = vmax.xlane.f32.xlu0 %v3046
    %v3048 = vpop.xlane.xlu0 %3047
    %v3049 = vsel %vm805, %v3033, -inf
    %3050 = vmax.xlane.f32.xlu0 %v3049
    %v3051 = vpop.xlane.xlu0 %3050
    %v3052 = vsel %vm805, %v3034, -inf
    %3053 = vmax.xlane.f32.xlu0 %v3052
    %v3054 = vpop.xlane.xlu0 %3053
    %v3055 = vsel %vm805, %v3035, -inf
    %3056 = vmax.xlane.f32.xlu0 %v3055
    %v3057 = vpop.xlane.xlu0 %3056
    %v3058 = vsel %vm805, %v3036, -inf
    %3059 = vmax.xlane.f32.xlu0 %v3058
    %v3060 = vpop.xlane.xlu0 %3059
    %v3061 = vsub.f32 %v3029, %v3039
    %v3062 = vsub.f32 %v3030, %v3042
    %v3063 = vsub.f32 %v3031, %v3045
    %v3064 = vsub.f32 %v3032, %v3048
    %v3065 = vsub.f32 %v3033, %v3051
    %v3066 = vsub.f32 %v3034, %v3054
    %v3067 = vsub.f32 %v3035, %v3057
    %v3068 = vsub.f32 %v3036, %v3060
    %v3069 = vmul.f32 %v3061, 1.442695
    %v3070 = vpow.pop %v3069
    %v3071 = vmul.f32 %v3062, 1.442695
    %v3072 = vpow.pop %v3071
    %v3073 = vmul.f32 %v3063, 1.442695
    %v3074 = vpow.pop %v3073
    %v3075 = vmul.f32 %v3064, 1.442695
    %v3076 = vpow.pop %v3075
    %v3077 = vmul.f32 %v3065, 1.442695
    %v3078 = vpow.pop %v3077
    %v3079 = vmul.f32 %v3066, 1.442695
    %v3080 = vpow.pop %v3079
    %v3081 = vmul.f32 %v3067, 1.442695
    %v3082 = vpow.pop %v3081
    %v3083 = vmul.f32 %v3068, 1.442695
    %v3084 = vpow.pop %v3083
    %v3085 = vsel %vm805, %v3070, 0.0
    %3086 = vadd.xlane.f32.xlu0 %v3085
    %v3087 = vpop.xlane.xlu0 %3086
    %v3088 = vsel %vm805, %v3072, 0.0
    %3089 = vadd.xlane.f32.xlu0 %v3088
    %v3090 = vpop.xlane.xlu0 %3089
    %v3091 = vsel %vm805, %v3074, 0.0
    %3092 = vadd.xlane.f32.xlu0 %v3091
    %v3093 = vpop.xlane.xlu0 %3092
    %v3094 = vsel %vm805, %v3076, 0.0
    %3095 = vadd.xlane.f32.xlu0 %v3094
    %v3096 = vpop.xlane.xlu0 %3095
    %v3097 = vsel %vm805, %v3078, 0.0
    %3098 = vadd.xlane.f32.xlu0 %v3097
    %v3099 = vpop.xlane.xlu0 %3098
    %v3100 = vsel %vm805, %v3080, 0.0
    %3101 = vadd.xlane.f32.xlu0 %v3100
    %v3102 = vpop.xlane.xlu0 %3101
    %v3103 = vsel %vm805, %v3082, 0.0
    %3104 = vadd.xlane.f32.xlu0 %v3103
    %v3105 = vpop.xlane.xlu0 %3104
    %v3106 = vsel %vm805, %v3084, 0.0
    %3107 = vadd.xlane.f32.xlu0 %v3106
    %v3108 = vpop.xlane.xlu0 %3107
    %v3109 = vpack.c.bf16 %v3072, %v3070
    %v3110 = vpack.c.bf16 %v3076, %v3074
    %v3111 = vpack.c.bf16 %v3080, %v3078
    %v3112 = vpack.c.bf16 %v3084, %v3082
    %3113 = vrot.lane.b32.xlu0 %v2022, 32
    %v3114 = vpop.permute.xlu0 %3113
    %3115 = vrot.lane.b32.xlu0 %v2023, 32
    %v3116 = vpop.permute.xlu0 %3115
    %3117 = vrot.lane.b32.xlu0 %v2024, 32
    %v3118 = vpop.permute.xlu0 %3117
    %3119 = vrot.lane.b32.xlu0 %v2025, 32
    %v3120 = vpop.permute.xlu0 %3119
    %v3126 = vsel %vm805, %v3109, 0
    %v3129 = vsel %vm805, %v3110, 0
    %v3132 = vsel %vm805, %v3111, 0
    %v3135 = vsel %vm805, %v3112, 0
    %3137 = vmatprep.subr.bf16.mxu0 0
    %3138 = vmatpush1.bf16.msra.mxu0 0
    %3139 = vmatprep.subr.bf16.mxu0 0
    %3140 = vmatpush1.bf16.msra.mxu0 0
    %3141 = vmatprep.subr.bf16.mxu0 0
    %3142 = vmatpush1.bf16.msra.mxu0 0
    %3143 = vmatprep.subr.bf16.mxu0 0
    %3144 = vmatpush1.bf16.msra.mxu0 0
    %3145 = vmatprep.subr.bf16.mxu0 0
    %3146 = vmatpush1.bf16.msra.mxu0 %v3120
    %3147 = vmatprep.subr.bf16.mxu0 0
    %3148 = vmatpush1.bf16.msra.mxu0 %v3118
    %3149 = vmatprep.subr.bf16.mxu0 0
    %3150 = vmatpush1.bf16.msra.mxu0 %v3116
    %3151 = vmatprep.subr.bf16.mxu0 0
    %3152 = vmatpush1.bf16.msra.mxu0 %v3114
    %3153 = vmatprep.subr.bf16.mxu0 0
    %3154 = vmatpush2.bf16.msra.mxu0 0
    %3155 = vmatprep.subr.bf16.mxu0 0
    %3156 = vmatpush2.bf16.msra.mxu0 0
    %3157 = vmatprep.subr.bf16.mxu0 0
    %3158 = vmatpush2.bf16.msra.mxu0 0
    %3159 = vmatprep.subr.bf16.mxu0 0
    %3160 = vmatpush2.bf16.msra.mxu0 0
    %3161 = vmatprep.subr.bf16.mxu0 0
    %3162 = vmatpush2.bf16.msra.mxu0 0
    %3163 = vmatprep.subr.bf16.mxu0 0
    %3164 = vmatpush2.bf16.msra.mxu0 0
    %3165 = vmatprep.subr.bf16.mxu0 0
    %3166 = vmatpush2.bf16.msra.mxu0 0
    %3167 = vmatprep.subr.bf16.mxu0 0
    %3168 = vmatpush2.bf16.msra.mxu0 0
    %3169 = vmatprep.mubr.bf16.mxu0 0
    %3170 = vmatmul.mubr.bf16.gmra.mxu0 %v3126
    %v3171 = vpop.f32.mrf.mxu0
    %v3172 = vadd.f32 0.0, %v3171
    %v3173 = vpop.f32.mrf.mxu0
    %v3174 = vpop.f32.mrf.mxu0
    %v3175 = vadd.f32 0.0, %v3174
    %v3176 = vpop.f32.mrf.mxu0
    %3177 = vmatprep.mubr.bf16.mxu0 0
    %3178 = vmatmul.mubr.bf16.gmra.mxu0 %v3129
    %v3179 = vpop.f32.mrf.mxu0
    %v3180 = vadd.f32 0.0, %v3179
    %v3181 = vpop.f32.mrf.mxu0
    %v3182 = vpop.f32.mrf.mxu0
    %v3183 = vadd.f32 0.0, %v3182
    %v3184 = vpop.f32.mrf.mxu0
    %3185 = vmatprep.mubr.bf16.mxu0 0
    %3186 = vmatmul.mubr.bf16.gmra.mxu0 %v3132
    %v3187 = vpop.f32.mrf.mxu0
    %v3188 = vadd.f32 0.0, %v3187
    %v3189 = vpop.f32.mrf.mxu0
    %v3190 = vpop.f32.mrf.mxu0
    %v3191 = vadd.f32 0.0, %v3190
    %v3192 = vpop.f32.mrf.mxu0
    %3193 = vmatprep.mubr.bf16.mxu0 0
    %3194 = vmatmul.mubr.bf16.gmra.mxu0 %v3135
    %v3195 = vpop.f32.mrf.mxu0
    %v3196 = vadd.f32 0.0, %v3195
    %v3197 = vpop.f32.mrf.mxu0
    %v3198 = vpop.f32.mrf.mxu0
    %v3199 = vadd.f32 0.0, %v3198
    %v3200 = vpop.f32.mrf.mxu0
    %3201 = vdwg.mxu0
    %v3202 = vrcp.pop %v3087
    %v3203 = vrcp.pop %v3090
    %v3204 = vrcp.pop %v3093
    %v3205 = vrcp.pop %v3096
    %v3206 = vrcp.pop %v3099
    %v3207 = vrcp.pop %v3102
    %v3208 = vrcp.pop %v3105
    %v3209 = vrcp.pop %v3108
    %v3210 = vmul.f32 %v3172, %v3202
    %v3211 = vmul.f32 %v3175, %v3203
    %v3212 = vmul.f32 %v3180, %v3204
    %v3213 = vmul.f32 %v3183, %v3205
    %v3214 = vmul.f32 %v3188, %v3206
    %v3215 = vmul.f32 %v3191, %v3207
    %v3216 = vmul.f32 %v3196, %v3208
    %v3217 = vmul.f32 %v3199, %v3209
    %3226 = vrot.lane.b32.xlu0 %v2606, 32
    %v3227 = vpop.permute.xlu0 %3226
    %3228 = vrot.lane.b32.xlu0 %v2607, 32
    %v3229 = vpop.permute.xlu0 %3228
    %3230 = vrot.lane.b32.xlu0 %v2608, 32
    %v3231 = vpop.permute.xlu0 %3230
    %3232 = vrot.lane.b32.xlu0 %v2609, 32
    %v3233 = vpop.permute.xlu0 %3232
    %3234 = vrot.lane.b32.xlu0 %v2610, 32
    %v3235 = vpop.permute.xlu0 %3234
    %3236 = vrot.lane.b32.xlu0 %v2611, 32
    %v3237 = vpop.permute.xlu0 %3236
    %3238 = vrot.lane.b32.xlu0 %v2612, 32
    %v3239 = vpop.permute.xlu0 %3238
    %3240 = vrot.lane.b32.xlu0 %v2613, 32
    %v3241 = vpop.permute.xlu0 %3240
    %3258 = vrot.lane.b32.xlu0 %v2908, 64
    %v3259 = vpop.permute.xlu0 %3258
    %3260 = vrot.lane.b32.xlu0 %v2909, 64
    %v3261 = vpop.permute.xlu0 %3260
    %3262 = vrot.lane.b32.xlu0 %v2910, 64
    %v3263 = vpop.permute.xlu0 %3262
    %3264 = vrot.lane.b32.xlu0 %v2911, 64
    %v3265 = vpop.permute.xlu0 %3264
    %3266 = vrot.lane.b32.xlu0 %v2912, 64
    %v3267 = vpop.permute.xlu0 %3266
    %3268 = vrot.lane.b32.xlu0 %v2913, 64
    %v3269 = vpop.permute.xlu0 %3268
    %3270 = vrot.lane.b32.xlu0 %v2914, 64
    %v3271 = vpop.permute.xlu0 %3270
    %3272 = vrot.lane.b32.xlu0 %v2915, 64
    %v3273 = vpop.permute.xlu0 %3272
    %3290 = vrot.lane.b32.xlu0 %v3210, 96
    %v3291 = vpop.permute.xlu0 %3290
    %3292 = vrot.lane.b32.xlu0 %v3211, 96
    %v3293 = vpop.permute.xlu0 %3292
    %3294 = vrot.lane.b32.xlu0 %v3212, 96
    %v3295 = vpop.permute.xlu0 %3294
    %3296 = vrot.lane.b32.xlu0 %v3213, 96
    %v3297 = vpop.permute.xlu0 %3296
    %3298 = vrot.lane.b32.xlu0 %v3214, 96
    %v3299 = vpop.permute.xlu0 %3298
    %3300 = vrot.lane.b32.xlu0 %v3215, 96
    %v3301 = vpop.permute.xlu0 %3300
    %3302 = vrot.lane.b32.xlu0 %v3216, 96
    %v3303 = vpop.permute.xlu0 %3302
    %3304 = vrot.lane.b32.xlu0 %v3217, 96
    %v3305 = vpop.permute.xlu0 %3304
    %v3314 = vsel %vm699, %v2292, %v3227
    %v3315 = vsel %vm699, %v2293, %v3229
    %v3316 = vsel %vm699, %v2294, %v3231
    %v3317 = vsel %vm699, %v2295, %v3233
    %v3318 = vsel %vm699, %v2296, %v3235
    %v3319 = vsel %vm699, %v2297, %v3237
    %v3320 = vsel %vm699, %v2298, %v3239
    %v3321 = vsel %vm699, %v2299, %v3241
    %v3322 = vsel %vm805, %v3314, %v3259
    %v3323 = vsel %vm805, %v3315, %v3261
    %v3324 = vsel %vm805, %v3316, %v3263
    %v3325 = vsel %vm805, %v3317, %v3265
    %v3326 = vsel %vm805, %v3318, %v3267
    %v3327 = vsel %vm805, %v3319, %v3269
    %v3328 = vsel %vm805, %v3320, %v3271
    %v3329 = vsel %vm805, %v3321, %v3273
    %v3330 = vsel %vm2005, %v3322, %v3291
    %v3331 = vsel %vm2005, %v3323, %v3293
    %v3332 = vsel %vm2005, %v3324, %v3295
    %v3333 = vsel %vm2005, %v3325, %v3297
    %v3334 = vsel %vm2005, %v3326, %v3299
    %v3335 = vsel %vm2005, %v3327, %v3301
    %v3336 = vsel %vm2005, %v3328, %v3303
    %v3337 = vsel %vm2005, %v3329, %v3305
    %v3338 = vpack.c.bf16 %v2007, %v2006
    %v3339 = vpack.c.bf16 %v2009, %v2008
    %v3340 = vpack.c.bf16 %v2011, %v2010
    %v3341 = vpack.c.bf16 %v2013, %v2012
    %v3342 = vpack.c.bf16 %v3331, %v3330
    %v3343 = vpack.c.bf16 %v3333, %v3332
    %v3344 = vpack.c.bf16 %v3335, %v3334
    %v3345 = vpack.c.bf16 %v3337, %v3336
    %v3346 = vld [vmem:[%s4] sm:$0xf]
    %v3347 = vld [vmem:[%s4 + $0x4] sm:$0xf]
    %v3348 = vld [vmem:[%s4 + $0x8] sm:$0xf]
    %v3349 = vld [vmem:[%s4 + $0xc] sm:$0xf]
    %v3350 = vld [vmem:[%s4 + $0x10] sm:$0xf]
    %v3351 = vld [vmem:[%s4 + $0x14] sm:$0xf]
    %v3352 = vld [vmem:[%s4 + $0x18] sm:$0xf]
    %v3353 = vld [vmem:[%s4 + $0x1c] sm:$0xf]
    %v3354 = vld [vmem:[%s4 + $0x20] sm:$0xf]
    %v3355 = vld [vmem:[%s4 + $0x24] sm:$0xf]
    %v3356 = vld [vmem:[%s4 + $0x28] sm:$0xf]
    %v3357 = vld [vmem:[%s4 + $0x2c] sm:$0xf]
    %v3358 = vld [vmem:[%s4 + $0x30] sm:$0xf]
    %v3359 = vld [vmem:[%s4 + $0x34] sm:$0xf]
    %v3360 = vld [vmem:[%s4 + $0x38] sm:$0xf]
    %v3361 = vld [vmem:[%s4 + $0x3c] sm:$0xf]
    %v3362 = vld [vmem:[%s5] sm:$0x1]
    %v3364 = vlaneseq
    %v3365 = vshrl.u32 %v3364, 7
    %v3366 = vsub.s32 0, %v3365
    %v3367 = vrot.slane %v3362, %v3366
    %v3385 = vunpack.c.l.b16 %v3346
    %v3386 = vunpack.c.l.b16 %v3347
    %v3387 = vunpack.c.l.b16 %v3348
    %v3388 = vunpack.c.l.b16 %v3349
    %v3389 = vunpack.c.l.b16 %v3350
    %v3390 = vunpack.c.l.b16 %v3351
    %v3391 = vunpack.c.l.b16 %v3352
    %v3392 = vunpack.c.l.b16 %v3353
    %v3393 = vunpack.c.l.b16 %v3354
    %v3394 = vunpack.c.l.b16 %v3355
    %v3395 = vunpack.c.l.b16 %v3356
    %v3396 = vunpack.c.l.b16 %v3357
    %v3397 = vunpack.c.l.b16 %v3358
    %v3398 = vunpack.c.l.b16 %v3359
    %v3399 = vunpack.c.l.b16 %v3360
    %v3400 = vunpack.c.l.b16 %v3361
    %v3401 = vpack.c.b16 %v3386, %v3385
    %v3402 = vpack.c.b16 %v3388, %v3387
    %v3403 = vpack.c.b16 %v3390, %v3389
    %v3404 = vpack.c.b16 %v3392, %v3391
    %v3405 = vpack.c.b16 %v3394, %v3393
    %v3406 = vpack.c.b16 %v3396, %v3395
    %v3407 = vpack.c.b16 %v3398, %v3397
    %v3408 = vpack.c.b16 %v3400, %v3399
    %3417 = vmatprep.subr.bf16.mxu0 0
    %3418 = vmatpush1.bf16.msra.mxu0 %v3408
    %3419 = vmatprep.subr.bf16.mxu0 0
    %3420 = vmatpush1.bf16.msra.mxu0 %v3407
    %3421 = vmatprep.subr.bf16.mxu0 0
    %3422 = vmatpush1.bf16.msra.mxu0 %v3406
    %3423 = vmatprep.subr.bf16.mxu0 0
    %3424 = vmatpush1.bf16.msra.mxu0 %v3405
    %3425 = vmatprep.subr.bf16.mxu0 0
    %3426 = vmatpush1.bf16.msra.mxu0 %v3404
    %3427 = vmatprep.subr.bf16.mxu0 0
    %3428 = vmatpush1.bf16.msra.mxu0 %v3403
    %3429 = vmatprep.subr.bf16.mxu0 0
    %3430 = vmatpush1.bf16.msra.mxu0 %v3402
    %3431 = vmatprep.subr.bf16.mxu0 0
    %3432 = vmatpush1.bf16.msra.mxu0 %v3401
    %3433 = vmatprep.subr.bf16.mxu0 0
    %3434 = vmatpush2.bf16.msra.mxu0 0
    %3435 = vmatprep.subr.bf16.mxu0 0
    %3436 = vmatpush2.bf16.msra.mxu0 0
    %3437 = vmatprep.subr.bf16.mxu0 0
    %3438 = vmatpush2.bf16.msra.mxu0 0
    %3439 = vmatprep.subr.bf16.mxu0 0
    %3440 = vmatpush2.bf16.msra.mxu0 0
    %3441 = vmatprep.subr.bf16.mxu0 0
    %3442 = vmatpush2.bf16.msra.mxu0 0
    %3443 = vmatprep.subr.bf16.mxu0 0
    %3444 = vmatpush2.bf16.msra.mxu0 0
    %3445 = vmatprep.subr.bf16.mxu0 0
    %3446 = vmatpush2.bf16.msra.mxu0 0
    %3447 = vmatprep.subr.bf16.mxu0 0
    %3448 = vmatpush2.bf16.msra.mxu0 0
    %3449 = vmatprep.mubr.bf16.mxu0 0
    %3450 = vmatmul.mubr.bf16.gmra.mxu0 %v3338
    %v3451 = vpop.f32.mrf.mxu0
    %v3452 = vadd.f32 %v3367, %v3451
    %v3453 = vpop.f32.mrf.mxu0
    %v3454 = vpop.f32.mrf.mxu0
    %v3455 = vadd.f32 %v3367, %v3454
    %v3456 = vpop.f32.mrf.mxu0
    %3457 = vmatprep.mubr.bf16.mxu0 0
    %3458 = vmatmul.mubr.bf16.gmra.mxu0 %v3339
    %v3459 = vpop.f32.mrf.mxu0
    %v3460 = vadd.f32 %v3367, %v3459
    %v3461 = vpop.f32.mrf.mxu0
    %v3462 = vpop.f32.mrf.mxu0
    %v3463 = vadd.f32 %v3367, %v3462
    %v3464 = vpop.f32.mrf.mxu0
    %3465 = vmatprep.mubr.bf16.mxu0 0
    %3466 = vmatmul.mubr.bf16.gmra.mxu0 %v3340
    %v3467 = vpop.f32.mrf.mxu0
    %v3468 = vadd.f32 %v3367, %v3467
    %v3469 = vpop.f32.mrf.mxu0
    %v3470 = vpop.f32.mrf.mxu0
    %v3471 = vadd.f32 %v3367, %v3470
    %v3472 = vpop.f32.mrf.mxu0
    %3473 = vmatprep.mubr.bf16.mxu0 0
    %3474 = vmatmul.mubr.bf16.gmra.mxu0 %v3341
    %v3475 = vpop.f32.mrf.mxu0
    %v3476 = vadd.f32 %v3367, %v3475
    %v3477 = vpop.f32.mrf.mxu0
    %v3478 = vpop.f32.mrf.mxu0
    %v3479 = vadd.f32 %v3367, %v3478
    %v3480 = vpop.f32.mrf.mxu0
    %3481 = vmatprep.mubr.bf16.mxu0 0
    %3482 = vmatmul.mubr.bf16.gmra.mxu0 %v3342
    %v3483 = vpop.f32.mrf.mxu0
    %v3484 = vadd.f32 %v3367, %v3483
    %v3485 = vpop.f32.mrf.mxu0
    %v3486 = vpop.f32.mrf.mxu0
    %v3487 = vadd.f32 %v3367, %v3486
    %v3488 = vpop.f32.mrf.mxu0
    %3489 = vmatprep.mubr.bf16.mxu0 0
    %3490 = vmatmul.mubr.bf16.gmra.mxu0 %v3343
    %v3491 = vpop.f32.mrf.mxu0
    %v3492 = vadd.f32 %v3367, %v3491
    %v3493 = vpop.f32.mrf.mxu0
    %v3494 = vpop.f32.mrf.mxu0
    %v3495 = vadd.f32 %v3367, %v3494
    %v3496 = vpop.f32.mrf.mxu0
    %3497 = vmatprep.mubr.bf16.mxu0 0
    %3498 = vmatmul.mubr.bf16.gmra.mxu0 %v3344
    %v3499 = vpop.f32.mrf.mxu0
    %v3500 = vadd.f32 %v3367, %v3499
    %v3501 = vpop.f32.mrf.mxu0
    %v3502 = vpop.f32.mrf.mxu0
    %v3503 = vadd.f32 %v3367, %v3502
    %v3504 = vpop.f32.mrf.mxu0
    %3505 = vmatprep.mubr.bf16.mxu0 0
    %3506 = vmatmul.mubr.bf16.gmra.mxu0 %v3345
    %v3507 = vpop.f32.mrf.mxu0
    %v3508 = vadd.f32 %v3367, %v3507
    %v3509 = vpop.f32.mrf.mxu0
    %v3510 = vpop.f32.mrf.mxu0
    %v3511 = vadd.f32 %v3367, %v3510
    %v3512 = vpop.f32.mrf.mxu0
    %3513 = vdwg.mxu0
    %v3514 = vadd.f32 %v43, %v3452
    %v3515 = vadd.f32 %v44, %v3455
    %v3516 = vadd.f32 %v45, %v3460
    %v3517 = vadd.f32 %v46, %v3463
    %v3518 = vadd.f32 %v47, %v3468
    %v3519 = vadd.f32 %v48, %v3471
    %v3520 = vadd.f32 %v49, %v3476
    %v3521 = vadd.f32 %v50, %v3479
    %v3522 = vadd.f32 %v51, %v3484
    %v3523 = vadd.f32 %v52, %v3487
    %v3524 = vadd.f32 %v53, %v3492
    %v3525 = vadd.f32 %v54, %v3495
    %v3526 = vadd.f32 %v55, %v3500
    %v3527 = vadd.f32 %v56, %v3503
    %v3528 = vadd.f32 %v57, %v3508
    %v3529 = vadd.f32 %v58, %v3511
    %3530 = vadd.xlane.f32.xlu0 %v3514
    %v3531 = vpop.xlane.xlu0 %3530
    %3532 = vadd.xlane.f32.xlu0 %v3515
    %v3533 = vpop.xlane.xlu0 %3532
    %3534 = vadd.xlane.f32.xlu0 %v3516
    %v3535 = vpop.xlane.xlu0 %3534
    %3536 = vadd.xlane.f32.xlu0 %v3517
    %v3537 = vpop.xlane.xlu0 %3536
    %3538 = vadd.xlane.f32.xlu0 %v3518
    %v3539 = vpop.xlane.xlu0 %3538
    %3540 = vadd.xlane.f32.xlu0 %v3519
    %v3541 = vpop.xlane.xlu0 %3540
    %3542 = vadd.xlane.f32.xlu0 %v3520
    %v3543 = vpop.xlane.xlu0 %3542
    %3544 = vadd.xlane.f32.xlu0 %v3521
    %v3545 = vpop.xlane.xlu0 %3544
    %3546 = vadd.xlane.f32.xlu0 %v3522
    %v3547 = vpop.xlane.xlu0 %3546
    %3548 = vadd.xlane.f32.xlu0 %v3523
    %v3549 = vpop.xlane.xlu0 %3548
    %3550 = vadd.xlane.f32.xlu0 %v3524
    %v3551 = vpop.xlane.xlu0 %3550
    %3552 = vadd.xlane.f32.xlu0 %v3525
    %v3553 = vpop.xlane.xlu0 %3552
    %3554 = vadd.xlane.f32.xlu0 %v3526
    %v3555 = vpop.xlane.xlu0 %3554
    %3556 = vadd.xlane.f32.xlu0 %v3527
    %v3557 = vpop.xlane.xlu0 %3556
    %3558 = vadd.xlane.f32.xlu0 %v3528
    %v3559 = vpop.xlane.xlu0 %3558
    %3560 = vadd.xlane.f32.xlu0 %v3529
    %v3561 = vpop.xlane.xlu0 %3560
    %v3562 = vmul.f32 %v3531, %v91
    %v3563 = vmul.f32 %v3533, %v91
    %v3564 = vmul.f32 %v3535, %v91
    %v3565 = vmul.f32 %v3537, %v91
    %v3566 = vmul.f32 %v3539, %v91
    %v3567 = vmul.f32 %v3541, %v91
    %v3568 = vmul.f32 %v3543, %v91
    %v3569 = vmul.f32 %v3545, %v91
    %v3570 = vmul.f32 %v3547, %v91
    %v3571 = vmul.f32 %v3549, %v91
    %v3572 = vmul.f32 %v3551, %v91
    %v3573 = vmul.f32 %v3553, %v91
    %v3574 = vmul.f32 %v3555, %v91
    %v3575 = vmul.f32 %v3557, %v91
    %v3576 = vmul.f32 %v3559, %v91
    %v3577 = vmul.f32 %v3561, %v91
    %v3578 = vsub.f32 %v3514, %v3562
    %v3579 = vsub.f32 %v3515, %v3563
    %v3580 = vsub.f32 %v3516, %v3564
    %v3581 = vsub.f32 %v3517, %v3565
    %v3582 = vsub.f32 %v3518, %v3566
    %v3583 = vsub.f32 %v3519, %v3567
    %v3584 = vsub.f32 %v3520, %v3568
    %v3585 = vsub.f32 %v3521, %v3569
    %v3586 = vsub.f32 %v3522, %v3570
    %v3587 = vsub.f32 %v3523, %v3571
    %v3588 = vsub.f32 %v3524, %v3572
    %v3589 = vsub.f32 %v3525, %v3573
    %v3590 = vsub.f32 %v3526, %v3574
    %v3591 = vsub.f32 %v3527, %v3575
    %v3592 = vsub.f32 %v3528, %v3576
    %v3593 = vsub.f32 %v3529, %v3577
    %v3594 = vmul.f32 %v3578, %v3578
    %v3595 = vmul.f32 %v3579, %v3579
    %v3596 = vmul.f32 %v3580, %v3580
    %v3597 = vmul.f32 %v3581, %v3581
    %v3598 = vmul.f32 %v3582, %v3582
    %v3599 = vmul.f32 %v3583, %v3583
    %v3600 = vmul.f32 %v3584, %v3584
    %v3601 = vmul.f32 %v3585, %v3585
    %v3602 = vmul.f32 %v3586, %v3586
    %v3603 = vmul.f32 %v3587, %v3587
    %v3604 = vmul.f32 %v3588, %v3588
    %v3605 = vmul.f32 %v3589, %v3589
    %v3606 = vmul.f32 %v3590, %v3590
    %v3607 = vmul.f32 %v3591, %v3591
    %v3608 = vmul.f32 %v3592, %v3592
    %v3609 = vmul.f32 %v3593, %v3593
    %3610 = vadd.xlane.f32.xlu0 %v3594
    %v3611 = vpop.xlane.xlu0 %3610
    %3612 = vadd.xlane.f32.xlu0 %v3595
    %v3613 = vpop.xlane.xlu0 %3612
    %3614 = vadd.xlane.f32.xlu0 %v3596
    %v3615 = vpop.xlane.xlu0 %3614
    %3616 = vadd.xlane.f32.xlu0 %v3597
    %v3617 = vpop.xlane.xlu0 %3616
    %3618 = vadd.xlane.f32.xlu0 %v3598
    %v3619 = vpop.xlane.xlu0 %3618
    %3620 = vadd.xlane.f32.xlu0 %v3599
    %v3621 = vpop.xlane.xlu0 %3620
    %3622 = vadd.xlane.f32.xlu0 %v3600
    %v3623 = vpop.xlane.xlu0 %3622
    %3624 = vadd.xlane.f32.xlu0 %v3601
    %v3625 = vpop.xlane.xlu0 %3624
    %3626 = vadd.xlane.f32.xlu0 %v3602
    %v3627 = vpop.xlane.xlu0 %3626
    %3628 = vadd.xlane.f32.xlu0 %v3603
    %v3629 = vpop.xlane.xlu0 %3628
    %3630 = vadd.xlane.f32.xlu0 %v3604
    %v3631 = vpop.xlane.xlu0 %3630
    %3632 = vadd.xlane.f32.xlu0 %v3605
    %v3633 = vpop.xlane.xlu0 %3632
    %3634 = vadd.xlane.f32.xlu0 %v3606
    %v3635 = vpop.xlane.xlu0 %3634
    %3636 = vadd.xlane.f32.xlu0 %v3607
    %v3637 = vpop.xlane.xlu0 %3636
    %3638 = vadd.xlane.f32.xlu0 %v3608
    %v3639 = vpop.xlane.xlu0 %3638
    %3640 = vadd.xlane.f32.xlu0 %v3609
    %v3641 = vpop.xlane.xlu0 %3640
    %v3642 = vmul.f32 %v3611, %v91
    %v3643 = vmul.f32 %v3613, %v91
    %v3644 = vmul.f32 %v3615, %v91
    %v3645 = vmul.f32 %v3617, %v91
    %v3646 = vmul.f32 %v3619, %v91
    %v3647 = vmul.f32 %v3621, %v91
    %v3648 = vmul.f32 %v3623, %v91
    %v3649 = vmul.f32 %v3625, %v91
    %v3650 = vmul.f32 %v3627, %v91
    %v3651 = vmul.f32 %v3629, %v91
    %v3652 = vmul.f32 %v3631, %v91
    %v3653 = vmul.f32 %v3633, %v91
    %v3654 = vmul.f32 %v3635, %v91
    %v3655 = vmul.f32 %v3637, %v91
    %v3656 = vmul.f32 %v3639, %v91
    %v3657 = vmul.f32 %v3641, %v91
    %v3658 = vadd.f32 %v3642, 1e-05
    %v3659 = vadd.f32 %v3643, 1e-05
    %v3660 = vadd.f32 %v3644, 1e-05
    %v3661 = vadd.f32 %v3645, 1e-05
    %v3662 = vadd.f32 %v3646, 1e-05
    %v3663 = vadd.f32 %v3647, 1e-05
    %v3664 = vadd.f32 %v3648, 1e-05
    %v3665 = vadd.f32 %v3649, 1e-05
    %v3666 = vadd.f32 %v3650, 1e-05
    %v3667 = vadd.f32 %v3651, 1e-05
    %v3668 = vadd.f32 %v3652, 1e-05
    %v3669 = vadd.f32 %v3653, 1e-05
    %v3670 = vadd.f32 %v3654, 1e-05
    %v3671 = vadd.f32 %v3655, 1e-05
    %v3672 = vadd.f32 %v3656, 1e-05
    %v3673 = vadd.f32 %v3657, 1e-05
    %v3674 = vrsqrt.pop %v3658
    %v3675 = vrsqrt.pop %v3659
    %v3676 = vrsqrt.pop %v3660
    %v3677 = vrsqrt.pop %v3661
    %v3678 = vrsqrt.pop %v3662
    %v3679 = vrsqrt.pop %v3663
    %v3680 = vrsqrt.pop %v3664
    %v3681 = vrsqrt.pop %v3665
    %v3682 = vrsqrt.pop %v3666
    %v3683 = vrsqrt.pop %v3667
    %v3684 = vrsqrt.pop %v3668
    %v3685 = vrsqrt.pop %v3669
    %v3686 = vrsqrt.pop %v3670
    %v3687 = vrsqrt.pop %v3671
    %v3688 = vrsqrt.pop %v3672
    %v3689 = vrsqrt.pop %v3673
    %v3690 = vmul.f32 %v3578, %v3674
    %v3691 = vmul.f32 %v3579, %v3675
    %v3692 = vmul.f32 %v3580, %v3676
    %v3693 = vmul.f32 %v3581, %v3677
    %v3694 = vmul.f32 %v3582, %v3678
    %v3695 = vmul.f32 %v3583, %v3679
    %v3696 = vmul.f32 %v3584, %v3680
    %v3697 = vmul.f32 %v3585, %v3681
    %v3698 = vmul.f32 %v3586, %v3682
    %v3699 = vmul.f32 %v3587, %v3683
    %v3700 = vmul.f32 %v3588, %v3684
    %v3701 = vmul.f32 %v3589, %v3685
    %v3702 = vmul.f32 %v3590, %v3686
    %v3703 = vmul.f32 %v3591, %v3687
    %v3704 = vmul.f32 %v3592, %v3688
    %v3705 = vmul.f32 %v3593, %v3689
    %v3706 = vld [vmem:[%s6] sm:$0x1]
    %v3708 = vlaneseq
    %v3709 = vshrl.u32 %v3708, 7
    %v3710 = vsub.s32 0, %v3709
    %v3711 = vrot.slane %v3706, %v3710
    %v3713 = vmul.f32 %v3690, %v3711
    %v3714 = vmul.f32 %v3691, %v3711
    %v3715 = vmul.f32 %v3692, %v3711
    %v3716 = vmul.f32 %v3693, %v3711
    %v3717 = vmul.f32 %v3694, %v3711
    %v3718 = vmul.f32 %v3695, %v3711
    %v3719 = vmul.f32 %v3696, %v3711
    %v3720 = vmul.f32 %v3697, %v3711
    %v3721 = vmul.f32 %v3698, %v3711
    %v3722 = vmul.f32 %v3699, %v3711
    %v3723 = vmul.f32 %v3700, %v3711
    %v3724 = vmul.f32 %v3701, %v3711
    %v3725 = vmul.f32 %v3702, %v3711
    %v3726 = vmul.f32 %v3703, %v3711
    %v3727 = vmul.f32 %v3704, %v3711
    %v3728 = vmul.f32 %v3705, %v3711
    %v3729 = vld [vmem:[%s7] sm:$0x1]
    %v3731 = vlaneseq
    %v3732 = vshrl.u32 %v3731, 7
    %v3733 = vsub.s32 0, %v3732
    %v3734 = vrot.slane %v3729, %v3733
    %v3736 = vadd.f32 %v3713, %v3734
    %v3737 = vadd.f32 %v3714, %v3734
    %v3738 = vadd.f32 %v3715, %v3734
    %v3739 = vadd.f32 %v3716, %v3734
    %v3740 = vadd.f32 %v3717, %v3734
    %v3741 = vadd.f32 %v3718, %v3734
    %v3742 = vadd.f32 %v3719, %v3734
    %v3743 = vadd.f32 %v3720, %v3734
    %v3744 = vadd.f32 %v3721, %v3734
    %v3745 = vadd.f32 %v3722, %v3734
    %v3746 = vadd.f32 %v3723, %v3734
    %v3747 = vadd.f32 %v3724, %v3734
    %v3748 = vadd.f32 %v3725, %v3734
    %v3749 = vadd.f32 %v3726, %v3734
    %v3750 = vadd.f32 %v3727, %v3734
    %v3751 = vadd.f32 %v3728, %v3734
    %v3752 = vpack.c.bf16 %v3737, %v3736
    %v3753 = vpack.c.bf16 %v3739, %v3738
    %v3754 = vpack.c.bf16 %v3741, %v3740
    %v3755 = vpack.c.bf16 %v3743, %v3742
    %v3756 = vpack.c.bf16 %v3745, %v3744
    %v3757 = vpack.c.bf16 %v3747, %v3746
    %v3758 = vpack.c.bf16 %v3749, %v3748
    %v3759 = vpack.c.bf16 %v3751, %v3750
    %v3760 = vld [vmem:[%s9] sm:$0xf]
    %v3761 = vld [vmem:[%s8] sm:$0xf]
    %v3762 = vld [vmem:[%s8 + $0x10] sm:$0xf]
    %v3763 = vld [vmem:[%s8 + $0x20] sm:$0xf]
    %v3764 = vld [vmem:[%s8 + $0x30] sm:$0xf]
    %v3765 = vld [vmem:[%s8 + $0x40] sm:$0xf]
    %v3766 = vld [vmem:[%s8 + $0x50] sm:$0xf]
    %v3767 = vld [vmem:[%s8 + $0x60] sm:$0xf]
    %v3768 = vld [vmem:[%s8 + $0x70] sm:$0xf]
    %v3769 = vld [vmem:[%s8 + $0x80] sm:$0xf]
    %v3770 = vld [vmem:[%s8 + $0x90] sm:$0xf]
    %v3771 = vld [vmem:[%s8 + $0xa0] sm:$0xf]
    %v3772 = vld [vmem:[%s8 + $0xb0] sm:$0xf]
    %v3773 = vld [vmem:[%s8 + $0xc0] sm:$0xf]
    %v3774 = vld [vmem:[%s8 + $0xd0] sm:$0xf]
    %v3775 = vld [vmem:[%s8 + $0xe0] sm:$0xf]
    %v3776 = vld [vmem:[%s8 + $0xf0] sm:$0xf]
    %v3778 = vlaneseq
    %v3779 = vshrl.u32 %v3778, 7
    %v3780 = vsub.s32 0, %v3779
    %v3781 = vrot.slane %v3760, %v3780
    %v3799 = vunpack.c.l.b16 %v3761
    %v3800 = vunpack.c.l.b16 %v3762
    %v3801 = vunpack.c.l.b16 %v3763
    %v3802 = vunpack.c.l.b16 %v3764
    %v3803 = vunpack.c.l.b16 %v3765
    %v3804 = vunpack.c.l.b16 %v3766
    %v3805 = vunpack.c.l.b16 %v3767
    %v3806 = vunpack.c.l.b16 %v3768
    %v3807 = vunpack.c.l.b16 %v3769
    %v3808 = vunpack.c.l.b16 %v3770
    %v3809 = vunpack.c.l.b16 %v3771
    %v3810 = vunpack.c.l.b16 %v3772
    %v3811 = vunpack.c.l.b16 %v3773
    %v3812 = vunpack.c.l.b16 %v3774
    %v3813 = vunpack.c.l.b16 %v3775
    %v3814 = vunpack.c.l.b16 %v3776
    %v3815 = vpack.c.b16 %v3800, %v3799
    %v3816 = vpack.c.b16 %v3802, %v3801
    %v3817 = vpack.c.b16 %v3804, %v3803
    %v3818 = vpack.c.b16 %v3806, %v3805
    %v3819 = vpack.c.b16 %v3808, %v3807
    %v3820 = vpack.c.b16 %v3810, %v3809
    %v3821 = vpack.c.b16 %v3812, %v3811
    %v3822 = vpack.c.b16 %v3814, %v3813
    %3831 = vmatprep.subr.bf16.mxu0 0
    %3832 = vmatpush1.bf16.msra.mxu0 %v3822
    %3833 = vmatprep.subr.bf16.mxu0 0
    %3834 = vmatpush1.bf16.msra.mxu0 %v3821
    %3835 = vmatprep.subr.bf16.mxu0 0
    %3836 = vmatpush1.bf16.msra.mxu0 %v3820
    %3837 = vmatprep.subr.bf16.mxu0 0
    %3838 = vmatpush1.bf16.msra.mxu0 %v3819
    %3839 = vmatprep.subr.bf16.mxu0 0
    %3840 = vmatpush1.bf16.msra.mxu0 %v3818
    %3841 = vmatprep.subr.bf16.mxu0 0
    %3842 = vmatpush1.bf16.msra.mxu0 %v3817
    %3843 = vmatprep.subr.bf16.mxu0 0
    %3844 = vmatpush1.bf16.msra.mxu0 %v3816
    %3845 = vmatprep.subr.bf16.mxu0 0
    %3846 = vmatpush1.bf16.msra.mxu0 %v3815
    %3847 = vmatprep.subr.bf16.mxu0 0
    %3848 = vmatpush2.bf16.msra.mxu0 0
    %3849 = vmatprep.subr.bf16.mxu0 0
    %3850 = vmatpush2.bf16.msra.mxu0 0
    %3851 = vmatprep.subr.bf16.mxu0 0
    %3852 = vmatpush2.bf16.msra.mxu0 0
    %3853 = vmatprep.subr.bf16.mxu0 0
    %3854 = vmatpush2.bf16.msra.mxu0 0
    %3855 = vmatprep.subr.bf16.mxu0 0
    %3856 = vmatpush2.bf16.msra.mxu0 0
    %3857 = vmatprep.subr.bf16.mxu0 0
    %3858 = vmatpush2.bf16.msra.mxu0 0
    %3859 = vmatprep.subr.bf16.mxu0 0
    %3860 = vmatpush2.bf16.msra.mxu0 0
    %3861 = vmatprep.subr.bf16.mxu0 0
    %3862 = vmatpush2.bf16.msra.mxu0 0
    %3863 = vmatprep.mubr.bf16.mxu0 0
    %3864 = vmatmul.mubr.bf16.gmra.mxu0 %v3752
    %v3865 = vpop.f32.mrf.mxu0
    %v3866 = vadd.f32 %v3781, %v3865
    %v3867 = vpop.f32.mrf.mxu0
    %v3868 = vpop.f32.mrf.mxu0
    %v3869 = vadd.f32 %v3781, %v3868
    %v3870 = vpop.f32.mrf.mxu0
    %3871 = vmatprep.mubr.bf16.mxu0 0
    %3872 = vmatmul.mubr.bf16.gmra.mxu0 %v3753
    %v3873 = vpop.f32.mrf.mxu0
    %v3874 = vadd.f32 %v3781, %v3873
    %v3875 = vpop.f32.mrf.mxu0
    %v3876 = vpop.f32.mrf.mxu0
    %v3877 = vadd.f32 %v3781, %v3876
    %v3878 = vpop.f32.mrf.mxu0
    %3879 = vmatprep.mubr.bf16.mxu0 0
    %3880 = vmatmul.mubr.bf16.gmra.mxu0 %v3754
    %v3881 = vpop.f32.mrf.mxu0
    %v3882 = vadd.f32 %v3781, %v3881
    %v3883 = vpop.f32.mrf.mxu0
    %v3884 = vpop.f32.mrf.mxu0
    %v3885 = vadd.f32 %v3781, %v3884
    %v3886 = vpop.f32.mrf.mxu0
    %3887 = vmatprep.mubr.bf16.mxu0 0
    %3888 = vmatmul.mubr.bf16.gmra.mxu0 %v3755
    %v3889 = vpop.f32.mrf.mxu0
    %v3890 = vadd.f32 %v3781, %v3889
    %v3891 = vpop.f32.mrf.mxu0
    %v3892 = vpop.f32.mrf.mxu0
    %v3893 = vadd.f32 %v3781, %v3892
    %v3894 = vpop.f32.mrf.mxu0
    %3895 = vmatprep.mubr.bf16.mxu0 0
    %3896 = vmatmul.mubr.bf16.gmra.mxu0 %v3756
    %v3897 = vpop.f32.mrf.mxu0
    %v3898 = vadd.f32 %v3781, %v3897
    %v3899 = vpop.f32.mrf.mxu0
    %v3900 = vpop.f32.mrf.mxu0
    %v3901 = vadd.f32 %v3781, %v3900
    %v3902 = vpop.f32.mrf.mxu0
    %3903 = vmatprep.mubr.bf16.mxu0 0
    %3904 = vmatmul.mubr.bf16.gmra.mxu0 %v3757
    %v3905 = vpop.f32.mrf.mxu0
    %v3906 = vadd.f32 %v3781, %v3905
    %v3907 = vpop.f32.mrf.mxu0
    %v3908 = vpop.f32.mrf.mxu0
    %v3909 = vadd.f32 %v3781, %v3908
    %v3910 = vpop.f32.mrf.mxu0
    %3911 = vmatprep.mubr.bf16.mxu0 0
    %3912 = vmatmul.mubr.bf16.gmra.mxu0 %v3758
    %v3913 = vpop.f32.mrf.mxu0
    %v3914 = vadd.f32 %v3781, %v3913
    %v3915 = vpop.f32.mrf.mxu0
    %v3916 = vpop.f32.mrf.mxu0
    %v3917 = vadd.f32 %v3781, %v3916
    %v3918 = vpop.f32.mrf.mxu0
    %3919 = vmatprep.mubr.bf16.mxu0 0
    %3920 = vmatmul.mubr.bf16.gmra.mxu0 %v3759
    %v3921 = vpop.f32.mrf.mxu0
    %v3922 = vadd.f32 %v3781, %v3921
    %v3923 = vpop.f32.mrf.mxu0
    %v3924 = vpop.f32.mrf.mxu0
    %v3925 = vadd.f32 %v3781, %v3924
    %v3926 = vpop.f32.mrf.mxu0
    %3927 = vdwg.mxu0
    %v3928 = vmax.f32 %v3866, 0.0
    %v3929 = vmax.f32 %v3869, 0.0
    %v3930 = vmax.f32 %v3874, 0.0
    %v3931 = vmax.f32 %v3877, 0.0
    %v3932 = vmax.f32 %v3882, 0.0
    %v3933 = vmax.f32 %v3885, 0.0
    %v3934 = vmax.f32 %v3890, 0.0
    %v3935 = vmax.f32 %v3893, 0.0
    %v3936 = vmax.f32 %v3898, 0.0
    %v3937 = vmax.f32 %v3901, 0.0
    %v3938 = vmax.f32 %v3906, 0.0
    %v3939 = vmax.f32 %v3909, 0.0
    %v3940 = vmax.f32 %v3914, 0.0
    %v3941 = vmax.f32 %v3917, 0.0
    %v3942 = vmax.f32 %v3922, 0.0
    %v3943 = vmax.f32 %v3925, 0.0
    %v3944 = vpack.c.bf16 %v3929, %v3928
    %v3945 = vpack.c.bf16 %v3931, %v3930
    %v3946 = vpack.c.bf16 %v3933, %v3932
    %v3947 = vpack.c.bf16 %v3935, %v3934
    %v3948 = vpack.c.bf16 %v3937, %v3936
    %v3949 = vpack.c.bf16 %v3939, %v3938
    %v3950 = vpack.c.bf16 %v3941, %v3940
    %v3951 = vpack.c.bf16 %v3943, %v3942
    %v3952 = vld [vmem:[%s10] sm:$0xf]
    %v3953 = vld [vmem:[%s10 + $0x4] sm:$0xf]
    %v3954 = vld [vmem:[%s10 + $0x8] sm:$0xf]
    %v3955 = vld [vmem:[%s10 + $0xc] sm:$0xf]
    %v3956 = vld [vmem:[%s10 + $0x10] sm:$0xf]
    %v3957 = vld [vmem:[%s10 + $0x14] sm:$0xf]
    %v3958 = vld [vmem:[%s10 + $0x18] sm:$0xf]
    %v3959 = vld [vmem:[%s10 + $0x1c] sm:$0xf]
    %v3960 = vld [vmem:[%s10 + $0x20] sm:$0xf]
    %v3961 = vld [vmem:[%s10 + $0x24] sm:$0xf]
    %v3962 = vld [vmem:[%s10 + $0x28] sm:$0xf]
    %v3963 = vld [vmem:[%s10 + $0x2c] sm:$0xf]
    %v3964 = vld [vmem:[%s10 + $0x30] sm:$0xf]
    %v3965 = vld [vmem:[%s10 + $0x34] sm:$0xf]
    %v3966 = vld [vmem:[%s10 + $0x38] sm:$0xf]
    %v3967 = vld [vmem:[%s10 + $0x3c] sm:$0xf]
    %v3968 = vld [vmem:[%s8 + $0x4] sm:$0xf]
    %v3969 = vld [vmem:[%s8 + $0x14] sm:$0xf]
    %v3970 = vld [vmem:[%s8 + $0x24] sm:$0xf]
    %v3971 = vld [vmem:[%s8 + $0x34] sm:$0xf]
    %v3972 = vld [vmem:[%s8 + $0x44] sm:$0xf]
    %v3973 = vld [vmem:[%s8 + $0x54] sm:$0xf]
    %v3974 = vld [vmem:[%s8 + $0x64] sm:$0xf]
    %v3975 = vld [vmem:[%s8 + $0x74] sm:$0xf]
    %v3976 = vld [vmem:[%s8 + $0x84] sm:$0xf]
    %v3977 = vld [vmem:[%s8 + $0x94] sm:$0xf]
    %v3978 = vld [vmem:[%s8 + $0xa4] sm:$0xf]
    %v3979 = vld [vmem:[%s8 + $0xb4] sm:$0xf]
    %v3980 = vld [vmem:[%s8 + $0xc4] sm:$0xf]
    %v3981 = vld [vmem:[%s8 + $0xd4] sm:$0xf]
    %v3982 = vld [vmem:[%s8 + $0xe4] sm:$0xf]
    %v3983 = vld [vmem:[%s8 + $0xf4] sm:$0xf]
    %v3984 = vrot.slane %v3760, 1
    %v3985 = vlaneseq
    %v3986 = vshrl.u32 %v3985, 7
    %v3987 = vsub.s32 0, %v3986
    %v3988 = vrot.slane %v3984, %v3987
    %v4006 = vunpack.c.l.b16 %v3968
    %v4007 = vunpack.c.l.b16 %v3969
    %v4008 = vunpack.c.l.b16 %v3970
    %v4009 = vunpack.c.l.b16 %v3971
    %v4010 = vunpack.c.l.b16 %v3972
    %v4011 = vunpack.c.l.b16 %v3973
    %v4012 = vunpack.c.l.b16 %v3974
    %v4013 = vunpack.c.l.b16 %v3975
    %v4014 = vunpack.c.l.b16 %v3976
    %v4015 = vunpack.c.l.b16 %v3977
    %v4016 = vunpack.c.l.b16 %v3978
    %v4017 = vunpack.c.l.b16 %v3979
    %v4018 = vunpack.c.l.b16 %v3980
    %v4019 = vunpack.c.l.b16 %v3981
    %v4020 = vunpack.c.l.b16 %v3982
    %v4021 = vunpack.c.l.b16 %v3983
    %v4022 = vpack.c.b16 %v4007, %v4006
    %v4023 = vpack.c.b16 %v4009, %v4008
    %v4024 = vpack.c.b16 %v4011, %v4010
    %v4025 = vpack.c.b16 %v4013, %v4012
    %v4026 = vpack.c.b16 %v4015, %v4014
    %v4027 = vpack.c.b16 %v4017, %v4016
    %v4028 = vpack.c.b16 %v4019, %v4018
    %v4029 = vpack.c.b16 %v4021, %v4020
    %4038 = vmatprep.subr.bf16.mxu0 0
    %4039 = vmatpush1.bf16.msra.mxu0 %v4029
    %4040 = vmatprep.subr.bf16.mxu0 0
    %4041 = vmatpush1.bf16.msra.mxu0 %v4028
    %4042 = vmatprep.subr.bf16.mxu0 0
    %4043 = vmatpush1.bf16.msra.mxu0 %v4027
    %4044 = vmatprep.subr.bf16.mxu0 0
    %4045 = vmatpush1.bf16.msra.mxu0 %v4026
    %4046 = vmatprep.subr.bf16.mxu0 0
    %4047 = vmatpush1.bf16.msra.mxu0 %v4025
    %4048 = vmatprep.subr.bf16.mxu0 0
    %4049 = vmatpush1.bf16.msra.mxu0 %v4024
    %4050 = vmatprep.subr.bf16.mxu0 0
    %4051 = vmatpush1.bf16.msra.mxu0 %v4023
    %4052 = vmatprep.subr.bf16.mxu0 0
    %4053 = vmatpush1.bf16.msra.mxu0 %v4022
    %4054 = vmatprep.subr.bf16.mxu0 0
    %4055 = vmatpush2.bf16.msra.mxu0 0
    %4056 = vmatprep.subr.bf16.mxu0 0
    %4057 = vmatpush2.bf16.msra.mxu0 0
    %4058 = vmatprep.subr.bf16.mxu0 0
    %4059 = vmatpush2.bf16.msra.mxu0 0
    %4060 = vmatprep.subr.bf16.mxu0 0
    %4061 = vmatpush2.bf16.msra.mxu0 0
    %4062 = vmatprep.subr.bf16.mxu0 0
    %4063 = vmatpush2.bf16.msra.mxu0 0
    %4064 = vmatprep.subr.bf16.mxu0 0
    %4065 = vmatpush2.bf16.msra.mxu0 0
    %4066 = vmatprep.subr.bf16.mxu0 0
    %4067 = vmatpush2.bf16.msra.mxu0 0
    %4068 = vmatprep.subr.bf16.mxu0 0
    %4069 = vmatpush2.bf16.msra.mxu0 0
    %4070 = vmatprep.mubr.bf16.mxu0 0
    %4071 = vmatmul.mubr.bf16.gmra.mxu0 %v3752
    %v4072 = vpop.f32.mrf.mxu0
    %v4073 = vadd.f32 %v3988, %v4072
    %v4074 = vpop.f32.mrf.mxu0
    %v4075 = vpop.f32.mrf.mxu0
    %v4076 = vadd.f32 %v3988, %v4075
    %v4077 = vpop.f32.mrf.mxu0
    %4078 = vmatprep.mubr.bf16.mxu0 0
    %4079 = vmatmul.mubr.bf16.gmra.mxu0 %v3753
    %v4080 = vpop.f32.mrf.mxu0
    %v4081 = vadd.f32 %v3988, %v4080
    %v4082 = vpop.f32.mrf.mxu0
    %v4083 = vpop.f32.mrf.mxu0
    %v4084 = vadd.f32 %v3988, %v4083
    %v4085 = vpop.f32.mrf.mxu0
    %4086 = vmatprep.mubr.bf16.mxu0 0
    %4087 = vmatmul.mubr.bf16.gmra.mxu0 %v3754
    %v4088 = vpop.f32.mrf.mxu0
    %v4089 = vadd.f32 %v3988, %v4088
    %v4090 = vpop.f32.mrf.mxu0
    %v4091 = vpop.f32.mrf.mxu0
    %v4092 = vadd.f32 %v3988, %v4091
    %v4093 = vpop.f32.mrf.mxu0
    %4094 = vmatprep.mubr.bf16.mxu0 0
    %4095 = vmatmul.mubr.bf16.gmra.mxu0 %v3755
    %v4096 = vpop.f32.mrf.mxu0
    %v4097 = vadd.f32 %v3988, %v4096
    %v4098 = vpop.f32.mrf.mxu0
    %v4099 = vpop.f32.mrf.mxu0
    %v4100 = vadd.f32 %v3988, %v4099
    %v4101 = vpop.f32.mrf.mxu0
    %4102 = vmatprep.mubr.bf16.mxu0 0
    %4103 = vmatmul.mubr.bf16.gmra.mxu0 %v3756
    %v4104 = vpop.f32.mrf.mxu0
    %v4105 = vadd.f32 %v3988, %v4104
    %v4106 = vpop.f32.mrf.mxu0
    %v4107 = vpop.f32.mrf.mxu0
    %v4108 = vadd.f32 %v3988, %v4107
    %v4109 = vpop.f32.mrf.mxu0
    %4110 = vmatprep.mubr.bf16.mxu0 0
    %4111 = vmatmul.mubr.bf16.gmra.mxu0 %v3757
    %v4112 = vpop.f32.mrf.mxu0
    %v4113 = vadd.f32 %v3988, %v4112
    %v4114 = vpop.f32.mrf.mxu0
    %v4115 = vpop.f32.mrf.mxu0
    %v4116 = vadd.f32 %v3988, %v4115
    %v4117 = vpop.f32.mrf.mxu0
    %4118 = vmatprep.mubr.bf16.mxu0 0
    %4119 = vmatmul.mubr.bf16.gmra.mxu0 %v3758
    %v4120 = vpop.f32.mrf.mxu0
    %v4121 = vadd.f32 %v3988, %v4120
    %v4122 = vpop.f32.mrf.mxu0
    %v4123 = vpop.f32.mrf.mxu0
    %v4124 = vadd.f32 %v3988, %v4123
    %v4125 = vpop.f32.mrf.mxu0
    %4126 = vmatprep.mubr.bf16.mxu0 0
    %4127 = vmatmul.mubr.bf16.gmra.mxu0 %v3759
    %v4128 = vpop.f32.mrf.mxu0
    %v4129 = vadd.f32 %v3988, %v4128
    %v4130 = vpop.f32.mrf.mxu0
    %v4131 = vpop.f32.mrf.mxu0
    %v4132 = vadd.f32 %v3988, %v4131
    %v4133 = vpop.f32.mrf.mxu0
    %4134 = vdwg.mxu0
    %v4135 = vmax.f32 %v4073, 0.0
    %v4136 = vmax.f32 %v4076, 0.0
    %v4137 = vmax.f32 %v4081, 0.0
    %v4138 = vmax.f32 %v4084, 0.0
    %v4139 = vmax.f32 %v4089, 0.0
    %v4140 = vmax.f32 %v4092, 0.0
    %v4141 = vmax.f32 %v4097, 0.0
    %v4142 = vmax.f32 %v4100, 0.0
    %v4143 = vmax.f32 %v4105, 0.0
    %v4144 = vmax.f32 %v4108, 0.0
    %v4145 = vmax.f32 %v4113, 0.0
    %v4146 = vmax.f32 %v4116, 0.0
    %v4147 = vmax.f32 %v4121, 0.0
    %v4148 = vmax.f32 %v4124, 0.0
    %v4149 = vmax.f32 %v4129, 0.0
    %v4150 = vmax.f32 %v4132, 0.0
    %v4151 = vpack.c.bf16 %v4136, %v4135
    %v4152 = vpack.c.bf16 %v4138, %v4137
    %v4153 = vpack.c.bf16 %v4140, %v4139
    %v4154 = vpack.c.bf16 %v4142, %v4141
    %v4155 = vpack.c.bf16 %v4144, %v4143
    %v4156 = vpack.c.bf16 %v4146, %v4145
    %v4157 = vpack.c.bf16 %v4148, %v4147
    %v4158 = vpack.c.bf16 %v4150, %v4149
    %v4159 = vld [vmem:[%s10 + $0x40] sm:$0xf]
    %v4160 = vld [vmem:[%s10 + $0x44] sm:$0xf]
    %v4161 = vld [vmem:[%s10 + $0x48] sm:$0xf]
    %v4162 = vld [vmem:[%s10 + $0x4c] sm:$0xf]
    %v4163 = vld [vmem:[%s10 + $0x50] sm:$0xf]
    %v4164 = vld [vmem:[%s10 + $0x54] sm:$0xf]
    %v4165 = vld [vmem:[%s10 + $0x58] sm:$0xf]
    %v4166 = vld [vmem:[%s10 + $0x5c] sm:$0xf]
    %v4167 = vld [vmem:[%s10 + $0x60] sm:$0xf]
    %v4168 = vld [vmem:[%s10 + $0x64] sm:$0xf]
    %v4169 = vld [vmem:[%s10 + $0x68] sm:$0xf]
    %v4170 = vld [vmem:[%s10 + $0x6c] sm:$0xf]
    %v4171 = vld [vmem:[%s10 + $0x70] sm:$0xf]
    %v4172 = vld [vmem:[%s10 + $0x74] sm:$0xf]
    %v4173 = vld [vmem:[%s10 + $0x78] sm:$0xf]
    %v4174 = vld [vmem:[%s10 + $0x7c] sm:$0xf]
    %v4191 = vunpack.c.l.b16 %v4159
    %v4192 = vunpack.c.l.b16 %v4160
    %v4193 = vunpack.c.l.b16 %v4161
    %v4194 = vunpack.c.l.b16 %v4162
    %v4195 = vunpack.c.l.b16 %v4163
    %v4196 = vunpack.c.l.b16 %v4164
    %v4197 = vunpack.c.l.b16 %v4165
    %v4198 = vunpack.c.l.b16 %v4166
    %v4199 = vunpack.c.l.b16 %v4167
    %v4200 = vunpack.c.l.b16 %v4168
    %v4201 = vunpack.c.l.b16 %v4169
    %v4202 = vunpack.c.l.b16 %v4170
    %v4203 = vunpack.c.l.b16 %v4171
    %v4204 = vunpack.c.l.b16 %v4172
    %v4205 = vunpack.c.l.b16 %v4173
    %v4206 = vunpack.c.l.b16 %v4174
    %v4207 = vpack.c.b16 %v4192, %v4191
    %v4208 = vpack.c.b16 %v4194, %v4193
    %v4209 = vpack.c.b16 %v4196, %v4195
    %v4210 = vpack.c.b16 %v4198, %v4197
    %v4211 = vpack.c.b16 %v4200, %v4199
    %v4212 = vpack.c.b16 %v4202, %v4201
    %v4213 = vpack.c.b16 %v4204, %v4203
    %v4214 = vpack.c.b16 %v4206, %v4205
    %4223 = vmatprep.subr.bf16.mxu0 0
    %4224 = vmatpush1.bf16.msra.mxu0 %v4214
    %4225 = vmatprep.subr.bf16.mxu0 0
    %4226 = vmatpush1.bf16.msra.mxu0 %v4213
    %4227 = vmatprep.subr.bf16.mxu0 0
    %4228 = vmatpush1.bf16.msra.mxu0 %v4212
    %4229 = vmatprep.subr.bf16.mxu0 0
    %4230 = vmatpush1.bf16.msra.mxu0 %v4211
    %4231 = vmatprep.subr.bf16.mxu0 0
    %4232 = vmatpush1.bf16.msra.mxu0 %v4210
    %4233 = vmatprep.subr.bf16.mxu0 0
    %4234 = vmatpush1.bf16.msra.mxu0 %v4209
    %4235 = vmatprep.subr.bf16.mxu0 0
    %4236 = vmatpush1.bf16.msra.mxu0 %v4208
    %4237 = vmatprep.subr.bf16.mxu0 0
    %4238 = vmatpush1.bf16.msra.mxu0 %v4207
    %4239 = vmatprep.subr.bf16.mxu0 0
    %4240 = vmatpush2.bf16.msra.mxu0 0
    %4241 = vmatprep.subr.bf16.mxu0 0
    %4242 = vmatpush2.bf16.msra.mxu0 0
    %4243 = vmatprep.subr.bf16.mxu0 0
    %4244 = vmatpush2.bf16.msra.mxu0 0
    %4245 = vmatprep.subr.bf16.mxu0 0
    %4246 = vmatpush2.bf16.msra.mxu0 0
    %4247 = vmatprep.subr.bf16.mxu0 0
    %4248 = vmatpush2.bf16.msra.mxu0 0
    %4249 = vmatprep.subr.bf16.mxu0 0
    %4250 = vmatpush2.bf16.msra.mxu0 0
    %4251 = vmatprep.subr.bf16.mxu0 0
    %4252 = vmatpush2.bf16.msra.mxu0 0
    %4253 = vmatprep.subr.bf16.mxu0 0
    %4254 = vmatpush2.bf16.msra.mxu0 0
    %4255 = vmatprep.mubr.bf16.mxu0 0
    %4256 = vmatmul.mubr.bf16.gmra.mxu0 %v4151
    %v4257 = vpop.f32.mrf.mxu0
    %v4258 = vadd.f32 0.0, %v4257
    %v4259 = vpop.f32.mrf.mxu0
    %v4260 = vpop.f32.mrf.mxu0
    %v4261 = vadd.f32 0.0, %v4260
    %v4262 = vpop.f32.mrf.mxu0
    %4263 = vmatprep.mubr.bf16.mxu0 0
    %4264 = vmatmul.mubr.bf16.gmra.mxu0 %v4152
    %v4265 = vpop.f32.mrf.mxu0
    %v4266 = vadd.f32 0.0, %v4265
    %v4267 = vpop.f32.mrf.mxu0
    %v4268 = vpop.f32.mrf.mxu0
    %v4269 = vadd.f32 0.0, %v4268
    %v4270 = vpop.f32.mrf.mxu0
    %4271 = vmatprep.mubr.bf16.mxu0 0
    %4272 = vmatmul.mubr.bf16.gmra.mxu0 %v4153
    %v4273 = vpop.f32.mrf.mxu0
    %v4274 = vadd.f32 0.0, %v4273
    %v4275 = vpop.f32.mrf.mxu0
    %v4276 = vpop.f32.mrf.mxu0
    %v4277 = vadd.f32 0.0, %v4276
    %v4278 = vpop.f32.mrf.mxu0
    %4279 = vmatprep.mubr.bf16.mxu0 0
    %4280 = vmatmul.mubr.bf16.gmra.mxu0 %v4154
    %v4281 = vpop.f32.mrf.mxu0
    %v4282 = vadd.f32 0.0, %v4281
    %v4283 = vpop.f32.mrf.mxu0
    %v4284 = vpop.f32.mrf.mxu0
    %v4285 = vadd.f32 0.0, %v4284
    %v4286 = vpop.f32.mrf.mxu0
    %4287 = vmatprep.mubr.bf16.mxu0 0
    %4288 = vmatmul.mubr.bf16.gmra.mxu0 %v4155
    %v4289 = vpop.f32.mrf.mxu0
    %v4290 = vadd.f32 0.0, %v4289
    %v4291 = vpop.f32.mrf.mxu0
    %v4292 = vpop.f32.mrf.mxu0
    %v4293 = vadd.f32 0.0, %v4292
    %v4294 = vpop.f32.mrf.mxu0
    %4295 = vmatprep.mubr.bf16.mxu0 0
    %4296 = vmatmul.mubr.bf16.gmra.mxu0 %v4156
    %v4297 = vpop.f32.mrf.mxu0
    %v4298 = vadd.f32 0.0, %v4297
    %v4299 = vpop.f32.mrf.mxu0
    %v4300 = vpop.f32.mrf.mxu0
    %v4301 = vadd.f32 0.0, %v4300
    %v4302 = vpop.f32.mrf.mxu0
    %4303 = vmatprep.mubr.bf16.mxu0 0
    %4304 = vmatmul.mubr.bf16.gmra.mxu0 %v4157
    %v4305 = vpop.f32.mrf.mxu0
    %v4306 = vadd.f32 0.0, %v4305
    %v4307 = vpop.f32.mrf.mxu0
    %v4308 = vpop.f32.mrf.mxu0
    %v4309 = vadd.f32 0.0, %v4308
    %v4310 = vpop.f32.mrf.mxu0
    %4311 = vmatprep.mubr.bf16.mxu0 0
    %4312 = vmatmul.mubr.bf16.gmra.mxu0 %v4158
    %v4313 = vpop.f32.mrf.mxu0
    %v4314 = vadd.f32 0.0, %v4313
    %v4315 = vpop.f32.mrf.mxu0
    %v4316 = vpop.f32.mrf.mxu0
    %v4317 = vadd.f32 0.0, %v4316
    %v4318 = vpop.f32.mrf.mxu0
    %4319 = vdwg.mxu0
    %v4336 = vunpack.c.l.b16 %v3952
    %v4337 = vunpack.c.l.b16 %v3953
    %v4338 = vunpack.c.l.b16 %v3954
    %v4339 = vunpack.c.l.b16 %v3955
    %v4340 = vunpack.c.l.b16 %v3956
    %v4341 = vunpack.c.l.b16 %v3957
    %v4342 = vunpack.c.l.b16 %v3958
    %v4343 = vunpack.c.l.b16 %v3959
    %v4344 = vunpack.c.l.b16 %v3960
    %v4345 = vunpack.c.l.b16 %v3961
    %v4346 = vunpack.c.l.b16 %v3962
    %v4347 = vunpack.c.l.b16 %v3963
    %v4348 = vunpack.c.l.b16 %v3964
    %v4349 = vunpack.c.l.b16 %v3965
    %v4350 = vunpack.c.l.b16 %v3966
    %v4351 = vunpack.c.l.b16 %v3967
    %v4352 = vpack.c.b16 %v4337, %v4336
    %v4353 = vpack.c.b16 %v4339, %v4338
    %v4354 = vpack.c.b16 %v4341, %v4340
    %v4355 = vpack.c.b16 %v4343, %v4342
    %v4356 = vpack.c.b16 %v4345, %v4344
    %v4357 = vpack.c.b16 %v4347, %v4346
    %v4358 = vpack.c.b16 %v4349, %v4348
    %v4359 = vpack.c.b16 %v4351, %v4350
    %4368 = vmatprep.subr.bf16.mxu0 0
    %4369 = vmatpush1.bf16.msra.mxu0 %v4359
    %4370 = vmatprep.subr.bf16.mxu0 0
    %4371 = vmatpush1.bf16.msra.mxu0 %v4358
    %4372 = vmatprep.subr.bf16.mxu0 0
    %4373 = vmatpush1.bf16.msra.mxu0 %v4357
    %4374 = vmatprep.subr.bf16.mxu0 0
    %4375 = vmatpush1.bf16.msra.mxu0 %v4356
    %4376 = vmatprep.subr.bf16.mxu0 0
    %4377 = vmatpush1.bf16.msra.mxu0 %v4355
    %4378 = vmatprep.subr.bf16.mxu0 0
    %4379 = vmatpush1.bf16.msra.mxu0 %v4354
    %4380 = vmatprep.subr.bf16.mxu0 0
    %4381 = vmatpush1.bf16.msra.mxu0 %v4353
    %4382 = vmatprep.subr.bf16.mxu0 0
    %4383 = vmatpush1.bf16.msra.mxu0 %v4352
    %4384 = vmatprep.subr.bf16.mxu0 0
    %4385 = vmatpush2.bf16.msra.mxu0 0
    %4386 = vmatprep.subr.bf16.mxu0 0
    %4387 = vmatpush2.bf16.msra.mxu0 0
    %4388 = vmatprep.subr.bf16.mxu0 0
    %4389 = vmatpush2.bf16.msra.mxu0 0
    %4390 = vmatprep.subr.bf16.mxu0 0
    %4391 = vmatpush2.bf16.msra.mxu0 0
    %4392 = vmatprep.subr.bf16.mxu0 0
    %4393 = vmatpush2.bf16.msra.mxu0 0
    %4394 = vmatprep.subr.bf16.mxu0 0
    %4395 = vmatpush2.bf16.msra.mxu0 0
    %4396 = vmatprep.subr.bf16.mxu0 0
    %4397 = vmatpush2.bf16.msra.mxu0 0
    %4398 = vmatprep.subr.bf16.mxu0 0
    %4399 = vmatpush2.bf16.msra.mxu0 0
    %4400 = vmatprep.mubr.bf16.mxu0 0
    %4401 = vmatmul.mubr.bf16.gmra.mxu0 %v3944
    %v4402 = vpop.f32.mrf.mxu0
    %v4403 = vadd.f32 %v4258, %v4402
    %v4404 = vpop.f32.mrf.mxu0
    %v4405 = vpop.f32.mrf.mxu0
    %v4406 = vadd.f32 %v4261, %v4405
    %v4407 = vpop.f32.mrf.mxu0
    %4408 = vmatprep.mubr.bf16.mxu0 0
    %4409 = vmatmul.mubr.bf16.gmra.mxu0 %v3945
    %v4410 = vpop.f32.mrf.mxu0
    %v4411 = vadd.f32 %v4266, %v4410
    %v4412 = vpop.f32.mrf.mxu0
    %v4413 = vpop.f32.mrf.mxu0
    %v4414 = vadd.f32 %v4269, %v4413
    %v4415 = vpop.f32.mrf.mxu0
    %4416 = vmatprep.mubr.bf16.mxu0 0
    %4417 = vmatmul.mubr.bf16.gmra.mxu0 %v3946
    %v4418 = vpop.f32.mrf.mxu0
    %v4419 = vadd.f32 %v4274, %v4418
    %v4420 = vpop.f32.mrf.mxu0
    %v4421 = vpop.f32.mrf.mxu0
    %v4422 = vadd.f32 %v4277, %v4421
    %v4423 = vpop.f32.mrf.mxu0
    %4424 = vmatprep.mubr.bf16.mxu0 0
    %4425 = vmatmul.mubr.bf16.gmra.mxu0 %v3947
    %v4426 = vpop.f32.mrf.mxu0
    %v4427 = vadd.f32 %v4282, %v4426
    %v4428 = vpop.f32.mrf.mxu0
    %v4429 = vpop.f32.mrf.mxu0
    %v4430 = vadd.f32 %v4285, %v4429
    %v4431 = vpop.f32.mrf.mxu0
    %4432 = vmatprep.mubr.bf16.mxu0 0
    %4433 = vmatmul.mubr.bf16.gmra.mxu0 %v3948
    %v4434 = vpop.f32.mrf.mxu0
    %v4435 = vadd.f32 %v4290, %v4434
    %v4436 = vpop.f32.mrf.mxu0
    %v4437 = vpop.f32.mrf.mxu0
    %v4438 = vadd.f32 %v4293, %v4437
    %v4439 = vpop.f32.mrf.mxu0
    %4440 = vmatprep.mubr.bf16.mxu0 0
    %4441 = vmatmul.mubr.bf16.gmra.mxu0 %v3949
    %v4442 = vpop.f32.mrf.mxu0
    %v4443 = vadd.f32 %v4298, %v4442
    %v4444 = vpop.f32.mrf.mxu0
    %v4445 = vpop.f32.mrf.mxu0
    %v4446 = vadd.f32 %v4301, %v4445
    %v4447 = vpop.f32.mrf.mxu0
    %4448 = vmatprep.mubr.bf16.mxu0 0
    %4449 = vmatmul.mubr.bf16.gmra.mxu0 %v3950
    %v4450 = vpop.f32.mrf.mxu0
    %v4451 = vadd.f32 %v4306, %v4450
    %v4452 = vpop.f32.mrf.mxu0
    %v4453 = vpop.f32.mrf.mxu0
    %v4454 = vadd.f32 %v4309, %v4453
    %v4455 = vpop.f32.mrf.mxu0
    %4456 = vmatprep.mubr.bf16.mxu0 0
    %4457 = vmatmul.mubr.bf16.gmra.mxu0 %v3951
    %v4458 = vpop.f32.mrf.mxu0
    %v4459 = vadd.f32 %v4314, %v4458
    %v4460 = vpop.f32.mrf.mxu0
    %v4461 = vpop.f32.mrf.mxu0
    %v4462 = vadd.f32 %v4317, %v4461
    %v4463 = vpop.f32.mrf.mxu0
    %4464 = vdwg.mxu0
    %v4465 = vld [vmem:[%s8 + $0x8] sm:$0xf]
    %v4466 = vld [vmem:[%s8 + $0x18] sm:$0xf]
    %v4467 = vld [vmem:[%s8 + $0x28] sm:$0xf]
    %v4468 = vld [vmem:[%s8 + $0x38] sm:$0xf]
    %v4469 = vld [vmem:[%s8 + $0x48] sm:$0xf]
    %v4470 = vld [vmem:[%s8 + $0x58] sm:$0xf]
    %v4471 = vld [vmem:[%s8 + $0x68] sm:$0xf]
    %v4472 = vld [vmem:[%s8 + $0x78] sm:$0xf]
    %v4473 = vld [vmem:[%s8 + $0x88] sm:$0xf]
    %v4474 = vld [vmem:[%s8 + $0x98] sm:$0xf]
    %v4475 = vld [vmem:[%s8 + $0xa8] sm:$0xf]
    %v4476 = vld [vmem:[%s8 + $0xb8] sm:$0xf]
    %v4477 = vld [vmem:[%s8 + $0xc8] sm:$0xf]
    %v4478 = vld [vmem:[%s8 + $0xd8] sm:$0xf]
    %v4479 = vld [vmem:[%s8 + $0xe8] sm:$0xf]
    %v4480 = vld [vmem:[%s8 + $0xf8] sm:$0xf]
    %v4481 = vrot.slane %v3760, 2
    %v4482 = vlaneseq
    %v4483 = vshrl.u32 %v4482, 7
    %v4484 = vsub.s32 0, %v4483
    %v4485 = vrot.slane %v4481, %v4484
    %v4503 = vunpack.c.l.b16 %v4465
    %v4504 = vunpack.c.l.b16 %v4466
    %v4505 = vunpack.c.l.b16 %v4467
    %v4506 = vunpack.c.l.b16 %v4468
    %v4507 = vunpack.c.l.b16 %v4469
    %v4508 = vunpack.c.l.b16 %v4470
    %v4509 = vunpack.c.l.b16 %v4471
    %v4510 = vunpack.c.l.b16 %v4472
    %v4511 = vunpack.c.l.b16 %v4473
    %v4512 = vunpack.c.l.b16 %v4474
    %v4513 = vunpack.c.l.b16 %v4475
    %v4514 = vunpack.c.l.b16 %v4476
    %v4515 = vunpack.c.l.b16 %v4477
    %v4516 = vunpack.c.l.b16 %v4478
    %v4517 = vunpack.c.l.b16 %v4479
    %v4518 = vunpack.c.l.b16 %v4480
    %v4519 = vpack.c.b16 %v4504, %v4503
    %v4520 = vpack.c.b16 %v4506, %v4505
    %v4521 = vpack.c.b16 %v4508, %v4507
    %v4522 = vpack.c.b16 %v4510, %v4509
    %v4523 = vpack.c.b16 %v4512, %v4511
    %v4524 = vpack.c.b16 %v4514, %v4513
    %v4525 = vpack.c.b16 %v4516, %v4515
    %v4526 = vpack.c.b16 %v4518, %v4517
    %4535 = vmatprep.subr.bf16.mxu0 0
    %4536 = vmatpush1.bf16.msra.mxu0 %v4526
    %4537 = vmatprep.subr.bf16.mxu0 0
    %4538 = vmatpush1.bf16.msra.mxu0 %v4525
    %4539 = vmatprep.subr.bf16.mxu0 0
    %4540 = vmatpush1.bf16.msra.mxu0 %v4524
    %4541 = vmatprep.subr.bf16.mxu0 0
    %4542 = vmatpush1.bf16.msra.mxu0 %v4523
    %4543 = vmatprep.subr.bf16.mxu0 0
    %4544 = vmatpush1.bf16.msra.mxu0 %v4522
    %4545 = vmatprep.subr.bf16.mxu0 0
    %4546 = vmatpush1.bf16.msra.mxu0 %v4521
    %4547 = vmatprep.subr.bf16.mxu0 0
    %4548 = vmatpush1.bf16.msra.mxu0 %v4520
    %4549 = vmatprep.subr.bf16.mxu0 0
    %4550 = vmatpush1.bf16.msra.mxu0 %v4519
    %4551 = vmatprep.subr.bf16.mxu0 0
    %4552 = vmatpush2.bf16.msra.mxu0 0
    %4553 = vmatprep.subr.bf16.mxu0 0
    %4554 = vmatpush2.bf16.msra.mxu0 0
    %4555 = vmatprep.subr.bf16.mxu0 0
    %4556 = vmatpush2.bf16.msra.mxu0 0
    %4557 = vmatprep.subr.bf16.mxu0 0
    %4558 = vmatpush2.bf16.msra.mxu0 0
    %4559 = vmatprep.subr.bf16.mxu0 0
    %4560 = vmatpush2.bf16.msra.mxu0 0
    %4561 = vmatprep.subr.bf16.mxu0 0
    %4562 = vmatpush2.bf16.msra.mxu0 0
    %4563 = vmatprep.subr.bf16.mxu0 0
    %4564 = vmatpush2.bf16.msra.mxu0 0
    %4565 = vmatprep.subr.bf16.mxu0 0
    %4566 = vmatpush2.bf16.msra.mxu0 0
    %4567 = vmatprep.mubr.bf16.mxu0 0
    %4568 = vmatmul.mubr.bf16.gmra.mxu0 %v3752
    %v4569 = vpop.f32.mrf.mxu0
    %v4570 = vadd.f32 %v4485, %v4569
    %v4571 = vpop.f32.mrf.mxu0
    %v4572 = vpop.f32.mrf.mxu0
    %v4573 = vadd.f32 %v4485, %v4572
    %v4574 = vpop.f32.mrf.mxu0
    %4575 = vmatprep.mubr.bf16.mxu0 0
    %4576 = vmatmul.mubr.bf16.gmra.mxu0 %v3753
    %v4577 = vpop.f32.mrf.mxu0
    %v4578 = vadd.f32 %v4485, %v4577
    %v4579 = vpop.f32.mrf.mxu0
    %v4580 = vpop.f32.mrf.mxu0
    %v4581 = vadd.f32 %v4485, %v4580
    %v4582 = vpop.f32.mrf.mxu0
    %4583 = vmatprep.mubr.bf16.mxu0 0
    %4584 = vmatmul.mubr.bf16.gmra.mxu0 %v3754
    %v4585 = vpop.f32.mrf.mxu0
    %v4586 = vadd.f32 %v4485, %v4585
    %v4587 = vpop.f32.mrf.mxu0
    %v4588 = vpop.f32.mrf.mxu0
    %v4589 = vadd.f32 %v4485, %v4588
    %v4590 = vpop.f32.mrf.mxu0
    %4591 = vmatprep.mubr.bf16.mxu0 0
    %4592 = vmatmul.mubr.bf16.gmra.mxu0 %v3755
    %v4593 = vpop.f32.mrf.mxu0
    %v4594 = vadd.f32 %v4485, %v4593
    %v4595 = vpop.f32.mrf.mxu0
    %v4596 = vpop.f32.mrf.mxu0
    %v4597 = vadd.f32 %v4485, %v4596
    %v4598 = vpop.f32.mrf.mxu0
    %4599 = vmatprep.mubr.bf16.mxu0 0
    %4600 = vmatmul.mubr.bf16.gmra.mxu0 %v3756
    %v4601 = vpop.f32.mrf.mxu0
    %v4602 = vadd.f32 %v4485, %v4601
    %v4603 = vpop.f32.mrf.mxu0
    %v4604 = vpop.f32.mrf.mxu0
    %v4605 = vadd.f32 %v4485, %v4604
    %v4606 = vpop.f32.mrf.mxu0
    %4607 = vmatprep.mubr.bf16.mxu0 0
    %4608 = vmatmul.mubr.bf16.gmra.mxu0 %v3757
    %v4609 = vpop.f32.mrf.mxu0
    %v4610 = vadd.f32 %v4485, %v4609
    %v4611 = vpop.f32.mrf.mxu0
    %v4612 = vpop.f32.mrf.mxu0
    %v4613 = vadd.f32 %v4485, %v4612
    %v4614 = vpop.f32.mrf.mxu0
    %4615 = vmatprep.mubr.bf16.mxu0 0
    %4616 = vmatmul.mubr.bf16.gmra.mxu0 %v3758
    %v4617 = vpop.f32.mrf.mxu0
    %v4618 = vadd.f32 %v4485, %v4617
    %v4619 = vpop.f32.mrf.mxu0
    %v4620 = vpop.f32.mrf.mxu0
    %v4621 = vadd.f32 %v4485, %v4620
    %v4622 = vpop.f32.mrf.mxu0
    %4623 = vmatprep.mubr.bf16.mxu0 0
    %4624 = vmatmul.mubr.bf16.gmra.mxu0 %v3759
    %v4625 = vpop.f32.mrf.mxu0
    %v4626 = vadd.f32 %v4485, %v4625
    %v4627 = vpop.f32.mrf.mxu0
    %v4628 = vpop.f32.mrf.mxu0
    %v4629 = vadd.f32 %v4485, %v4628
    %v4630 = vpop.f32.mrf.mxu0
    %4631 = vdwg.mxu0
    %v4632 = vmax.f32 %v4570, 0.0
    %v4633 = vmax.f32 %v4573, 0.0
    %v4634 = vmax.f32 %v4578, 0.0
    %v4635 = vmax.f32 %v4581, 0.0
    %v4636 = vmax.f32 %v4586, 0.0
    %v4637 = vmax.f32 %v4589, 0.0
    %v4638 = vmax.f32 %v4594, 0.0
    %v4639 = vmax.f32 %v4597, 0.0
    %v4640 = vmax.f32 %v4602, 0.0
    %v4641 = vmax.f32 %v4605, 0.0
    %v4642 = vmax.f32 %v4610, 0.0
    %v4643 = vmax.f32 %v4613, 0.0
    %v4644 = vmax.f32 %v4618, 0.0
    %v4645 = vmax.f32 %v4621, 0.0
    %v4646 = vmax.f32 %v4626, 0.0
    %v4647 = vmax.f32 %v4629, 0.0
    %v4648 = vpack.c.bf16 %v4633, %v4632
    %v4649 = vpack.c.bf16 %v4635, %v4634
    %v4650 = vpack.c.bf16 %v4637, %v4636
    %v4651 = vpack.c.bf16 %v4639, %v4638
    %v4652 = vpack.c.bf16 %v4641, %v4640
    %v4653 = vpack.c.bf16 %v4643, %v4642
    %v4654 = vpack.c.bf16 %v4645, %v4644
    %v4655 = vpack.c.bf16 %v4647, %v4646
    %v4656 = vld [vmem:[%s10 + $0x80] sm:$0xf]
    %v4657 = vld [vmem:[%s10 + $0x84] sm:$0xf]
    %v4658 = vld [vmem:[%s10 + $0x88] sm:$0xf]
    %v4659 = vld [vmem:[%s10 + $0x8c] sm:$0xf]
    %v4660 = vld [vmem:[%s10 + $0x90] sm:$0xf]
    %v4661 = vld [vmem:[%s10 + $0x94] sm:$0xf]
    %v4662 = vld [vmem:[%s10 + $0x98] sm:$0xf]
    %v4663 = vld [vmem:[%s10 + $0x9c] sm:$0xf]
    %v4664 = vld [vmem:[%s10 + $0xa0] sm:$0xf]
    %v4665 = vld [vmem:[%s10 + $0xa4] sm:$0xf]
    %v4666 = vld [vmem:[%s10 + $0xa8] sm:$0xf]
    %v4667 = vld [vmem:[%s10 + $0xac] sm:$0xf]
    %v4668 = vld [vmem:[%s10 + $0xb0] sm:$0xf]
    %v4669 = vld [vmem:[%s10 + $0xb4] sm:$0xf]
    %v4670 = vld [vmem:[%s10 + $0xb8] sm:$0xf]
    %v4671 = vld [vmem:[%s10 + $0xbc] sm:$0xf]
    %v4688 = vunpack.c.l.b16 %v4656
    %v4689 = vunpack.c.l.b16 %v4657
    %v4690 = vunpack.c.l.b16 %v4658
    %v4691 = vunpack.c.l.b16 %v4659
    %v4692 = vunpack.c.l.b16 %v4660
    %v4693 = vunpack.c.l.b16 %v4661
    %v4694 = vunpack.c.l.b16 %v4662
    %v4695 = vunpack.c.l.b16 %v4663
    %v4696 = vunpack.c.l.b16 %v4664
    %v4697 = vunpack.c.l.b16 %v4665
    %v4698 = vunpack.c.l.b16 %v4666
    %v4699 = vunpack.c.l.b16 %v4667
    %v4700 = vunpack.c.l.b16 %v4668
    %v4701 = vunpack.c.l.b16 %v4669
    %v4702 = vunpack.c.l.b16 %v4670
    %v4703 = vunpack.c.l.b16 %v4671
    %v4704 = vpack.c.b16 %v4689, %v4688
    %v4705 = vpack.c.b16 %v4691, %v4690
    %v4706 = vpack.c.b16 %v4693, %v4692
    %v4707 = vpack.c.b16 %v4695, %v4694
    %v4708 = vpack.c.b16 %v4697, %v4696
    %v4709 = vpack.c.b16 %v4699, %v4698
    %v4710 = vpack.c.b16 %v4701, %v4700
    %v4711 = vpack.c.b16 %v4703, %v4702
    %4720 = vmatprep.subr.bf16.mxu0 0
    %4721 = vmatpush1.bf16.msra.mxu0 %v4711
    %4722 = vmatprep.subr.bf16.mxu0 0
    %4723 = vmatpush1.bf16.msra.mxu0 %v4710
    %4724 = vmatprep.subr.bf16.mxu0 0
    %4725 = vmatpush1.bf16.msra.mxu0 %v4709
    %4726 = vmatprep.subr.bf16.mxu0 0
    %4727 = vmatpush1.bf16.msra.mxu0 %v4708
    %4728 = vmatprep.subr.bf16.mxu0 0
    %4729 = vmatpush1.bf16.msra.mxu0 %v4707
    %4730 = vmatprep.subr.bf16.mxu0 0
    %4731 = vmatpush1.bf16.msra.mxu0 %v4706
    %4732 = vmatprep.subr.bf16.mxu0 0
    %4733 = vmatpush1.bf16.msra.mxu0 %v4705
    %4734 = vmatprep.subr.bf16.mxu0 0
    %4735 = vmatpush1.bf16.msra.mxu0 %v4704
    %4736 = vmatprep.subr.bf16.mxu0 0
    %4737 = vmatpush2.bf16.msra.mxu0 0
    %4738 = vmatprep.subr.bf16.mxu0 0
    %4739 = vmatpush2.bf16.msra.mxu0 0
    %4740 = vmatprep.subr.bf16.mxu0 0
    %4741 = vmatpush2.bf16.msra.mxu0 0
    %4742 = vmatprep.subr.bf16.mxu0 0
    %4743 = vmatpush2.bf16.msra.mxu0 0
    %4744 = vmatprep.subr.bf16.mxu0 0
    %4745 = vmatpush2.bf16.msra.mxu0 0
    %4746 = vmatprep.subr.bf16.mxu0 0
    %4747 = vmatpush2.bf16.msra.mxu0 0
    %4748 = vmatprep.subr.bf16.mxu0 0
    %4749 = vmatpush2.bf16.msra.mxu0 0
    %4750 = vmatprep.subr.bf16.mxu0 0
    %4751 = vmatpush2.bf16.msra.mxu0 0
    %4752 = vmatprep.mubr.bf16.mxu0 0
    %4753 = vmatmul.mubr.bf16.gmra.mxu0 %v4648
    %v4754 = vpop.f32.mrf.mxu0
    %v4755 = vadd.f32 0.0, %v4754
    %v4756 = vpop.f32.mrf.mxu0
    %v4757 = vpop.f32.mrf.mxu0
    %v4758 = vadd.f32 0.0, %v4757
    %v4759 = vpop.f32.mrf.mxu0
    %4760 = vmatprep.mubr.bf16.mxu0 0
    %4761 = vmatmul.mubr.bf16.gmra.mxu0 %v4649
    %v4762 = vpop.f32.mrf.mxu0
    %v4763 = vadd.f32 0.0, %v4762
    %v4764 = vpop.f32.mrf.mxu0
    %v4765 = vpop.f32.mrf.mxu0
    %v4766 = vadd.f32 0.0, %v4765
    %v4767 = vpop.f32.mrf.mxu0
    %4768 = vmatprep.mubr.bf16.mxu0 0
    %4769 = vmatmul.mubr.bf16.gmra.mxu0 %v4650
    %v4770 = vpop.f32.mrf.mxu0
    %v4771 = vadd.f32 0.0, %v4770
    %v4772 = vpop.f32.mrf.mxu0
    %v4773 = vpop.f32.mrf.mxu0
    %v4774 = vadd.f32 0.0, %v4773
    %v4775 = vpop.f32.mrf.mxu0
    %4776 = vmatprep.mubr.bf16.mxu0 0
    %4777 = vmatmul.mubr.bf16.gmra.mxu0 %v4651
    %v4778 = vpop.f32.mrf.mxu0
    %v4779 = vadd.f32 0.0, %v4778
    %v4780 = vpop.f32.mrf.mxu0
    %v4781 = vpop.f32.mrf.mxu0
    %v4782 = vadd.f32 0.0, %v4781
    %v4783 = vpop.f32.mrf.mxu0
    %4784 = vmatprep.mubr.bf16.mxu0 0
    %4785 = vmatmul.mubr.bf16.gmra.mxu0 %v4652
    %v4786 = vpop.f32.mrf.mxu0
    %v4787 = vadd.f32 0.0, %v4786
    %v4788 = vpop.f32.mrf.mxu0
    %v4789 = vpop.f32.mrf.mxu0
    %v4790 = vadd.f32 0.0, %v4789
    %v4791 = vpop.f32.mrf.mxu0
    %4792 = vmatprep.mubr.bf16.mxu0 0
    %4793 = vmatmul.mubr.bf16.gmra.mxu0 %v4653
    %v4794 = vpop.f32.mrf.mxu0
    %v4795 = vadd.f32 0.0, %v4794
    %v4796 = vpop.f32.mrf.mxu0
    %v4797 = vpop.f32.mrf.mxu0
    %v4798 = vadd.f32 0.0, %v4797
    %v4799 = vpop.f32.mrf.mxu0
    %4800 = vmatprep.mubr.bf16.mxu0 0
    %4801 = vmatmul.mubr.bf16.gmra.mxu0 %v4654
    %v4802 = vpop.f32.mrf.mxu0
    %v4803 = vadd.f32 0.0, %v4802
    %v4804 = vpop.f32.mrf.mxu0
    %v4805 = vpop.f32.mrf.mxu0
    %v4806 = vadd.f32 0.0, %v4805
    %v4807 = vpop.f32.mrf.mxu0
    %4808 = vmatprep.mubr.bf16.mxu0 0
    %4809 = vmatmul.mubr.bf16.gmra.mxu0 %v4655
    %v4810 = vpop.f32.mrf.mxu0
    %v4811 = vadd.f32 0.0, %v4810
    %v4812 = vpop.f32.mrf.mxu0
    %v4813 = vpop.f32.mrf.mxu0
    %v4814 = vadd.f32 0.0, %v4813
    %v4815 = vpop.f32.mrf.mxu0
    %4816 = vdwg.mxu0
    %v4817 = vadd.f32 %v4403, %v4755
    %v4818 = vadd.f32 %v4406, %v4758
    %v4819 = vadd.f32 %v4411, %v4763
    %v4820 = vadd.f32 %v4414, %v4766
    %v4821 = vadd.f32 %v4419, %v4771
    %v4822 = vadd.f32 %v4422, %v4774
    %v4823 = vadd.f32 %v4427, %v4779
    %v4824 = vadd.f32 %v4430, %v4782
    %v4825 = vadd.f32 %v4435, %v4787
    %v4826 = vadd.f32 %v4438, %v4790
    %v4827 = vadd.f32 %v4443, %v4795
    %v4828 = vadd.f32 %v4446, %v4798
    %v4829 = vadd.f32 %v4451, %v4803
    %v4830 = vadd.f32 %v4454, %v4806
    %v4831 = vadd.f32 %v4459, %v4811
    %v4832 = vadd.f32 %v4462, %v4814
    %v4833 = vld [vmem:[%s8 + $0xc] sm:$0xf]
    %v4834 = vld [vmem:[%s8 + $0x1c] sm:$0xf]
    %v4835 = vld [vmem:[%s8 + $0x2c] sm:$0xf]
    %v4836 = vld [vmem:[%s8 + $0x3c] sm:$0xf]
    %v4837 = vld [vmem:[%s8 + $0x4c] sm:$0xf]
    %v4838 = vld [vmem:[%s8 + $0x5c] sm:$0xf]
    %v4839 = vld [vmem:[%s8 + $0x6c] sm:$0xf]
    %v4840 = vld [vmem:[%s8 + $0x7c] sm:$0xf]
    %v4841 = vld [vmem:[%s8 + $0x8c] sm:$0xf]
    %v4842 = vld [vmem:[%s8 + $0x9c] sm:$0xf]
    %v4843 = vld [vmem:[%s8 + $0xac] sm:$0xf]
    %v4844 = vld [vmem:[%s8 + $0xbc] sm:$0xf]
    %v4845 = vld [vmem:[%s8 + $0xcc] sm:$0xf]
    %v4846 = vld [vmem:[%s8 + $0xdc] sm:$0xf]
    %v4847 = vld [vmem:[%s8 + $0xec] sm:$0xf]
    %v4848 = vld [vmem:[%s8 + $0xfc] sm:$0xf]
    %v4849 = vrot.slane %v3760, 3
    %v4850 = vlaneseq
    %v4851 = vshrl.u32 %v4850, 7
    %v4852 = vsub.s32 0, %v4851
    %v4853 = vrot.slane %v4849, %v4852
    %v4871 = vunpack.c.l.b16 %v4833
    %v4872 = vunpack.c.l.b16 %v4834
    %v4873 = vunpack.c.l.b16 %v4835
    %v4874 = vunpack.c.l.b16 %v4836
    %v4875 = vunpack.c.l.b16 %v4837
    %v4876 = vunpack.c.l.b16 %v4838
    %v4877 = vunpack.c.l.b16 %v4839
    %v4878 = vunpack.c.l.b16 %v4840
    %v4879 = vunpack.c.l.b16 %v4841
    %v4880 = vunpack.c.l.b16 %v4842
    %v4881 = vunpack.c.l.b16 %v4843
    %v4882 = vunpack.c.l.b16 %v4844
    %v4883 = vunpack.c.l.b16 %v4845
    %v4884 = vunpack.c.l.b16 %v4846
    %v4885 = vunpack.c.l.b16 %v4847
    %v4886 = vunpack.c.l.b16 %v4848
    %v4887 = vpack.c.b16 %v4872, %v4871
    %v4888 = vpack.c.b16 %v4874, %v4873
    %v4889 = vpack.c.b16 %v4876, %v4875
    %v4890 = vpack.c.b16 %v4878, %v4877
    %v4891 = vpack.c.b16 %v4880, %v4879
    %v4892 = vpack.c.b16 %v4882, %v4881
    %v4893 = vpack.c.b16 %v4884, %v4883
    %v4894 = vpack.c.b16 %v4886, %v4885
    %4903 = vmatprep.subr.bf16.mxu0 0
    %4904 = vmatpush1.bf16.msra.mxu0 %v4894
    %4905 = vmatprep.subr.bf16.mxu0 0
    %4906 = vmatpush1.bf16.msra.mxu0 %v4893
    %4907 = vmatprep.subr.bf16.mxu0 0
    %4908 = vmatpush1.bf16.msra.mxu0 %v4892
    %4909 = vmatprep.subr.bf16.mxu0 0
    %4910 = vmatpush1.bf16.msra.mxu0 %v4891
    %4911 = vmatprep.subr.bf16.mxu0 0
    %4912 = vmatpush1.bf16.msra.mxu0 %v4890
    %4913 = vmatprep.subr.bf16.mxu0 0
    %4914 = vmatpush1.bf16.msra.mxu0 %v4889
    %4915 = vmatprep.subr.bf16.mxu0 0
    %4916 = vmatpush1.bf16.msra.mxu0 %v4888
    %4917 = vmatprep.subr.bf16.mxu0 0
    %4918 = vmatpush1.bf16.msra.mxu0 %v4887
    %4919 = vmatprep.subr.bf16.mxu0 0
    %4920 = vmatpush2.bf16.msra.mxu0 0
    %4921 = vmatprep.subr.bf16.mxu0 0
    %4922 = vmatpush2.bf16.msra.mxu0 0
    %4923 = vmatprep.subr.bf16.mxu0 0
    %4924 = vmatpush2.bf16.msra.mxu0 0
    %4925 = vmatprep.subr.bf16.mxu0 0
    %4926 = vmatpush2.bf16.msra.mxu0 0
    %4927 = vmatprep.subr.bf16.mxu0 0
    %4928 = vmatpush2.bf16.msra.mxu0 0
    %4929 = vmatprep.subr.bf16.mxu0 0
    %4930 = vmatpush2.bf16.msra.mxu0 0
    %4931 = vmatprep.subr.bf16.mxu0 0
    %4932 = vmatpush2.bf16.msra.mxu0 0
    %4933 = vmatprep.subr.bf16.mxu0 0
    %4934 = vmatpush2.bf16.msra.mxu0 0
    %4935 = vmatprep.mubr.bf16.mxu0 0
    %4936 = vmatmul.mubr.bf16.gmra.mxu0 %v3752
    %v4937 = vpop.f32.mrf.mxu0
    %v4938 = vadd.f32 %v4853, %v4937
    %v4939 = vpop.f32.mrf.mxu0
    %v4940 = vpop.f32.mrf.mxu0
    %v4941 = vadd.f32 %v4853, %v4940
    %v4942 = vpop.f32.mrf.mxu0
    %4943 = vmatprep.mubr.bf16.mxu0 0
    %4944 = vmatmul.mubr.bf16.gmra.mxu0 %v3753
    %v4945 = vpop.f32.mrf.mxu0
    %v4946 = vadd.f32 %v4853, %v4945
    %v4947 = vpop.f32.mrf.mxu0
    %v4948 = vpop.f32.mrf.mxu0
    %v4949 = vadd.f32 %v4853, %v4948
    %v4950 = vpop.f32.mrf.mxu0
    %4951 = vmatprep.mubr.bf16.mxu0 0
    %4952 = vmatmul.mubr.bf16.gmra.mxu0 %v3754
    %v4953 = vpop.f32.mrf.mxu0
    %v4954 = vadd.f32 %v4853, %v4953
    %v4955 = vpop.f32.mrf.mxu0
    %v4956 = vpop.f32.mrf.mxu0
    %v4957 = vadd.f32 %v4853, %v4956
    %v4958 = vpop.f32.mrf.mxu0
    %4959 = vmatprep.mubr.bf16.mxu0 0
    %4960 = vmatmul.mubr.bf16.gmra.mxu0 %v3755
    %v4961 = vpop.f32.mrf.mxu0
    %v4962 = vadd.f32 %v4853, %v4961
    %v4963 = vpop.f32.mrf.mxu0
    %v4964 = vpop.f32.mrf.mxu0
    %v4965 = vadd.f32 %v4853, %v4964
    %v4966 = vpop.f32.mrf.mxu0
    %4967 = vmatprep.mubr.bf16.mxu0 0
    %4968 = vmatmul.mubr.bf16.gmra.mxu0 %v3756
    %v4969 = vpop.f32.mrf.mxu0
    %v4970 = vadd.f32 %v4853, %v4969
    %v4971 = vpop.f32.mrf.mxu0
    %v4972 = vpop.f32.mrf.mxu0
    %v4973 = vadd.f32 %v4853, %v4972
    %v4974 = vpop.f32.mrf.mxu0
    %4975 = vmatprep.mubr.bf16.mxu0 0
    %4976 = vmatmul.mubr.bf16.gmra.mxu0 %v3757
    %v4977 = vpop.f32.mrf.mxu0
    %v4978 = vadd.f32 %v4853, %v4977
    %v4979 = vpop.f32.mrf.mxu0
    %v4980 = vpop.f32.mrf.mxu0
    %v4981 = vadd.f32 %v4853, %v4980
    %v4982 = vpop.f32.mrf.mxu0
    %4983 = vmatprep.mubr.bf16.mxu0 0
    %4984 = vmatmul.mubr.bf16.gmra.mxu0 %v3758
    %v4985 = vpop.f32.mrf.mxu0
    %v4986 = vadd.f32 %v4853, %v4985
    %v4987 = vpop.f32.mrf.mxu0
    %v4988 = vpop.f32.mrf.mxu0
    %v4989 = vadd.f32 %v4853, %v4988
    %v4990 = vpop.f32.mrf.mxu0
    %4991 = vmatprep.mubr.bf16.mxu0 0
    %4992 = vmatmul.mubr.bf16.gmra.mxu0 %v3759
    %v4993 = vpop.f32.mrf.mxu0
    %v4994 = vadd.f32 %v4853, %v4993
    %v4995 = vpop.f32.mrf.mxu0
    %v4996 = vpop.f32.mrf.mxu0
    %v4997 = vadd.f32 %v4853, %v4996
    %v4998 = vpop.f32.mrf.mxu0
    %4999 = vdwg.mxu0
    %v5000 = vmax.f32 %v4938, 0.0
    %v5001 = vmax.f32 %v4941, 0.0
    %v5002 = vmax.f32 %v4946, 0.0
    %v5003 = vmax.f32 %v4949, 0.0
    %v5004 = vmax.f32 %v4954, 0.0
    %v5005 = vmax.f32 %v4957, 0.0
    %v5006 = vmax.f32 %v4962, 0.0
    %v5007 = vmax.f32 %v4965, 0.0
    %v5008 = vmax.f32 %v4970, 0.0
    %v5009 = vmax.f32 %v4973, 0.0
    %v5010 = vmax.f32 %v4978, 0.0
    %v5011 = vmax.f32 %v4981, 0.0
    %v5012 = vmax.f32 %v4986, 0.0
    %v5013 = vmax.f32 %v4989, 0.0
    %v5014 = vmax.f32 %v4994, 0.0
    %v5015 = vmax.f32 %v4997, 0.0
    %v5016 = vpack.c.bf16 %v5001, %v5000
    %v5017 = vpack.c.bf16 %v5003, %v5002
    %v5018 = vpack.c.bf16 %v5005, %v5004
    %v5019 = vpack.c.bf16 %v5007, %v5006
    %v5020 = vpack.c.bf16 %v5009, %v5008
    %v5021 = vpack.c.bf16 %v5011, %v5010
    %v5022 = vpack.c.bf16 %v5013, %v5012
    %v5023 = vpack.c.bf16 %v5015, %v5014
    %v5024 = vld [vmem:[%s10 + $0xc0] sm:$0xf]
    %v5025 = vld [vmem:[%s10 + $0xc4] sm:$0xf]
    %v5026 = vld [vmem:[%s10 + $0xc8] sm:$0xf]
    %v5027 = vld [vmem:[%s10 + $0xcc] sm:$0xf]
    %v5028 = vld [vmem:[%s10 + $0xd0] sm:$0xf]
    %v5029 = vld [vmem:[%s10 + $0xd4] sm:$0xf]
    %v5030 = vld [vmem:[%s10 + $0xd8] sm:$0xf]
    %v5031 = vld [vmem:[%s10 + $0xdc] sm:$0xf]
    %v5032 = vld [vmem:[%s10 + $0xe0] sm:$0xf]
    %v5033 = vld [vmem:[%s10 + $0xe4] sm:$0xf]
    %v5034 = vld [vmem:[%s10 + $0xe8] sm:$0xf]
    %v5035 = vld [vmem:[%s10 + $0xec] sm:$0xf]
    %v5036 = vld [vmem:[%s10 + $0xf0] sm:$0xf]
    %v5037 = vld [vmem:[%s10 + $0xf4] sm:$0xf]
    %v5038 = vld [vmem:[%s10 + $0xf8] sm:$0xf]
    %v5039 = vld [vmem:[%s10 + $0xfc] sm:$0xf]
    %v5056 = vunpack.c.l.b16 %v5024
    %v5057 = vunpack.c.l.b16 %v5025
    %v5058 = vunpack.c.l.b16 %v5026
    %v5059 = vunpack.c.l.b16 %v5027
    %v5060 = vunpack.c.l.b16 %v5028
    %v5061 = vunpack.c.l.b16 %v5029
    %v5062 = vunpack.c.l.b16 %v5030
    %v5063 = vunpack.c.l.b16 %v5031
    %v5064 = vunpack.c.l.b16 %v5032
    %v5065 = vunpack.c.l.b16 %v5033
    %v5066 = vunpack.c.l.b16 %v5034
    %v5067 = vunpack.c.l.b16 %v5035
    %v5068 = vunpack.c.l.b16 %v5036
    %v5069 = vunpack.c.l.b16 %v5037
    %v5070 = vunpack.c.l.b16 %v5038
    %v5071 = vunpack.c.l.b16 %v5039
    %v5072 = vpack.c.b16 %v5057, %v5056
    %v5073 = vpack.c.b16 %v5059, %v5058
    %v5074 = vpack.c.b16 %v5061, %v5060
    %v5075 = vpack.c.b16 %v5063, %v5062
    %v5076 = vpack.c.b16 %v5065, %v5064
    %v5077 = vpack.c.b16 %v5067, %v5066
    %v5078 = vpack.c.b16 %v5069, %v5068
    %v5079 = vpack.c.b16 %v5071, %v5070
    %5088 = vmatprep.subr.bf16.mxu0 0
    %5089 = vmatpush1.bf16.msra.mxu0 %v5079
    %5090 = vmatprep.subr.bf16.mxu0 0
    %5091 = vmatpush1.bf16.msra.mxu0 %v5078
    %5092 = vmatprep.subr.bf16.mxu0 0
    %5093 = vmatpush1.bf16.msra.mxu0 %v5077
    %5094 = vmatprep.subr.bf16.mxu0 0
    %5095 = vmatpush1.bf16.msra.mxu0 %v5076
    %5096 = vmatprep.subr.bf16.mxu0 0
    %5097 = vmatpush1.bf16.msra.mxu0 %v5075
    %5098 = vmatprep.subr.bf16.mxu0 0
    %5099 = vmatpush1.bf16.msra.mxu0 %v5074
    %5100 = vmatprep.subr.bf16.mxu0 0
    %5101 = vmatpush1.bf16.msra.mxu0 %v5073
    %5102 = vmatprep.subr.bf16.mxu0 0
    %5103 = vmatpush1.bf16.msra.mxu0 %v5072
    %5104 = vmatprep.subr.bf16.mxu0 0
    %5105 = vmatpush2.bf16.msra.mxu0 0
    %5106 = vmatprep.subr.bf16.mxu0 0
    %5107 = vmatpush2.bf16.msra.mxu0 0
    %5108 = vmatprep.subr.bf16.mxu0 0
    %5109 = vmatpush2.bf16.msra.mxu0 0
    %5110 = vmatprep.subr.bf16.mxu0 0
    %5111 = vmatpush2.bf16.msra.mxu0 0
    %5112 = vmatprep.subr.bf16.mxu0 0
    %5113 = vmatpush2.bf16.msra.mxu0 0
    %5114 = vmatprep.subr.bf16.mxu0 0
    %5115 = vmatpush2.bf16.msra.mxu0 0
    %5116 = vmatprep.subr.bf16.mxu0 0
    %5117 = vmatpush2.bf16.msra.mxu0 0
    %5118 = vmatprep.subr.bf16.mxu0 0
    %5119 = vmatpush2.bf16.msra.mxu0 0
    %5120 = vmatprep.mubr.bf16.mxu0 0
    %5121 = vmatmul.mubr.bf16.gmra.mxu0 %v5016
    %v5122 = vpop.f32.mrf.mxu0
    %v5123 = vadd.f32 0.0, %v5122
    %v5124 = vpop.f32.mrf.mxu0
    %v5125 = vpop.f32.mrf.mxu0
    %v5126 = vadd.f32 0.0, %v5125
    %v5127 = vpop.f32.mrf.mxu0
    %5128 = vmatprep.mubr.bf16.mxu0 0
    %5129 = vmatmul.mubr.bf16.gmra.mxu0 %v5017
    %v5130 = vpop.f32.mrf.mxu0
    %v5131 = vadd.f32 0.0, %v5130
    %v5132 = vpop.f32.mrf.mxu0
    %v5133 = vpop.f32.mrf.mxu0
    %v5134 = vadd.f32 0.0, %v5133
    %v5135 = vpop.f32.mrf.mxu0
    %5136 = vmatprep.mubr.bf16.mxu0 0
    %5137 = vmatmul.mubr.bf16.gmra.mxu0 %v5018
    %v5138 = vpop.f32.mrf.mxu0
    %v5139 = vadd.f32 0.0, %v5138
    %v5140 = vpop.f32.mrf.mxu0
    %v5141 = vpop.f32.mrf.mxu0
    %v5142 = vadd.f32 0.0, %v5141
    %v5143 = vpop.f32.mrf.mxu0
    %5144 = vmatprep.mubr.bf16.mxu0 0
    %5145 = vmatmul.mubr.bf16.gmra.mxu0 %v5019
    %v5146 = vpop.f32.mrf.mxu0
    %v5147 = vadd.f32 0.0, %v5146
    %v5148 = vpop.f32.mrf.mxu0
    %v5149 = vpop.f32.mrf.mxu0
    %v5150 = vadd.f32 0.0, %v5149
    %v5151 = vpop.f32.mrf.mxu0
    %5152 = vmatprep.mubr.bf16.mxu0 0
    %5153 = vmatmul.mubr.bf16.gmra.mxu0 %v5020
    %v5154 = vpop.f32.mrf.mxu0
    %v5155 = vadd.f32 0.0, %v5154
    %v5156 = vpop.f32.mrf.mxu0
    %v5157 = vpop.f32.mrf.mxu0
    %v5158 = vadd.f32 0.0, %v5157
    %v5159 = vpop.f32.mrf.mxu0
    %5160 = vmatprep.mubr.bf16.mxu0 0
    %5161 = vmatmul.mubr.bf16.gmra.mxu0 %v5021
    %v5162 = vpop.f32.mrf.mxu0
    %v5163 = vadd.f32 0.0, %v5162
    %v5164 = vpop.f32.mrf.mxu0
    %v5165 = vpop.f32.mrf.mxu0
    %v5166 = vadd.f32 0.0, %v5165
    %v5167 = vpop.f32.mrf.mxu0
    %5168 = vmatprep.mubr.bf16.mxu0 0
    %5169 = vmatmul.mubr.bf16.gmra.mxu0 %v5022
    %v5170 = vpop.f32.mrf.mxu0
    %v5171 = vadd.f32 0.0, %v5170
    %v5172 = vpop.f32.mrf.mxu0
    %v5173 = vpop.f32.mrf.mxu0
    %v5174 = vadd.f32 0.0, %v5173
    %v5175 = vpop.f32.mrf.mxu0
    %5176 = vmatprep.mubr.bf16.mxu0 0
    %5177 = vmatmul.mubr.bf16.gmra.mxu0 %v5023
    %v5178 = vpop.f32.mrf.mxu0
    %v5179 = vadd.f32 0.0, %v5178
    %v5180 = vpop.f32.mrf.mxu0
    %v5181 = vpop.f32.mrf.mxu0
    %v5182 = vadd.f32 0.0, %v5181
    %v5183 = vpop.f32.mrf.mxu0
    %5184 = vdwg.mxu0
    %v5185 = vadd.f32 %v4817, %v5123
    %v5186 = vadd.f32 %v4818, %v5126
    %v5187 = vadd.f32 %v4819, %v5131
    %v5188 = vadd.f32 %v4820, %v5134
    %v5189 = vadd.f32 %v4821, %v5139
    %v5190 = vadd.f32 %v4822, %v5142
    %v5191 = vadd.f32 %v4823, %v5147
    %v5192 = vadd.f32 %v4824, %v5150
    %v5193 = vadd.f32 %v4825, %v5155
    %v5194 = vadd.f32 %v4826, %v5158
    %v5195 = vadd.f32 %v4827, %v5163
    %v5196 = vadd.f32 %v4828, %v5166
    %v5197 = vadd.f32 %v4829, %v5171
    %v5198 = vadd.f32 %v4830, %v5174
    %v5199 = vadd.f32 %v4831, %v5179
    %v5200 = vadd.f32 %v4832, %v5182
    %v5201 = vadd.f32 %v3514, %v5185
    %v5202 = vadd.f32 %v3515, %v5186
    %v5203 = vadd.f32 %v3516, %v5187
    %v5204 = vadd.f32 %v3517, %v5188
    %v5205 = vadd.f32 %v3518, %v5189
    %v5206 = vadd.f32 %v3519, %v5190
    %v5207 = vadd.f32 %v3520, %v5191
    %v5208 = vadd.f32 %v3521, %v5192
    %v5209 = vadd.f32 %v3522, %v5193
    %v5210 = vadd.f32 %v3523, %v5194
    %v5211 = vadd.f32 %v3524, %v5195
    %v5212 = vadd.f32 %v3525, %v5196
    %v5213 = vadd.f32 %v3526, %v5197
    %v5214 = vadd.f32 %v3527, %v5198
    %v5215 = vadd.f32 %v3528, %v5199
    %v5216 = vadd.f32 %v3529, %v5200
    %v5217 = vld [vmem:[%s11] sm:$0x1]
    %v5219 = vlaneseq
    %v5220 = vshrl.u32 %v5219, 7
    %v5221 = vsub.s32 0, %v5220
    %v5222 = vrot.slane %v5217, %v5221
    %v5224 = vadd.f32 %v5201, %v5222
    %v5225 = vadd.f32 %v5202, %v5222
    %v5226 = vadd.f32 %v5203, %v5222
    %v5227 = vadd.f32 %v5204, %v5222
    %v5228 = vadd.f32 %v5205, %v5222
    %v5229 = vadd.f32 %v5206, %v5222
    %v5230 = vadd.f32 %v5207, %v5222
    %v5231 = vadd.f32 %v5208, %v5222
    %v5232 = vadd.f32 %v5209, %v5222
    %v5233 = vadd.f32 %v5210, %v5222
    %v5234 = vadd.f32 %v5211, %v5222
    %v5235 = vadd.f32 %v5212, %v5222
    %v5236 = vadd.f32 %v5213, %v5222
    %v5237 = vadd.f32 %v5214, %v5222
    %v5238 = vadd.f32 %v5215, %v5222
    %v5239 = vadd.f32 %v5216, %v5222
    %5240 = vst [vmem:[#allocation2] sm:$0xff] %v5224
    %5241 = vst [vmem:[#allocation2 + $0x8] sm:$0xff] %v5225
    %5242 = vst [vmem:[#allocation2 + $0x10] sm:$0xff] %v5226
    %5243 = vst [vmem:[#allocation2 + $0x18] sm:$0xff] %v5227
    %5244 = vst [vmem:[#allocation2 + $0x20] sm:$0xff] %v5228
    %5245 = vst [vmem:[#allocation2 + $0x28] sm:$0xff] %v5229
    %5246 = vst [vmem:[#allocation2 + $0x30] sm:$0xff] %v5230
    %5247 = vst [vmem:[#allocation2 + $0x38] sm:$0xff] %v5231
    %5248 = vst [vmem:[#allocation2 + $0x40] sm:$0xff] %v5232
    %5249 = vst [vmem:[#allocation2 + $0x48] sm:$0xff] %v5233
    %5250 = vst [vmem:[#allocation2 + $0x50] sm:$0xff] %v5234
    %5251 = vst [vmem:[#allocation2 + $0x58] sm:$0xff] %v5235
    %5252 = vst [vmem:[#allocation2 + $0x60] sm:$0xff] %v5236
    %5253 = vst [vmem:[#allocation2 + $0x68] sm:$0xff] %v5237
    %5254 = vst [vmem:[#allocation2 + $0x70] sm:$0xff] %v5238
    %5255 = vst [vmem:[#allocation2 + $0x78] sm:$0xff] %v5239
    // Predicated region
    $region50: #{block_forward.1} parent=1 // pred_check
      _
    $region51: #{block_forward.1} parent=1 // pred_check_branch
      %5257 = sbr.rel (0) target = $region53
    $region52: #{block_forward.1} parent=1 // pred_region
      %s5259 = ssub.s32 2048, 2048
      %5260 = vsyncadd [#allocation3], %s5259
      %s5261 = sshll.u32 [#allocation2], 4
      %s5262 = int_to_ptr.vmem [resolvable:$true] %s5261
      %5267 = dma.vmem_to_hbm [thread:$0]  %s5262, 2048, %s12, [#allocation3], 128, 128, 8
    $region53: #{block_forward.1} parent=1 // pred_fallthru
      _
    // Predicated region
    $region54: #{block_forward.1} parent=1 // pred_check
      _
    $region55: #{block_forward.1} parent=1 // pred_check_branch
      %5269 = sbr.rel (0) target = $region57
    $region56: #{block_forward.1} parent=1 // pred_region
      %5270 = dma.done [#allocation3], 2048
    $region57: #{block_forward.1} parent=1 // pred_fallthru
      _
    %5271 = vsyncpa [#allocation3], 1

</llo_original>
